<compile_context>
chip_gen: v6e
topology: v6e:2x2x1
jax: 0.10.0
libtpu: 0.0.40
codegen_flags: <defaults>
</compile_context>

<pallas_src>
import jax
import jax.numpy as jnp
from jax.experimental import pallas as pl
from jax.experimental.pallas import tpu as pltpu

NEG_SLOPE = 0.01          # PyTorch nn.LeakyReLU default
BN_EPS = 1e-5             # PyTorch nn.BatchNorm2d default
BLOCK_SIZES = (3, 2, 2)   # conv layers per block; MaxPool2d(2) after each block


# ----------------------------- in-kernel building blocks -----------------------------

def _conv_bn_lrelu(x, w9_ref, shift_ref):
    """3x3 circular conv (single im2col matmul) + folded BN(eval) + LeakyReLU.

    x         : (B, H, W, Cin) VMEM-resident value
    w9_ref    : (9*Cin, Cout)  BN-scale-folded, tap-stacked weight (tap order dy, dx, c)
    shift_ref : (1, Cout)      folded BN shift (+ conv bias)
    returns   : (B, H, W, Cout)
    """
    B, H, W, C = x.shape
    Cout = w9_ref.shape[-1]

    # tap(dy, dx)[i, j] = x[(i + dy - 1) % H, (j + dx - 1) % W]  (circular padding of 1)
    #   => roll by (1 - dy) along H and (1 - dx) along W.
    # Build the im2col operand with channel order (dy, dx, c) to match w.reshape(9C, Cout).
    xw = jnp.concatenate(
        [jnp.roll(x, 1, axis=2), x, jnp.roll(x, -1, axis=2)], axis=-1)      # (B,H,W,3C)
    patches = jnp.concatenate(
        [jnp.roll(xw, 1, axis=1), xw, jnp.roll(xw, -1, axis=1)], axis=-1)   # (B,H,W,9C)
    patches = patches.reshape(B * H * W, 9 * C)

    # Single MXU matmul per layer; BN scale already folded into w9, so only a shift add.
    y = jnp.dot(patches, w9_ref[...], preferred_element_type=jnp.float32) + shift_ref[...]
    y = jnp.where(y > 0, y, NEG_SLOPE * y)                                  # LeakyReLU
    return y.reshape(B, H, W, Cout)


def _maxpool2(x):
    """MaxPool2d(kernel=2, stride=2) on a VMEM-resident (B, H, W, C) value."""
    B, H, W, C = x.shape
    x = jnp.max(x.reshape(B, H, W // 2, 2, C), axis=3)        # pool along W
    x = jnp.max(x.reshape(B, H // 2, 2, W // 2, C), axis=2)   # pool along H
    return x


def _make_cnn_kernel(block_sizes):
    n_conv = sum(block_sizes)

    def kernel(*refs):
        # refs = [x, (w9, shift) * n_conv, fc_w, fc_b, out]
        x_ref = refs[0]
        conv_refs = [(refs[1 + 2 * i], refs[2 + 2 * i]) for i in range(n_conv)]
        fcw_ref = refs[1 + 2 * n_conv]
        fcb_ref = refs[2 + 2 * n_conv]
        out_ref = refs[3 + 2 * n_conv]

        x = x_ref[...].astype(jnp.float32)
        li = 0
        for n_layers in block_sizes:
            for _ in range(n_layers):
                w9_ref, s_ref = conv_refs[li]
                x = _conv_bn_lrelu(x, w9_ref, s_ref)
                li += 1
            x = _maxpool2(x)

        # Flatten (robust even if spatial != 1x1), Linear(24, 18) + exact Softmax(dim=1).
        feat = x.reshape(x.shape[0], -1)
        logits = jnp.dot(feat, fcw_ref[...],
                         preferred_element_type=jnp.float32) + fcb_ref[...]
        m = jnp.max(logits, axis=-1, keepdims=True)
        e = jnp.exp(logits - m)
        out_ref[...] = (e / jnp.sum(e, axis=-1, keepdims=True)).astype(out_ref.dtype)

    return kernel


# ----------------------------- wrapper -----------------------------

def cnn_forward(params, x_nchw, *, batch_block=None):
    x = jnp.transpose(x_nchw, (0, 2, 3, 1)).astype(jnp.float32)   # NCHW -> NHWC
    B, H, W, Cin0 = x.shape
    blocks = params["blocks"]

    # Batch tiling: block over B so v7x can shard grid steps across both TensorCores.
    tb = B if batch_block is None else min(batch_block, B)
    assert B % tb == 0 and (tb == B or tb % 8 == 0), "batch block must divide B (and be 8-aligned if < B)"
    grid = (B // tb,)

    inputs = [x]
    in_specs = [pl.BlockSpec((tb, H, W, Cin0), lambda i: (i, 0, 0, 0))]
    for block in blocks:
        for layer in block:
            w = layer["w"]                       # (3, 3, Cin, Cout), NHWC kernel
            cin, cout = w.shape[2], w.shape[3]
            # Fold BN scale into the weights (parameter-side hoist) and stack the 9 taps
            # along the contraction dim: (3,3,Cin,Cout) -> (9*Cin, Cout), order (dy,dx,c).
            w9 = (w * layer["scale"]).reshape(9 * cin, cout)
            inputs += [w9, layer["shift"].reshape(1, cout)]
            in_specs += [pl.BlockSpec((9 * cin, cout), lambda i: (0, 0)),
                         pl.BlockSpec((1, cout), lambda i: (0, 0))]

    fc_w = params["fc_w"]
    fc_b = params["fc_b"].reshape(1, -1)
    inputs += [fc_w, fc_b]
    in_specs += [pl.BlockSpec(fc_w.shape, lambda i: (0, 0)),
                 pl.BlockSpec(fc_b.shape, lambda i: (0, 0))]

    n_out = fc_w.shape[1]
    kernel = _make_cnn_kernel(tuple(len(b) for b in blocks))

    return pl.pallas_call(
        kernel,
        out_shape=jax.ShapeDtypeStruct((B, n_out), jnp.float32),
        grid=grid,
        in_specs=in_specs,
        out_specs=pl.BlockSpec((tb, n_out), lambda i: (i, 0)),
        compiler_params=pltpu.CompilerParams(dimension_semantics=("parallel",)),
    )(*inputs)


# ----------------------------- deterministic parameter init -----------------------------

def make_conv_bn_params(key, cin, cout):
    k = jax.random.split(key, 6)
    w = 0.1 * jax.random.normal(k[0], (cout, cin, 3, 3), jnp.float32)   # torch OIHW
    b = 0.1 * jax.random.normal(k[1], (cout,), jnp.float32)
    gamma = 1.0 + 0.1 * jax.random.normal(k[2], (cout,), jnp.float32)
    beta = 0.1 * jax.random.normal(k[3], (cout,), jnp.float32)
    rmean = 0.1 * jax.random.normal(k[4], (cout,), jnp.float32)
    rvar = jax.random.uniform(k[5], (cout,), jnp.float32, 0.5, 1.5)
    # BN(eval): y = gamma*(z - mean)/sqrt(var+eps) + beta, with the conv bias folded in.
    s = gamma / jnp.sqrt(rvar + BN_EPS)
    shift = s * (b - rmean) + beta
    w_hwio = jnp.transpose(w, (2, 3, 1, 0))        # (3, 3, Cin, Cout) for NHWC kernel
    return {"w": w_hwio, "scale": s, "shift": shift}


# ----------------------------- pure-JAX reference (for validation) -----------------------------

def reference_forward(params, x_nchw):
    x = jnp.transpose(x_nchw, (0, 2, 3, 1)).astype(jnp.float32)
    for block in params["blocks"]:
        for layer in block:
            B, H, W, _ = x.shape
            cout = layer["w"].shape[-1]
            xp = jnp.pad(x, ((0, 0), (1, 1), (1, 1), (0, 0)), mode="wrap")
            acc = jnp.zeros((B, H, W, cout), jnp.float32)
            for dy in range(3):
                for dx in range(3):
                    acc = acc + jnp.einsum("bhwc,cd->bhwd",
                                           xp[:, dy:dy + H, dx:dx + W, :],
                                           layer["w"][dy, dx])
            y = acc * layer["scale"] + layer["shift"]
            x = jnp.where(y > 0, y, NEG_SLOPE * y)
        B, H, W, C = x.shape
        x = jnp.max(x.reshape(B, H // 2, 2, W // 2, 2, C), axis=(2, 4))
    feat = x.reshape(x.shape[0], -1)
    logits = feat @ params["fc_w"] + params["fc_b"]
    return jax.nn.softmax(logits, axis=-1)


# ----------------------------- main -----------------------------

if __name__ == "__main__":
    key = jax.random.PRNGKey(0)
    keys = jax.random.split(key, 10)
    params = {
        "blocks": [
            # conv1 = make_cnn2(3, 6, pool=True): 3x (conv+BN+LeakyReLU) then MaxPool2d(2)
            [make_conv_bn_params(keys[0], 3, 6),
             make_conv_bn_params(keys[1], 6, 6),
             make_conv_bn_params(keys[2], 6, 6)],
            # conv2: 2x (conv+BN+LeakyReLU) then MaxPool2d(2)
            [make_conv_bn_params(keys[3], 6, 12),
             make_conv_bn_params(keys[4], 12, 12)],
            # conv3: 2x (conv+BN+LeakyReLU) then MaxPool2d(2)
            [make_conv_bn_params(keys[5], 12, 24),
             make_conv_bn_params(keys[6], 24, 24)],
        ],
        # fc: Linear(24, 18) + Softmax(dim=1); torch weight (18, 24) -> transposed (24, 18)
        "fc_w": jnp.transpose(0.1 * jax.random.normal(keys[7], (18, 24), jnp.float32)),
        "fc_b": 0.1 * jax.random.normal(keys[8], (18,), jnp.float32),
    }

    # Input (NCHW): Linear(24, 18) after flatten implies 1x1 spatial after three 2x2
    # maxpools, so input spatial must be 8x8.  batch=2, channels=3.
    x = jax.random.normal(keys[9], (2, 3, 8, 8), jnp.float32)

    out = cnn_forward(params, x)
    out = jax.block_until_ready(out)

    ref = reference_forward(params, x)

    assert out.shape == (2, 18)
    assert bool(jnp.allclose(jnp.sum(out, axis=1), 1.0, atol=1e-5))        # softmax rows sum to 1
    assert bool(jnp.allclose(out, ref, atol=1e-4)), "mismatch vs pure-JAX reference"
    print("KERNEL_OK")
</pallas_src>

<mosaic_0001>
module attributes {stable_mosaic.version = 11 : i64} {
  func.func @kernel(%arg0: i32, %arg1: memref<2x8x8x3xf32, #tpu.memory_space<vmem>>, %arg2: memref<27x6xf32, #tpu.memory_space<vmem>>, %arg3: memref<1x6xf32, #tpu.memory_space<vmem>>, %arg4: memref<54x6xf32, #tpu.memory_space<vmem>>, %arg5: memref<1x6xf32, #tpu.memory_space<vmem>>, %arg6: memref<54x6xf32, #tpu.memory_space<vmem>>, %arg7: memref<1x6xf32, #tpu.memory_space<vmem>>, %arg8: memref<54x12xf32, #tpu.memory_space<vmem>>, %arg9: memref<1x12xf32, #tpu.memory_space<vmem>>, %arg10: memref<108x12xf32, #tpu.memory_space<vmem>>, %arg11: memref<1x12xf32, #tpu.memory_space<vmem>>, %arg12: memref<108x24xf32, #tpu.memory_space<vmem>>, %arg13: memref<1x24xf32, #tpu.memory_space<vmem>>, %arg14: memref<216x24xf32, #tpu.memory_space<vmem>>, %arg15: memref<1x24xf32, #tpu.memory_space<vmem>>, %arg16: memref<24x18xf32, #tpu.memory_space<vmem>>, %arg17: memref<1x18xf32, #tpu.memory_space<vmem>>, %arg18: memref<2x18xf32, #tpu.memory_space<vmem>>) attributes {dimension_semantics = [#tpu.dimension_semantics<parallel>], iteration_bounds = array<i64: 1>, scalar_prefetch = 0 : i64, scratch_operands = 0 : i64, tpu.core_type = #tpu.core_type<tc>, window_params = [{transform_indices = @transform_0, window_bounds = array<i64: 2, 8, 8, 3>}, {pipeline_mode = #tpu.pipeline_mode<synchronous>, transform_indices = @transform_1, window_bounds = array<i64: 27, 6>}, {pipeline_mode = #tpu.pipeline_mode<synchronous>, transform_indices = @transform_2, window_bounds = array<i64: 1, 6>}, {pipeline_mode = #tpu.pipeline_mode<synchronous>, transform_indices = @transform_3, window_bounds = array<i64: 54, 6>}, {pipeline_mode = #tpu.pipeline_mode<synchronous>, transform_indices = @transform_4, window_bounds = array<i64: 1, 6>}, {pipeline_mode = #tpu.pipeline_mode<synchronous>, transform_indices = @transform_5, window_bounds = array<i64: 54, 6>}, {pipeline_mode = #tpu.pipeline_mode<synchronous>, transform_indices = @transform_6, window_bounds = array<i64: 1, 6>}, {pipeline_mode = #tpu.pipeline_mode<synchronous>, transform_indices = @transform_7, window_bounds = array<i64: 54, 12>}, {pipeline_mode = #tpu.pipeline_mode<synchronous>, transform_indices = @transform_8, window_bounds = array<i64: 1, 12>}, {pipeline_mode = #tpu.pipeline_mode<synchronous>, transform_indices = @transform_9, window_bounds = array<i64: 108, 12>}, {pipeline_mode = #tpu.pipeline_mode<synchronous>, transform_indices = @transform_10, window_bounds = array<i64: 1, 12>}, {pipeline_mode = #tpu.pipeline_mode<synchronous>, transform_indices = @transform_11, window_bounds = array<i64: 108, 24>}, {pipeline_mode = #tpu.pipeline_mode<synchronous>, transform_indices = @transform_12, window_bounds = array<i64: 1, 24>}, {pipeline_mode = #tpu.pipeline_mode<synchronous>, transform_indices = @transform_13, window_bounds = array<i64: 216, 24>}, {pipeline_mode = #tpu.pipeline_mode<synchronous>, transform_indices = @transform_14, window_bounds = array<i64: 1, 24>}, {pipeline_mode = #tpu.pipeline_mode<synchronous>, transform_indices = @transform_15, window_bounds = array<i64: 24, 18>}, {pipeline_mode = #tpu.pipeline_mode<synchronous>, transform_indices = @transform_16, window_bounds = array<i64: 1, 18>}, {transform_indices = @transform_17, window_bounds = array<i64: 2, 18>}]} {
    %c0 = arith.constant 0 : index
    %c0_0 = arith.constant 0 : index
    %c0_1 = arith.constant 0 : index
    %c0_2 = arith.constant 0 : index
    %0 = vector.load %arg1[%c0, %c0_0, %c0_1, %c0_2] : memref<2x8x8x3xf32, #tpu.memory_space<vmem>>, vector<2x8x8x3xf32>
    %1 = vector.extract_strided_slice %0 {offsets = [0, 0, 7, 0], sizes = [2, 8, 1, 3], strides = [1, 1, 1, 1]} : vector<2x8x8x3xf32> to vector<2x8x1x3xf32>
    %2 = vector.extract_strided_slice %0 {offsets = [0, 0, 0, 0], sizes = [2, 8, 7, 3], strides = [1, 1, 1, 1]} : vector<2x8x8x3xf32> to vector<2x8x7x3xf32>
    %3 = tpu.concatenate %1, %2 in 2 : vector<2x8x1x3xf32>, vector<2x8x7x3xf32> -> vector<2x8x8x3xf32>
    %4 = vector.extract_strided_slice %0 {offsets = [0, 0, 1, 0], sizes = [2, 8, 7, 3], strides = [1, 1, 1, 1]} : vector<2x8x8x3xf32> to vector<2x8x7x3xf32>
    %5 = vector.extract_strided_slice %0 {offsets = [0, 0, 0, 0], sizes = [2, 8, 1, 3], strides = [1, 1, 1, 1]} : vector<2x8x8x3xf32> to vector<2x8x1x3xf32>
    %6 = tpu.concatenate %4, %5 in 2 : vector<2x8x7x3xf32>, vector<2x8x1x3xf32> -> vector<2x8x8x3xf32>
    %7 = tpu.concatenate %3, %0, %6 in 3 : vector<2x8x8x3xf32>, vector<2x8x8x3xf32>, vector<2x8x8x3xf32> -> vector<2x8x8x9xf32>
    %8 = vector.extract_strided_slice %7 {offsets = [0, 7, 0, 0], sizes = [2, 1, 8, 9], strides = [1, 1, 1, 1]} : vector<2x8x8x9xf32> to vector<2x1x8x9xf32>
    %9 = vector.extract_strided_slice %7 {offsets = [0, 0, 0, 0], sizes = [2, 7, 8, 9], strides = [1, 1, 1, 1]} : vector<2x8x8x9xf32> to vector<2x7x8x9xf32>
    %10 = tpu.concatenate %8, %9 in 1 : vector<2x1x8x9xf32>, vector<2x7x8x9xf32> -> vector<2x8x8x9xf32>
    %11 = vector.extract_strided_slice %7 {offsets = [0, 1, 0, 0], sizes = [2, 7, 8, 9], strides = [1, 1, 1, 1]} : vector<2x8x8x9xf32> to vector<2x7x8x9xf32>
    %12 = vector.extract_strided_slice %7 {offsets = [0, 0, 0, 0], sizes = [2, 1, 8, 9], strides = [1, 1, 1, 1]} : vector<2x8x8x9xf32> to vector<2x1x8x9xf32>
    %13 = tpu.concatenate %11, %12 in 1 : vector<2x7x8x9xf32>, vector<2x1x8x9xf32> -> vector<2x8x8x9xf32>
    %14 = tpu.concatenate %10, %7, %13 in 3 : vector<2x8x8x9xf32>, vector<2x8x8x9xf32>, vector<2x8x8x9xf32> -> vector<2x8x8x27xf32>
    %15 = vector.shape_cast %14 : vector<2x8x8x27xf32> to vector<128x27xf32>
    %c0_3 = arith.constant 0 : index
    %c0_4 = arith.constant 0 : index
    %16 = vector.load %arg2[%c0_3, %c0_4] : memref<27x6xf32, #tpu.memory_space<vmem>>, vector<27x6xf32>
    %cst = arith.constant dense<0.000000e+00> : vector<128x6xf32>
    %17 = tpu.matmul %15, %16, %cst {dimension_numbers = #tpu.dot_dimension_numbers<[1], [0], [0], [1], [0, 0, 1, 1], [], []>} : vector<128x27xf32>, vector<27x6xf32>, vector<128x6xf32> -> vector<128x6xf32>
    %c0_5 = arith.constant 0 : index
    %c0_6 = arith.constant 0 : index
    %18 = vector.load %arg3[%c0_5, %c0_6] : memref<1x6xf32, #tpu.memory_space<vmem>>, vector<1x6xf32>
    %19 = vector.broadcast %18 : vector<1x6xf32> to vector<128x6xf32>
    %20 = arith.addf %17, %19 : vector<128x6xf32>
    %cst_7 = arith.constant 0.000000e+00 : f32
    %21 = vector.broadcast %cst_7 : f32 to vector<128x6xf32>
    %22 = arith.cmpf ogt, %20, %21 : vector<128x6xf32>
    %cst_8 = arith.constant 0.00999999977 : f32
    %23 = vector.broadcast %cst_8 : f32 to vector<128x6xf32>
    %24 = arith.mulf %23, %20 : vector<128x6xf32>
    %25 = arith.select %22, %20, %24 : vector<128x6xi1>, vector<128x6xf32>
    %26 = vector.shape_cast %25 : vector<128x6xf32> to vector<2x8x8x6xf32>
    %27 = vector.extract_strided_slice %26 {offsets = [0, 0, 7, 0], sizes = [2, 8, 1, 6], strides = [1, 1, 1, 1]} : vector<2x8x8x6xf32> to vector<2x8x1x6xf32>
    %28 = vector.extract_strided_slice %26 {offsets = [0, 0, 0, 0], sizes = [2, 8, 7, 6], strides = [1, 1, 1, 1]} : vector<2x8x8x6xf32> to vector<2x8x7x6xf32>
    %29 = tpu.concatenate %27, %28 in 2 : vector<2x8x1x6xf32>, vector<2x8x7x6xf32> -> vector<2x8x8x6xf32>
    %30 = vector.extract_strided_slice %26 {offsets = [0, 0, 1, 0], sizes = [2, 8, 7, 6], strides = [1, 1, 1, 1]} : vector<2x8x8x6xf32> to vector<2x8x7x6xf32>
    %31 = vector.extract_strided_slice %26 {offsets = [0, 0, 0, 0], sizes = [2, 8, 1, 6], strides = [1, 1, 1, 1]} : vector<2x8x8x6xf32> to vector<2x8x1x6xf32>
    %32 = tpu.concatenate %30, %31 in 2 : vector<2x8x7x6xf32>, vector<2x8x1x6xf32> -> vector<2x8x8x6xf32>
    %33 = tpu.concatenate %29, %26, %32 in 3 : vector<2x8x8x6xf32>, vector<2x8x8x6xf32>, vector<2x8x8x6xf32> -> vector<2x8x8x18xf32>
    %34 = vector.extract_strided_slice %33 {offsets = [0, 7, 0, 0], sizes = [2, 1, 8, 18], strides = [1, 1, 1, 1]} : vector<2x8x8x18xf32> to vector<2x1x8x18xf32>
    %35 = vector.extract_strided_slice %33 {offsets = [0, 0, 0, 0], sizes = [2, 7, 8, 18], strides = [1, 1, 1, 1]} : vector<2x8x8x18xf32> to vector<2x7x8x18xf32>
    %36 = tpu.concatenate %34, %35 in 1 : vector<2x1x8x18xf32>, vector<2x7x8x18xf32> -> vector<2x8x8x18xf32>
    %37 = vector.extract_strided_slice %33 {offsets = [0, 1, 0, 0], sizes = [2, 7, 8, 18], strides = [1, 1, 1, 1]} : vector<2x8x8x18xf32> to vector<2x7x8x18xf32>
    %38 = vector.extract_strided_slice %33 {offsets = [0, 0, 0, 0], sizes = [2, 1, 8, 18], strides = [1, 1, 1, 1]} : vector<2x8x8x18xf32> to vector<2x1x8x18xf32>
    %39 = tpu.concatenate %37, %38 in 1 : vector<2x7x8x18xf32>, vector<2x1x8x18xf32> -> vector<2x8x8x18xf32>
    %40 = tpu.concatenate %36, %33, %39 in 3 : vector<2x8x8x18xf32>, vector<2x8x8x18xf32>, vector<2x8x8x18xf32> -> vector<2x8x8x54xf32>
    %41 = vector.shape_cast %40 : vector<2x8x8x54xf32> to vector<128x54xf32>
    %c0_9 = arith.constant 0 : index
    %c0_10 = arith.constant 0 : index
    %42 = vector.load %arg4[%c0_9, %c0_10] : memref<54x6xf32, #tpu.memory_space<vmem>>, vector<54x6xf32>
    %cst_11 = arith.constant dense<0.000000e+00> : vector<128x6xf32>
    %43 = tpu.matmul %41, %42, %cst_11 {dimension_numbers = #tpu.dot_dimension_numbers<[1], [0], [0], [1], [0, 0, 1, 1], [], []>} : vector<128x54xf32>, vector<54x6xf32>, vector<128x6xf32> -> vector<128x6xf32>
    %c0_12 = arith.constant 0 : index
    %c0_13 = arith.constant 0 : index
    %44 = vector.load %arg5[%c0_12, %c0_13] : memref<1x6xf32, #tpu.memory_space<vmem>>, vector<1x6xf32>
    %45 = vector.broadcast %44 : vector<1x6xf32> to vector<128x6xf32>
    %46 = arith.addf %43, %45 : vector<128x6xf32>
    %cst_14 = arith.constant 0.000000e+00 : f32
    %47 = vector.broadcast %cst_14 : f32 to vector<128x6xf32>
    %48 = arith.cmpf ogt, %46, %47 : vector<128x6xf32>
    %cst_15 = arith.constant 0.00999999977 : f32
    %49 = vector.broadcast %cst_15 : f32 to vector<128x6xf32>
    %50 = arith.mulf %49, %46 : vector<128x6xf32>
    %51 = arith.select %48, %46, %50 : vector<128x6xi1>, vector<128x6xf32>
    %52 = vector.shape_cast %51 : vector<128x6xf32> to vector<2x8x8x6xf32>
    %53 = vector.extract_strided_slice %52 {offsets = [0, 0, 7, 0], sizes = [2, 8, 1, 6], strides = [1, 1, 1, 1]} : vector<2x8x8x6xf32> to vector<2x8x1x6xf32>
    %54 = vector.extract_strided_slice %52 {offsets = [0, 0, 0, 0], sizes = [2, 8, 7, 6], strides = [1, 1, 1, 1]} : vector<2x8x8x6xf32> to vector<2x8x7x6xf32>
    %55 = tpu.concatenate %53, %54 in 2 : vector<2x8x1x6xf32>, vector<2x8x7x6xf32> -> vector<2x8x8x6xf32>
    %56 = vector.extract_strided_slice %52 {offsets = [0, 0, 1, 0], sizes = [2, 8, 7, 6], strides = [1, 1, 1, 1]} : vector<2x8x8x6xf32> to vector<2x8x7x6xf32>
    %57 = vector.extract_strided_slice %52 {offsets = [0, 0, 0, 0], sizes = [2, 8, 1, 6], strides = [1, 1, 1, 1]} : vector<2x8x8x6xf32> to vector<2x8x1x6xf32>
    %58 = tpu.concatenate %56, %57 in 2 : vector<2x8x7x6xf32>, vector<2x8x1x6xf32> -> vector<2x8x8x6xf32>
    %59 = tpu.concatenate %55, %52, %58 in 3 : vector<2x8x8x6xf32>, vector<2x8x8x6xf32>, vector<2x8x8x6xf32> -> vector<2x8x8x18xf32>
    %60 = vector.extract_strided_slice %59 {offsets = [0, 7, 0, 0], sizes = [2, 1, 8, 18], strides = [1, 1, 1, 1]} : vector<2x8x8x18xf32> to vector<2x1x8x18xf32>
    %61 = vector.extract_strided_slice %59 {offsets = [0, 0, 0, 0], sizes = [2, 7, 8, 18], strides = [1, 1, 1, 1]} : vector<2x8x8x18xf32> to vector<2x7x8x18xf32>
    %62 = tpu.concatenate %60, %61 in 1 : vector<2x1x8x18xf32>, vector<2x7x8x18xf32> -> vector<2x8x8x18xf32>
    %63 = vector.extract_strided_slice %59 {offsets = [0, 1, 0, 0], sizes = [2, 7, 8, 18], strides = [1, 1, 1, 1]} : vector<2x8x8x18xf32> to vector<2x7x8x18xf32>
    %64 = vector.extract_strided_slice %59 {offsets = [0, 0, 0, 0], sizes = [2, 1, 8, 18], strides = [1, 1, 1, 1]} : vector<2x8x8x18xf32> to vector<2x1x8x18xf32>
    %65 = tpu.concatenate %63, %64 in 1 : vector<2x7x8x18xf32>, vector<2x1x8x18xf32> -> vector<2x8x8x18xf32>
    %66 = tpu.concatenate %62, %59, %65 in 3 : vector<2x8x8x18xf32>, vector<2x8x8x18xf32>, vector<2x8x8x18xf32> -> vector<2x8x8x54xf32>
    %67 = vector.shape_cast %66 : vector<2x8x8x54xf32> to vector<128x54xf32>
    %c0_16 = arith.constant 0 : index
    %c0_17 = arith.constant 0 : index
    %68 = vector.load %arg6[%c0_16, %c0_17] : memref<54x6xf32, #tpu.memory_space<vmem>>, vector<54x6xf32>
    %cst_18 = arith.constant dense<0.000000e+00> : vector<128x6xf32>
    %69 = tpu.matmul %67, %68, %cst_18 {dimension_numbers = #tpu.dot_dimension_numbers<[1], [0], [0], [1], [0, 0, 1, 1], [], []>} : vector<128x54xf32>, vector<54x6xf32>, vector<128x6xf32> -> vector<128x6xf32>
    %c0_19 = arith.constant 0 : index
    %c0_20 = arith.constant 0 : index
    %70 = vector.load %arg7[%c0_19, %c0_20] : memref<1x6xf32, #tpu.memory_space<vmem>>, vector<1x6xf32>
    %71 = vector.broadcast %70 : vector<1x6xf32> to vector<128x6xf32>
    %72 = arith.addf %69, %71 : vector<128x6xf32>
    %cst_21 = arith.constant 0.000000e+00 : f32
    %73 = vector.broadcast %cst_21 : f32 to vector<128x6xf32>
    %74 = arith.cmpf ogt, %72, %73 : vector<128x6xf32>
    %cst_22 = arith.constant 0.00999999977 : f32
    %75 = vector.broadcast %cst_22 : f32 to vector<128x6xf32>
    %76 = arith.mulf %75, %72 : vector<128x6xf32>
    %77 = arith.select %74, %72, %76 : vector<128x6xi1>, vector<128x6xf32>
    %78 = vector.shape_cast %77 : vector<128x6xf32> to vector<2x8x8x6xf32>
    %79 = vector.shape_cast %78 : vector<2x8x8x6xf32> to vector<2x8x4x2x6xf32>
    %cst_23 = arith.constant dense<0xFF800000> : vector<2x8x4x6xf32>
    %80 = vector.multi_reduction <maximumf>, %79, %cst_23 [3] : vector<2x8x4x2x6xf32> to vector<2x8x4x6xf32>
    %81 = vector.shape_cast %80 : vector<2x8x4x6xf32> to vector<2x4x2x4x6xf32>
    %cst_24 = arith.constant dense<0xFF800000> : vector<2x4x4x6xf32>
    %82 = vector.multi_reduction <maximumf>, %81, %cst_24 [2] : vector<2x4x2x4x6xf32> to vector<2x4x4x6xf32>
    %83 = vector.extract_strided_slice %82 {offsets = [0, 0, 3, 0], sizes = [2, 4, 1, 6], strides = [1, 1, 1, 1]} : vector<2x4x4x6xf32> to vector<2x4x1x6xf32>
    %84 = vector.extract_strided_slice %82 {offsets = [0, 0, 0, 0], sizes = [2, 4, 3, 6], strides = [1, 1, 1, 1]} : vector<2x4x4x6xf32> to vector<2x4x3x6xf32>
    %85 = tpu.concatenate %83, %84 in 2 : vector<2x4x1x6xf32>, vector<2x4x3x6xf32> -> vector<2x4x4x6xf32>
    %86 = vector.extract_strided_slice %82 {offsets = [0, 0, 1, 0], sizes = [2, 4, 3, 6], strides = [1, 1, 1, 1]} : vector<2x4x4x6xf32> to vector<2x4x3x6xf32>
    %87 = vector.extract_strided_slice %82 {offsets = [0, 0, 0, 0], sizes = [2, 4, 1, 6], strides = [1, 1, 1, 1]} : vector<2x4x4x6xf32> to vector<2x4x1x6xf32>
    %88 = tpu.concatenate %86, %87 in 2 : vector<2x4x3x6xf32>, vector<2x4x1x6xf32> -> vector<2x4x4x6xf32>
    %89 = tpu.concatenate %85, %82, %88 in 3 : vector<2x4x4x6xf32>, vector<2x4x4x6xf32>, vector<2x4x4x6xf32> -> vector<2x4x4x18xf32>
    %90 = vector.extract_strided_slice %89 {offsets = [0, 3, 0, 0], sizes = [2, 1, 4, 18], strides = [1, 1, 1, 1]} : vector<2x4x4x18xf32> to vector<2x1x4x18xf32>
    %91 = vector.extract_strided_slice %89 {offsets = [0, 0, 0, 0], sizes = [2, 3, 4, 18], strides = [1, 1, 1, 1]} : vector<2x4x4x18xf32> to vector<2x3x4x18xf32>
    %92 = tpu.concatenate %90, %91 in 1 : vector<2x1x4x18xf32>, vector<2x3x4x18xf32> -> vector<2x4x4x18xf32>
    %93 = vector.extract_strided_slice %89 {offsets = [0, 1, 0, 0], sizes = [2, 3, 4, 18], strides = [1, 1, 1, 1]} : vector<2x4x4x18xf32> to vector<2x3x4x18xf32>
    %94 = vector.extract_strided_slice %89 {offsets = [0, 0, 0, 0], sizes = [2, 1, 4, 18], strides = [1, 1, 1, 1]} : vector<2x4x4x18xf32> to vector<2x1x4x18xf32>
    %95 = tpu.concatenate %93, %94 in 1 : vector<2x3x4x18xf32>, vector<2x1x4x18xf32> -> vector<2x4x4x18xf32>
    %96 = tpu.concatenate %92, %89, %95 in 3 : vector<2x4x4x18xf32>, vector<2x4x4x18xf32>, vector<2x4x4x18xf32> -> vector<2x4x4x54xf32>
    %97 = vector.shape_cast %96 : vector<2x4x4x54xf32> to vector<32x54xf32>
    %c0_25 = arith.constant 0 : index
    %c0_26 = arith.constant 0 : index
    %98 = vector.load %arg8[%c0_25, %c0_26] : memref<54x12xf32, #tpu.memory_space<vmem>>, vector<54x12xf32>
    %cst_27 = arith.constant dense<0.000000e+00> : vector<32x12xf32>
    %99 = tpu.matmul %97, %98, %cst_27 {dimension_numbers = #tpu.dot_dimension_numbers<[1], [0], [0], [1], [0, 0, 1, 1], [], []>} : vector<32x54xf32>, vector<54x12xf32>, vector<32x12xf32> -> vector<32x12xf32>
    %c0_28 = arith.constant 0 : index
    %c0_29 = arith.constant 0 : index
    %100 = vector.load %arg9[%c0_28, %c0_29] : memref<1x12xf32, #tpu.memory_space<vmem>>, vector<1x12xf32>
    %101 = vector.broadcast %100 : vector<1x12xf32> to vector<32x12xf32>
    %102 = arith.addf %99, %101 : vector<32x12xf32>
    %cst_30 = arith.constant 0.000000e+00 : f32
    %103 = vector.broadcast %cst_30 : f32 to vector<32x12xf32>
    %104 = arith.cmpf ogt, %102, %103 : vector<32x12xf32>
    %cst_31 = arith.constant 0.00999999977 : f32
    %105 = vector.broadcast %cst_31 : f32 to vector<32x12xf32>
    %106 = arith.mulf %105, %102 : vector<32x12xf32>
    %107 = arith.select %104, %102, %106 : vector<32x12xi1>, vector<32x12xf32>
    %108 = vector.shape_cast %107 : vector<32x12xf32> to vector<2x4x4x12xf32>
    %109 = vector.extract_strided_slice %108 {offsets = [0, 0, 3, 0], sizes = [2, 4, 1, 12], strides = [1, 1, 1, 1]} : vector<2x4x4x12xf32> to vector<2x4x1x12xf32>
    %110 = vector.extract_strided_slice %108 {offsets = [0, 0, 0, 0], sizes = [2, 4, 3, 12], strides = [1, 1, 1, 1]} : vector<2x4x4x12xf32> to vector<2x4x3x12xf32>
    %111 = tpu.concatenate %109, %110 in 2 : vector<2x4x1x12xf32>, vector<2x4x3x12xf32> -> vector<2x4x4x12xf32>
    %112 = vector.extract_strided_slice %108 {offsets = [0, 0, 1, 0], sizes = [2, 4, 3, 12], strides = [1, 1, 1, 1]} : vector<2x4x4x12xf32> to vector<2x4x3x12xf32>
    %113 = vector.extract_strided_slice %108 {offsets = [0, 0, 0, 0], sizes = [2, 4, 1, 12], strides = [1, 1, 1, 1]} : vector<2x4x4x12xf32> to vector<2x4x1x12xf32>
    %114 = tpu.concatenate %112, %113 in 2 : vector<2x4x3x12xf32>, vector<2x4x1x12xf32> -> vector<2x4x4x12xf32>
    %115 = tpu.concatenate %111, %108, %114 in 3 : vector<2x4x4x12xf32>, vector<2x4x4x12xf32>, vector<2x4x4x12xf32> -> vector<2x4x4x36xf32>
    %116 = vector.extract_strided_slice %115 {offsets = [0, 3, 0, 0], sizes = [2, 1, 4, 36], strides = [1, 1, 1, 1]} : vector<2x4x4x36xf32> to vector<2x1x4x36xf32>
    %117 = vector.extract_strided_slice %115 {offsets = [0, 0, 0, 0], sizes = [2, 3, 4, 36], strides = [1, 1, 1, 1]} : vector<2x4x4x36xf32> to vector<2x3x4x36xf32>
    %118 = tpu.concatenate %116, %117 in 1 : vector<2x1x4x36xf32>, vector<2x3x4x36xf32> -> vector<2x4x4x36xf32>
    %119 = vector.extract_strided_slice %115 {offsets = [0, 1, 0, 0], sizes = [2, 3, 4, 36], strides = [1, 1, 1, 1]} : vector<2x4x4x36xf32> to vector<2x3x4x36xf32>
    %120 = vector.extract_strided_slice %115 {offsets = [0, 0, 0, 0], sizes = [2, 1, 4, 36], strides = [1, 1, 1, 1]} : vector<2x4x4x36xf32> to vector<2x1x4x36xf32>
    %121 = tpu.concatenate %119, %120 in 1 : vector<2x3x4x36xf32>, vector<2x1x4x36xf32> -> vector<2x4x4x36xf32>
    %122 = tpu.concatenate %118, %115, %121 in 3 : vector<2x4x4x36xf32>, vector<2x4x4x36xf32>, vector<2x4x4x36xf32> -> vector<2x4x4x108xf32>
    %123 = vector.shape_cast %122 : vector<2x4x4x108xf32> to vector<32x108xf32>
    %c0_32 = arith.constant 0 : index
    %c0_33 = arith.constant 0 : index
    %124 = vector.load %arg10[%c0_32, %c0_33] : memref<108x12xf32, #tpu.memory_space<vmem>>, vector<108x12xf32>
    %cst_34 = arith.constant dense<0.000000e+00> : vector<32x12xf32>
    %125 = tpu.matmul %123, %124, %cst_34 {dimension_numbers = #tpu.dot_dimension_numbers<[1], [0], [0], [1], [0, 0, 1, 1], [], []>} : vector<32x108xf32>, vector<108x12xf32>, vector<32x12xf32> -> vector<32x12xf32>
    %c0_35 = arith.constant 0 : index
    %c0_36 = arith.constant 0 : index
    %126 = vector.load %arg11[%c0_35, %c0_36] : memref<1x12xf32, #tpu.memory_space<vmem>>, vector<1x12xf32>
    %127 = vector.broadcast %126 : vector<1x12xf32> to vector<32x12xf32>
    %128 = arith.addf %125, %127 : vector<32x12xf32>
    %cst_37 = arith.constant 0.000000e+00 : f32
    %129 = vector.broadcast %cst_37 : f32 to vector<32x12xf32>
    %130 = arith.cmpf ogt, %128, %129 : vector<32x12xf32>
    %cst_38 = arith.constant 0.00999999977 : f32
    %131 = vector.broadcast %cst_38 : f32 to vector<32x12xf32>
    %132 = arith.mulf %131, %128 : vector<32x12xf32>
    %133 = arith.select %130, %128, %132 : vector<32x12xi1>, vector<32x12xf32>
    %134 = vector.shape_cast %133 : vector<32x12xf32> to vector<2x4x4x12xf32>
    %135 = vector.shape_cast %134 : vector<2x4x4x12xf32> to vector<2x4x2x2x12xf32>
    %cst_39 = arith.constant dense<0xFF800000> : vector<2x4x2x12xf32>
    %136 = vector.multi_reduction <maximumf>, %135, %cst_39 [3] : vector<2x4x2x2x12xf32> to vector<2x4x2x12xf32>
    %137 = vector.shape_cast %136 : vector<2x4x2x12xf32> to vector<2x2x2x2x12xf32>
    %cst_40 = arith.constant dense<0xFF800000> : vector<2x2x2x12xf32>
    %138 = vector.multi_reduction <maximumf>, %137, %cst_40 [2] : vector<2x2x2x2x12xf32> to vector<2x2x2x12xf32>
    %139 = vector.extract_strided_slice %138 {offsets = [0, 0, 1, 0], sizes = [2, 2, 1, 12], strides = [1, 1, 1, 1]} : vector<2x2x2x12xf32> to vector<2x2x1x12xf32>
    %140 = vector.extract_strided_slice %138 {offsets = [0, 0, 0, 0], sizes = [2, 2, 1, 12], strides = [1, 1, 1, 1]} : vector<2x2x2x12xf32> to vector<2x2x1x12xf32>
    %141 = tpu.concatenate %139, %140 in 2 : vector<2x2x1x12xf32>, vector<2x2x1x12xf32> -> vector<2x2x2x12xf32>
    %142 = vector.extract_strided_slice %138 {offsets = [0, 0, 1, 0], sizes = [2, 2, 1, 12], strides = [1, 1, 1, 1]} : vector<2x2x2x12xf32> to vector<2x2x1x12xf32>
    %143 = vector.extract_strided_slice %138 {offsets = [0, 0, 0, 0], sizes = [2, 2, 1, 12], strides = [1, 1, 1, 1]} : vector<2x2x2x12xf32> to vector<2x2x1x12xf32>
    %144 = tpu.concatenate %142, %143 in 2 : vector<2x2x1x12xf32>, vector<2x2x1x12xf32> -> vector<2x2x2x12xf32>
    %145 = tpu.concatenate %141, %138, %144 in 3 : vector<2x2x2x12xf32>, vector<2x2x2x12xf32>, vector<2x2x2x12xf32> -> vector<2x2x2x36xf32>
    %146 = vector.extract_strided_slice %145 {offsets = [0, 1, 0, 0], sizes = [2, 1, 2, 36], strides = [1, 1, 1, 1]} : vector<2x2x2x36xf32> to vector<2x1x2x36xf32>
    %147 = vector.extract_strided_slice %145 {offsets = [0, 0, 0, 0], sizes = [2, 1, 2, 36], strides = [1, 1, 1, 1]} : vector<2x2x2x36xf32> to vector<2x1x2x36xf32>
    %148 = tpu.concatenate %146, %147 in 1 : vector<2x1x2x36xf32>, vector<2x1x2x36xf32> -> vector<2x2x2x36xf32>
    %149 = vector.extract_strided_slice %145 {offsets = [0, 1, 0, 0], sizes = [2, 1, 2, 36], strides = [1, 1, 1, 1]} : vector<2x2x2x36xf32> to vector<2x1x2x36xf32>
    %150 = vector.extract_strided_slice %145 {offsets = [0, 0, 0, 0], sizes = [2, 1, 2, 36], strides = [1, 1, 1, 1]} : vector<2x2x2x36xf32> to vector<2x1x2x36xf32>
    %151 = tpu.concatenate %149, %150 in 1 : vector<2x1x2x36xf32>, vector<2x1x2x36xf32> -> vector<2x2x2x36xf32>
    %152 = tpu.concatenate %148, %145, %151 in 3 : vector<2x2x2x36xf32>, vector<2x2x2x36xf32>, vector<2x2x2x36xf32> -> vector<2x2x2x108xf32>
    %153 = vector.shape_cast %152 : vector<2x2x2x108xf32> to vector<8x108xf32>
    %c0_41 = arith.constant 0 : index
    %c0_42 = arith.constant 0 : index
    %154 = vector.load %arg12[%c0_41, %c0_42] : memref<108x24xf32, #tpu.memory_space<vmem>>, vector<108x24xf32>
    %cst_43 = arith.constant dense<0.000000e+00> : vector<8x24xf32>
    %155 = tpu.matmul %153, %154, %cst_43 {dimension_numbers = #tpu.dot_dimension_numbers<[1], [0], [0], [1], [0, 0, 1, 1], [], []>} : vector<8x108xf32>, vector<108x24xf32>, vector<8x24xf32> -> vector<8x24xf32>
    %c0_44 = arith.constant 0 : index
    %c0_45 = arith.constant 0 : index
    %156 = vector.load %arg13[%c0_44, %c0_45] : memref<1x24xf32, #tpu.memory_space<vmem>>, vector<1x24xf32>
    %157 = vector.broadcast %156 : vector<1x24xf32> to vector<8x24xf32>
    %158 = arith.addf %155, %157 : vector<8x24xf32>
    %cst_46 = arith.constant 0.000000e+00 : f32
    %159 = vector.broadcast %cst_46 : f32 to vector<8x24xf32>
    %160 = arith.cmpf ogt, %158, %159 : vector<8x24xf32>
    %cst_47 = arith.constant 0.00999999977 : f32
    %161 = vector.broadcast %cst_47 : f32 to vector<8x24xf32>
    %162 = arith.mulf %161, %158 : vector<8x24xf32>
    %163 = arith.select %160, %158, %162 : vector<8x24xi1>, vector<8x24xf32>
    %164 = vector.shape_cast %163 : vector<8x24xf32> to vector<2x2x2x24xf32>
    %165 = vector.extract_strided_slice %164 {offsets = [0, 0, 1, 0], sizes = [2, 2, 1, 24], strides = [1, 1, 1, 1]} : vector<2x2x2x24xf32> to vector<2x2x1x24xf32>
    %166 = vector.extract_strided_slice %164 {offsets = [0, 0, 0, 0], sizes = [2, 2, 1, 24], strides = [1, 1, 1, 1]} : vector<2x2x2x24xf32> to vector<2x2x1x24xf32>
    %167 = tpu.concatenate %165, %166 in 2 : vector<2x2x1x24xf32>, vector<2x2x1x24xf32> -> vector<2x2x2x24xf32>
    %168 = vector.extract_strided_slice %164 {offsets = [0, 0, 1, 0], sizes = [2, 2, 1, 24], strides = [1, 1, 1, 1]} : vector<2x2x2x24xf32> to vector<2x2x1x24xf32>
    %169 = vector.extract_strided_slice %164 {offsets = [0, 0, 0, 0], sizes = [2, 2, 1, 24], strides = [1, 1, 1, 1]} : vector<2x2x2x24xf32> to vector<2x2x1x24xf32>
    %170 = tpu.concatenate %168, %169 in 2 : vector<2x2x1x24xf32>, vector<2x2x1x24xf32> -> vector<2x2x2x24xf32>
    %171 = tpu.concatenate %167, %164, %170 in 3 : vector<2x2x2x24xf32>, vector<2x2x2x24xf32>, vector<2x2x2x24xf32> -> vector<2x2x2x72xf32>
    %172 = vector.extract_strided_slice %171 {offsets = [0, 1, 0, 0], sizes = [2, 1, 2, 72], strides = [1, 1, 1, 1]} : vector<2x2x2x72xf32> to vector<2x1x2x72xf32>
    %173 = vector.extract_strided_slice %171 {offsets = [0, 0, 0, 0], sizes = [2, 1, 2, 72], strides = [1, 1, 1, 1]} : vector<2x2x2x72xf32> to vector<2x1x2x72xf32>
    %174 = tpu.concatenate %172, %173 in 1 : vector<2x1x2x72xf32>, vector<2x1x2x72xf32> -> vector<2x2x2x72xf32>
    %175 = vector.extract_strided_slice %171 {offsets = [0, 1, 0, 0], sizes = [2, 1, 2, 72], strides = [1, 1, 1, 1]} : vector<2x2x2x72xf32> to vector<2x1x2x72xf32>
    %176 = vector.extract_strided_slice %171 {offsets = [0, 0, 0, 0], sizes = [2, 1, 2, 72], strides = [1, 1, 1, 1]} : vector<2x2x2x72xf32> to vector<2x1x2x72xf32>
    %177 = tpu.concatenate %175, %176 in 1 : vector<2x1x2x72xf32>, vector<2x1x2x72xf32> -> vector<2x2x2x72xf32>
    %178 = tpu.concatenate %174, %171, %177 in 3 : vector<2x2x2x72xf32>, vector<2x2x2x72xf32>, vector<2x2x2x72xf32> -> vector<2x2x2x216xf32>
    %179 = vector.shape_cast %178 : vector<2x2x2x216xf32> to vector<8x216xf32>
    %c0_48 = arith.constant 0 : index
    %c0_49 = arith.constant 0 : index
    %180 = vector.load %arg14[%c0_48, %c0_49] : memref<216x24xf32, #tpu.memory_space<vmem>>, vector<216x24xf32>
    %cst_50 = arith.constant dense<0.000000e+00> : vector<8x24xf32>
    %181 = tpu.matmul %179, %180, %cst_50 {dimension_numbers = #tpu.dot_dimension_numbers<[1], [0], [0], [1], [0, 0, 1, 1], [], []>} : vector<8x216xf32>, vector<216x24xf32>, vector<8x24xf32> -> vector<8x24xf32>
    %c0_51 = arith.constant 0 : index
    %c0_52 = arith.constant 0 : index
    %182 = vector.load %arg15[%c0_51, %c0_52] : memref<1x24xf32, #tpu.memory_space<vmem>>, vector<1x24xf32>
    %183 = vector.broadcast %182 : vector<1x24xf32> to vector<8x24xf32>
    %184 = arith.addf %181, %183 : vector<8x24xf32>
    %cst_53 = arith.constant 0.000000e+00 : f32
    %185 = vector.broadcast %cst_53 : f32 to vector<8x24xf32>
    %186 = arith.cmpf ogt, %184, %185 : vector<8x24xf32>
    %cst_54 = arith.constant 0.00999999977 : f32
    %187 = vector.broadcast %cst_54 : f32 to vector<8x24xf32>
    %188 = arith.mulf %187, %184 : vector<8x24xf32>
    %189 = arith.select %186, %184, %188 : vector<8x24xi1>, vector<8x24xf32>
    %190 = vector.shape_cast %189 : vector<8x24xf32> to vector<2x2x2x24xf32>
    %191 = vector.shape_cast %190 : vector<2x2x2x24xf32> to vector<2x2x1x2x24xf32>
    %cst_55 = arith.constant dense<0xFF800000> : vector<2x2x1x24xf32>
    %192 = vector.multi_reduction <maximumf>, %191, %cst_55 [3] : vector<2x2x1x2x24xf32> to vector<2x2x1x24xf32>
    %193 = vector.shape_cast %192 : vector<2x2x1x24xf32> to vector<2x1x2x1x24xf32>
    %cst_56 = arith.constant dense<0xFF800000> : vector<2x1x1x24xf32>
    %194 = vector.multi_reduction <maximumf>, %193, %cst_56 [2] : vector<2x1x2x1x24xf32> to vector<2x1x1x24xf32>
    %195 = vector.shape_cast %194 : vector<2x1x1x24xf32> to vector<2x24xf32>
    %c0_57 = arith.constant 0 : index
    %c0_58 = arith.constant 0 : index
    %196 = vector.load %arg16[%c0_57, %c0_58] : memref<24x18xf32, #tpu.memory_space<vmem>>, vector<24x18xf32>
    %cst_59 = arith.constant dense<0.000000e+00> : vector<2x18xf32>
    %197 = tpu.matmul %195, %196, %cst_59 {dimension_numbers = #tpu.dot_dimension_numbers<[1], [0], [0], [1], [0, 0, 1, 1], [], []>} : vector<2x24xf32>, vector<24x18xf32>, vector<2x18xf32> -> vector<2x18xf32>
    %c0_60 = arith.constant 0 : index
    %c0_61 = arith.constant 0 : index
    %198 = vector.load %arg17[%c0_60, %c0_61] : memref<1x18xf32, #tpu.memory_space<vmem>>, vector<1x18xf32>
    %199 = vector.broadcast %198 : vector<1x18xf32> to vector<2x18xf32>
    %200 = arith.addf %197, %199 : vector<2x18xf32>
    %cst_62 = arith.constant dense<0xFF800000> : vector<2xf32>
    %201 = vector.multi_reduction <maximumf>, %200, %cst_62 [1] : vector<2x18xf32> to vector<2xf32>
    %202 = vector.shape_cast %201 : vector<2xf32> to vector<2x1xf32>
    %203 = vector.broadcast %202 : vector<2x1xf32> to vector<2x18xf32>
    %204 = arith.subf %200, %203 : vector<2x18xf32>
    %205 = math.exp %204 : vector<2x18xf32>
    %cst_63 = arith.constant dense<0.000000e+00> : vector<2xf32>
    %206 = vector.multi_reduction <add>, %205, %cst_63 [1] : vector<2x18xf32> to vector<2xf32>
    %207 = vector.shape_cast %206 : vector<2xf32> to vector<2x1xf32>
    %208 = vector.broadcast %207 : vector<2x1xf32> to vector<2x18xf32>
    %209 = arith.divf %205, %208 : vector<2x18xf32>
    %c0_64 = arith.constant 0 : index
    %c0_65 = arith.constant 0 : index
    %210 = vector.load %arg18[%c0_64, %c0_65] : memref<2x18xf32, #tpu.memory_space<vmem>>, vector<2x18xf32>
    tpu.vector_store %arg18[%c0_64, %c0_65], %209 {strides = array<i32>} : memref<2x18xf32, #tpu.memory_space<vmem>>, vector<2x18xf32>,
    return
  }
  func.func @transform_0(%arg0: i32) -> (i32, i32, i32, i32) {
    %c0_i32 = arith.constant 0 : i32
    %c0_i32_0 = arith.constant 0 : i32
    %c0_i32_1 = arith.constant 0 : i32
    %c0_i32_2 = arith.constant 0 : i32
    return %arg0, %c0_i32, %c0_i32_0, %c0_i32_1 : i32, i32, i32, i32
  }
  func.func @transform_1(%arg0: i32) -> (i32, i32) {
    %c0_i32 = arith.constant 0 : i32
    %c0_i32_0 = arith.constant 0 : i32
    %c0_i32_1 = arith.constant 0 : i32
    return %c0_i32, %c0_i32_0 : i32, i32
  }
  func.func @transform_2(%arg0: i32) -> (i32, i32) {
    %c0_i32 = arith.constant 0 : i32
    %c0_i32_0 = arith.constant 0 : i32
    %c0_i32_1 = arith.constant 0 : i32
    return %c0_i32, %c0_i32_0 : i32, i32
  }
  func.func @transform_3(%arg0: i32) -> (i32, i32) {
    %c0_i32 = arith.constant 0 : i32
    %c0_i32_0 = arith.constant 0 : i32
    %c0_i32_1 = arith.constant 0 : i32
    return %c0_i32, %c0_i32_0 : i32, i32
  }
  func.func @transform_4(%arg0: i32) -> (i32, i32) {
    %c0_i32 = arith.constant 0 : i32
    %c0_i32_0 = arith.constant 0 : i32
    %c0_i32_1 = arith.constant 0 : i32
    return %c0_i32, %c0_i32_0 : i32, i32
  }
  func.func @transform_5(%arg0: i32) -> (i32, i32) {
    %c0_i32 = arith.constant 0 : i32
    %c0_i32_0 = arith.constant 0 : i32
    %c0_i32_1 = arith.constant 0 : i32
    return %c0_i32, %c0_i32_0 : i32, i32
  }
  func.func @transform_6(%arg0: i32) -> (i32, i32) {
    %c0_i32 = arith.constant 0 : i32
    %c0_i32_0 = arith.constant 0 : i32
    %c0_i32_1 = arith.constant 0 : i32
    return %c0_i32, %c0_i32_0 : i32, i32
  }
  func.func @transform_7(%arg0: i32) -> (i32, i32) {
    %c0_i32 = arith.constant 0 : i32
    %c0_i32_0 = arith.constant 0 : i32
    %c0_i32_1 = arith.constant 0 : i32
    return %c0_i32, %c0_i32_0 : i32, i32
  }
  func.func @transform_8(%arg0: i32) -> (i32, i32) {
    %c0_i32 = arith.constant 0 : i32
    %c0_i32_0 = arith.constant 0 : i32
    %c0_i32_1 = arith.constant 0 : i32
    return %c0_i32, %c0_i32_0 : i32, i32
  }
  func.func @transform_9(%arg0: i32) -> (i32, i32) {
    %c0_i32 = arith.constant 0 : i32
    %c0_i32_0 = arith.constant 0 : i32
    %c0_i32_1 = arith.constant 0 : i32
    return %c0_i32, %c0_i32_0 : i32, i32
  }
  func.func @transform_10(%arg0: i32) -> (i32, i32) {
    %c0_i32 = arith.constant 0 : i32
    %c0_i32_0 = arith.constant 0 : i32
    %c0_i32_1 = arith.constant 0 : i32
    return %c0_i32, %c0_i32_0 : i32, i32
  }
  func.func @transform_11(%arg0: i32) -> (i32, i32) {
    %c0_i32 = arith.constant 0 : i32
    %c0_i32_0 = arith.constant 0 : i32
    %c0_i32_1 = arith.constant 0 : i32
    return %c0_i32, %c0_i32_0 : i32, i32
  }
  func.func @transform_12(%arg0: i32) -> (i32, i32) {
    %c0_i32 = arith.constant 0 : i32
    %c0_i32_0 = arith.constant 0 : i32
    %c0_i32_1 = arith.constant 0 : i32
    return %c0_i32, %c0_i32_0 : i32, i32
  }
  func.func @transform_13(%arg0: i32) -> (i32, i32) {
    %c0_i32 = arith.constant 0 : i32
    %c0_i32_0 = arith.constant 0 : i32
    %c0_i32_1 = arith.constant 0 : i32
    return %c0_i32, %c0_i32_0 : i32, i32
  }
  func.func @transform_14(%arg0: i32) -> (i32, i32) {
    %c0_i32 = arith.constant 0 : i32
    %c0_i32_0 = arith.constant 0 : i32
    %c0_i32_1 = arith.constant 0 : i32
    return %c0_i32, %c0_i32_0 : i32, i32
  }
  func.func @transform_15(%arg0: i32) -> (i32, i32) {
    %c0_i32 = arith.constant 0 : i32
    %c0_i32_0 = arith.constant 0 : i32
    %c0_i32_1 = arith.constant 0 : i32
    return %c0_i32, %c0_i32_0 : i32, i32
  }
  func.func @transform_16(%arg0: i32) -> (i32, i32) {
    %c0_i32 = arith.constant 0 : i32
    %c0_i32_0 = arith.constant 0 : i32
    %c0_i32_1 = arith.constant 0 : i32
    return %c0_i32, %c0_i32_0 : i32, i32
  }
  func.func @transform_17(%arg0: i32) -> (i32, i32) {
    %c0_i32 = arith.constant 0 : i32
    %c0_i32_0 = arith.constant 0 : i32
    return %arg0, %c0_i32 : i32, i32
  }
}

</mosaic_0001>

<llo_original>
// kernel: tpu_custom_call.1
$region0: #{tpu_custom_call.1}
  #allocation0 [shape = 'u32[]', space=smem, size = 0x4, offset = 0x4, fixed_abs, tag = 'smem constant byte address 0x4 - core index']
  #allocation1 [shape = 'u32[144,128]{1,0:T(1,128)}', space=vmem, size = 0x12000, scoped, tag = 'internal scratch']
  %s0 = inlined_call_operand.vmem [shape: f32[2,8,8,3], index: 0, kind: input, shape index: {}]
  %s1 = inlined_call_operand.vmem [shape: f32[27,6], index: 1, kind: input, shape index: {}]
  %s2 = inlined_call_operand.vmem [shape: f32[1,6], index: 2, kind: input, shape index: {}]
  %s3 = inlined_call_operand.vmem [shape: f32[54,6], index: 3, kind: input, shape index: {}]
  %s4 = inlined_call_operand.vmem [shape: f32[1,6], index: 4, kind: input, shape index: {}]
  %s5 = inlined_call_operand.vmem [shape: f32[54,6], index: 5, kind: input, shape index: {}]
  %s6 = inlined_call_operand.vmem [shape: f32[1,6], index: 6, kind: input, shape index: {}]
  %s7 = inlined_call_operand.vmem [shape: f32[54,12], index: 7, kind: input, shape index: {}]
  %s8 = inlined_call_operand.vmem [shape: f32[1,12], index: 8, kind: input, shape index: {}]
  %s9 = inlined_call_operand.vmem [shape: f32[108,12], index: 9, kind: input, shape index: {}]
  %s10 = inlined_call_operand.vmem [shape: f32[1,12], index: 10, kind: input, shape index: {}]
  %s11 = inlined_call_operand.vmem [shape: f32[108,24], index: 11, kind: input, shape index: {}]
  %s12 = inlined_call_operand.vmem [shape: f32[1,24], index: 12, kind: input, shape index: {}]
  %s13 = inlined_call_operand.vmem [shape: f32[216,24], index: 13, kind: input, shape index: {}]
  %s14 = inlined_call_operand.vmem [shape: f32[1,24], index: 14, kind: input, shape index: {}]
  %s15 = inlined_call_operand.vmem [shape: f32[24,18], index: 15, kind: input, shape index: {}]
  %s16 = inlined_call_operand.vmem [shape: f32[1,18], index: 16, kind: input, shape index: {}]
  %s17 = inlined_call_operand.hbm [shape: f32[2,18], index: 17, kind: output, shape index: {}]
  %s18 = sld [smem:[#allocation0]]
  $region78: #{tpu_custom_call.1} parent=0
    _
  %s20 = ssub.s32 1, %s18
  %s21 = scalar_select 0, %s20, %s18
  $region1: #{tpu_custom_call.1} parent=0
    #allocation2 [shape = 'u8[1024]{0}', space=vmem, size = 0x400, scoped, tag = 'output window, operand 0, single buffered']
    #allocation3 [shape = 's32[1]{0}', space=sflag, size = 0x4, scoped, tag = 'scoped memory for tpu_custom_call.1']
    %22 = vsyncpa [#allocation3], 0
    // Predicated region
    $region2: #{tpu_custom_call.1} parent=1 // pred_check
      _
    $region3: #{tpu_custom_call.1} parent=1 // pred_check_branch
      %24 = sbr.rel (0) target = $region5
    $region4: #{tpu_custom_call.1} parent=1 // pred_region
      _
    $region5: #{tpu_custom_call.1} parent=1 // pred_fallthru
      _
    // Predicated region
    $region6: #{tpu_custom_call.1} parent=1 // pred_check
      _
    $region7: #{tpu_custom_call.1} parent=1 // pred_check_branch
      %26 = sbr.rel (0) target = $region9
    $region8: #{tpu_custom_call.1} parent=1 // pred_region
      _
    $region9: #{tpu_custom_call.1} parent=1 // pred_fallthru
      _
    // Predicated region
    $region10: #{tpu_custom_call.1} parent=1 // pred_check
      _
    $region11: #{tpu_custom_call.1} parent=1 // pred_check_branch
      %28 = sbr.rel (0) target = $region13
    $region12: #{tpu_custom_call.1} parent=1 // pred_region
      _
    $region13: #{tpu_custom_call.1} parent=1 // pred_fallthru
      _
    // Predicated region
    $region14: #{tpu_custom_call.1} parent=1 // pred_check
      _
    $region15: #{tpu_custom_call.1} parent=1 // pred_check_branch
      %30 = sbr.rel (0) target = $region17
    $region16: #{tpu_custom_call.1} parent=1 // pred_region
      _
    $region17: #{tpu_custom_call.1} parent=1 // pred_fallthru
      _
    // Predicated region
    $region18: #{tpu_custom_call.1} parent=1 // pred_check
      _
    $region19: #{tpu_custom_call.1} parent=1 // pred_check_branch
      %32 = sbr.rel (0) target = $region21
    $region20: #{tpu_custom_call.1} parent=1 // pred_region
      _
    $region21: #{tpu_custom_call.1} parent=1 // pred_fallthru
      _
    // Predicated region
    $region22: #{tpu_custom_call.1} parent=1 // pred_check
      _
    $region23: #{tpu_custom_call.1} parent=1 // pred_check_branch
      %34 = sbr.rel (0) target = $region25
    $region24: #{tpu_custom_call.1} parent=1 // pred_region
      _
    $region25: #{tpu_custom_call.1} parent=1 // pred_fallthru
      _
    // Predicated region
    $region26: #{tpu_custom_call.1} parent=1 // pred_check
      _
    $region27: #{tpu_custom_call.1} parent=1 // pred_check_branch
      %36 = sbr.rel (0) target = $region29
    $region28: #{tpu_custom_call.1} parent=1 // pred_region
      _
    $region29: #{tpu_custom_call.1} parent=1 // pred_fallthru
      _
    // Predicated region
    $region30: #{tpu_custom_call.1} parent=1 // pred_check
      _
    $region31: #{tpu_custom_call.1} parent=1 // pred_check_branch
      %38 = sbr.rel (0) target = $region33
    $region32: #{tpu_custom_call.1} parent=1 // pred_region
      _
    $region33: #{tpu_custom_call.1} parent=1 // pred_fallthru
      _
    // Predicated region
    $region34: #{tpu_custom_call.1} parent=1 // pred_check
      _
    $region35: #{tpu_custom_call.1} parent=1 // pred_check_branch
      %40 = sbr.rel (0) target = $region37
    $region36: #{tpu_custom_call.1} parent=1 // pred_region
      _
    $region37: #{tpu_custom_call.1} parent=1 // pred_fallthru
      _
    // Predicated region
    $region38: #{tpu_custom_call.1} parent=1 // pred_check
      _
    $region39: #{tpu_custom_call.1} parent=1 // pred_check_branch
      %42 = sbr.rel (0) target = $region41
    $region40: #{tpu_custom_call.1} parent=1 // pred_region
      _
    $region41: #{tpu_custom_call.1} parent=1 // pred_fallthru
      _
    // Predicated region
    $region42: #{tpu_custom_call.1} parent=1 // pred_check
      _
    $region43: #{tpu_custom_call.1} parent=1 // pred_check_branch
      %44 = sbr.rel (0) target = $region45
    $region44: #{tpu_custom_call.1} parent=1 // pred_region
      _
    $region45: #{tpu_custom_call.1} parent=1 // pred_fallthru
      _
    // Predicated region
    $region46: #{tpu_custom_call.1} parent=1 // pred_check
      _
    $region47: #{tpu_custom_call.1} parent=1 // pred_check_branch
      %46 = sbr.rel (0) target = $region49
    $region48: #{tpu_custom_call.1} parent=1 // pred_region
      _
    $region49: #{tpu_custom_call.1} parent=1 // pred_fallthru
      _
    // Predicated region
    $region50: #{tpu_custom_call.1} parent=1 // pred_check
      _
    $region51: #{tpu_custom_call.1} parent=1 // pred_check_branch
      %48 = sbr.rel (0) target = $region53
    $region52: #{tpu_custom_call.1} parent=1 // pred_region
      _
    $region53: #{tpu_custom_call.1} parent=1 // pred_fallthru
      _
    // Predicated region
    $region54: #{tpu_custom_call.1} parent=1 // pred_check
      _
    $region55: #{tpu_custom_call.1} parent=1 // pred_check_branch
      %50 = sbr.rel (0) target = $region57
    $region56: #{tpu_custom_call.1} parent=1 // pred_region
      _
    $region57: #{tpu_custom_call.1} parent=1 // pred_fallthru
      _
    // Predicated region
    $region58: #{tpu_custom_call.1} parent=1 // pred_check
      _
    $region59: #{tpu_custom_call.1} parent=1 // pred_check_branch
      %52 = sbr.rel (0) target = $region61
    $region60: #{tpu_custom_call.1} parent=1 // pred_region
      _
    $region61: #{tpu_custom_call.1} parent=1 // pred_fallthru
      _
    // Predicated region
    $region62: #{tpu_custom_call.1} parent=1 // pred_check
      _
    $region63: #{tpu_custom_call.1} parent=1 // pred_check_branch
      %54 = sbr.rel (0) target = $region65
    $region64: #{tpu_custom_call.1} parent=1 // pred_region
      _
    $region65: #{tpu_custom_call.1} parent=1 // pred_fallthru
      _
    // Predicated region
    $region66: #{tpu_custom_call.1} parent=1 // pred_check
      _
    $region67: #{tpu_custom_call.1} parent=1 // pred_check_branch
      %56 = sbr.rel (0) target = $region69
    $region68: #{tpu_custom_call.1} parent=1 // pred_region
      _
    $region69: #{tpu_custom_call.1} parent=1 // pred_fallthru
      _
    %v57 = vld [vmem:[%s0] sm:$0xff]
    %v58 = vld [vmem:[%s0 + $0x8] sm:$0xff]
    %v59 = vld [vmem:[%s0 + $0x10] sm:$0xff]
    %v60 = vld [vmem:[%s0 + $0x18] sm:$0xff]
    %v61 = vld [vmem:[%s0 + $0x20] sm:$0xff]
    %v62 = vld [vmem:[%s0 + $0x28] sm:$0xff]
    %v63 = vld [vmem:[%s0 + $0x30] sm:$0xff]
    %v64 = vld [vmem:[%s0 + $0x38] sm:$0xff]
    %v65 = vld [vmem:[%s0 + $0x40] sm:$0xff]
    %v66 = vld [vmem:[%s0 + $0x48] sm:$0xff]
    %v67 = vld [vmem:[%s0 + $0x50] sm:$0xff]
    %v68 = vld [vmem:[%s0 + $0x58] sm:$0xff]
    %v69 = vld [vmem:[%s0 + $0x60] sm:$0xff]
    %v70 = vld [vmem:[%s0 + $0x68] sm:$0xff]
    %v71 = vld [vmem:[%s0 + $0x70] sm:$0xff]
    %v72 = vld [vmem:[%s0 + $0x78] sm:$0xff]
    %v89 = vrot.slane %v57, 7
    %v90 = vrot.slane %v58, 7
    %v91 = vrot.slane %v59, 7
    %v92 = vrot.slane %v60, 7
    %v93 = vrot.slane %v61, 7
    %v94 = vrot.slane %v62, 7
    %v95 = vrot.slane %v63, 7
    %v96 = vrot.slane %v64, 7
    %v97 = vrot.slane %v65, 7
    %v98 = vrot.slane %v66, 7
    %v99 = vrot.slane %v67, 7
    %v100 = vrot.slane %v68, 7
    %v101 = vrot.slane %v69, 7
    %v102 = vrot.slane %v70, 7
    %v103 = vrot.slane %v71, 7
    %v104 = vrot.slane %v72, 7
    %vm121 = vcmask 1040384
    %v122 = vsel %vm121, %v89, %v89
    %v123 = vsel %vm121, %v90, %v90
    %v124 = vsel %vm121, %v91, %v91
    %v125 = vsel %vm121, %v92, %v92
    %v126 = vsel %vm121, %v93, %v93
    %v127 = vsel %vm121, %v94, %v94
    %v128 = vsel %vm121, %v95, %v95
    %v129 = vsel %vm121, %v96, %v96
    %v130 = vsel %vm121, %v97, %v97
    %v131 = vsel %vm121, %v98, %v98
    %v132 = vsel %vm121, %v99, %v99
    %v133 = vsel %vm121, %v100, %v100
    %v134 = vsel %vm121, %v101, %v101
    %v135 = vsel %vm121, %v102, %v102
    %v136 = vsel %vm121, %v103, %v103
    %v137 = vsel %vm121, %v104, %v104
    %v138 = vrot.slane %v57, 1
    %v139 = vrot.slane %v58, 1
    %v140 = vrot.slane %v59, 1
    %v141 = vrot.slane %v60, 1
    %v142 = vrot.slane %v61, 1
    %v143 = vrot.slane %v62, 1
    %v144 = vrot.slane %v63, 1
    %v145 = vrot.slane %v64, 1
    %v146 = vrot.slane %v65, 1
    %v147 = vrot.slane %v66, 1
    %v148 = vrot.slane %v67, 1
    %v149 = vrot.slane %v68, 1
    %v150 = vrot.slane %v69, 1
    %v151 = vrot.slane %v70, 1
    %v152 = vrot.slane %v71, 1
    %v153 = vrot.slane %v72, 1
    %vm170 = vcmask 1046528
    %v171 = vsel %vm170, %v138, %v138
    %v172 = vsel %vm170, %v139, %v139
    %v173 = vsel %vm170, %v140, %v140
    %v174 = vsel %vm170, %v141, %v141
    %v175 = vsel %vm170, %v142, %v142
    %v176 = vsel %vm170, %v143, %v143
    %v177 = vsel %vm170, %v144, %v144
    %v178 = vsel %vm170, %v145, %v145
    %v179 = vsel %vm170, %v146, %v146
    %v180 = vsel %vm170, %v147, %v147
    %v181 = vsel %vm170, %v148, %v148
    %v182 = vsel %vm170, %v149, %v149
    %v183 = vsel %vm170, %v150, %v150
    %v184 = vsel %vm170, %v151, %v151
    %v185 = vsel %vm170, %v152, %v152
    %v186 = vsel %vm170, %v153, %v153
    %187 = vrot.lane.b32.xlu0 %v57, 3
    %v188 = vpop.permute.xlu0 %187
    %189 = vrot.lane.b32.xlu0 %v58, 3
    %v190 = vpop.permute.xlu0 %189
    %191 = vrot.lane.b32.xlu0 %v59, 3
    %v192 = vpop.permute.xlu0 %191
    %193 = vrot.lane.b32.xlu0 %v60, 3
    %v194 = vpop.permute.xlu0 %193
    %195 = vrot.lane.b32.xlu0 %v61, 3
    %v196 = vpop.permute.xlu0 %195
    %197 = vrot.lane.b32.xlu0 %v62, 3
    %v198 = vpop.permute.xlu0 %197
    %199 = vrot.lane.b32.xlu0 %v63, 3
    %v200 = vpop.permute.xlu0 %199
    %201 = vrot.lane.b32.xlu0 %v64, 3
    %v202 = vpop.permute.xlu0 %201
    %203 = vrot.lane.b32.xlu0 %v65, 3
    %v204 = vpop.permute.xlu0 %203
    %205 = vrot.lane.b32.xlu0 %v66, 3
    %v206 = vpop.permute.xlu0 %205
    %207 = vrot.lane.b32.xlu0 %v67, 3
    %v208 = vpop.permute.xlu0 %207
    %209 = vrot.lane.b32.xlu0 %v68, 3
    %v210 = vpop.permute.xlu0 %209
    %211 = vrot.lane.b32.xlu0 %v69, 3
    %v212 = vpop.permute.xlu0 %211
    %213 = vrot.lane.b32.xlu0 %v70, 3
    %v214 = vpop.permute.xlu0 %213
    %215 = vrot.lane.b32.xlu0 %v71, 3
    %v216 = vpop.permute.xlu0 %215
    %217 = vrot.lane.b32.xlu0 %v72, 3
    %v218 = vpop.permute.xlu0 %217
    %251 = vrot.lane.b32.xlu0 %v171, 6
    %v252 = vpop.permute.xlu0 %251
    %253 = vrot.lane.b32.xlu0 %v172, 6
    %v254 = vpop.permute.xlu0 %253
    %255 = vrot.lane.b32.xlu0 %v173, 6
    %v256 = vpop.permute.xlu0 %255
    %257 = vrot.lane.b32.xlu0 %v174, 6
    %v258 = vpop.permute.xlu0 %257
    %259 = vrot.lane.b32.xlu0 %v175, 6
    %v260 = vpop.permute.xlu0 %259
    %261 = vrot.lane.b32.xlu0 %v176, 6
    %v262 = vpop.permute.xlu0 %261
    %263 = vrot.lane.b32.xlu0 %v177, 6
    %v264 = vpop.permute.xlu0 %263
    %265 = vrot.lane.b32.xlu0 %v178, 6
    %v266 = vpop.permute.xlu0 %265
    %267 = vrot.lane.b32.xlu0 %v179, 6
    %v268 = vpop.permute.xlu0 %267
    %269 = vrot.lane.b32.xlu0 %v180, 6
    %v270 = vpop.permute.xlu0 %269
    %271 = vrot.lane.b32.xlu0 %v181, 6
    %v272 = vpop.permute.xlu0 %271
    %273 = vrot.lane.b32.xlu0 %v182, 6
    %v274 = vpop.permute.xlu0 %273
    %275 = vrot.lane.b32.xlu0 %v183, 6
    %v276 = vpop.permute.xlu0 %275
    %277 = vrot.lane.b32.xlu0 %v184, 6
    %v278 = vpop.permute.xlu0 %277
    %279 = vrot.lane.b32.xlu0 %v185, 6
    %v280 = vpop.permute.xlu0 %279
    %281 = vrot.lane.b32.xlu0 %v186, 6
    %v282 = vpop.permute.xlu0 %281
    %vm299 = vcmask 23552
    %v300 = vsel %vm299, %v122, %v188
    %v301 = vsel %vm299, %v123, %v190
    %v302 = vsel %vm299, %v124, %v192
    %v303 = vsel %vm299, %v125, %v194
    %v304 = vsel %vm299, %v126, %v196
    %v305 = vsel %vm299, %v127, %v198
    %v306 = vsel %vm299, %v128, %v200
    %v307 = vsel %vm299, %v129, %v202
    %v308 = vsel %vm299, %v130, %v204
    %v309 = vsel %vm299, %v131, %v206
    %v310 = vsel %vm299, %v132, %v208
    %v311 = vsel %vm299, %v133, %v210
    %v312 = vsel %vm299, %v134, %v212
    %v313 = vsel %vm299, %v135, %v214
    %v314 = vsel %vm299, %v136, %v216
    %v315 = vsel %vm299, %v137, %v218
    %vm316 = vcmask 48128
    %v317 = vsel %vm316, %v300, %v252
    %v318 = vsel %vm316, %v301, %v254
    %v319 = vsel %vm316, %v302, %v256
    %v320 = vsel %vm316, %v303, %v258
    %v321 = vsel %vm316, %v304, %v260
    %v322 = vsel %vm316, %v305, %v262
    %v323 = vsel %vm316, %v306, %v264
    %v324 = vsel %vm316, %v307, %v266
    %v325 = vsel %vm316, %v308, %v268
    %v326 = vsel %vm316, %v309, %v270
    %v327 = vsel %vm316, %v310, %v272
    %v328 = vsel %vm316, %v311, %v274
    %v329 = vsel %vm316, %v312, %v276
    %v330 = vsel %vm316, %v313, %v278
    %v331 = vsel %vm316, %v314, %v280
    %v332 = vsel %vm316, %v315, %v282
    %349 = vrot.lane.b32.xlu0 %v317, 9
    %v350 = vpop.permute.xlu0 %349
    %351 = vrot.lane.b32.xlu0 %v318, 9
    %v352 = vpop.permute.xlu0 %351
    %353 = vrot.lane.b32.xlu0 %v319, 9
    %v354 = vpop.permute.xlu0 %353
    %355 = vrot.lane.b32.xlu0 %v320, 9
    %v356 = vpop.permute.xlu0 %355
    %357 = vrot.lane.b32.xlu0 %v321, 9
    %v358 = vpop.permute.xlu0 %357
    %359 = vrot.lane.b32.xlu0 %v322, 9
    %v360 = vpop.permute.xlu0 %359
    %361 = vrot.lane.b32.xlu0 %v323, 9
    %v362 = vpop.permute.xlu0 %361
    %363 = vrot.lane.b32.xlu0 %v324, 9
    %v364 = vpop.permute.xlu0 %363
    %365 = vrot.lane.b32.xlu0 %v325, 9
    %v366 = vpop.permute.xlu0 %365
    %367 = vrot.lane.b32.xlu0 %v326, 9
    %v368 = vpop.permute.xlu0 %367
    %369 = vrot.lane.b32.xlu0 %v327, 9
    %v370 = vpop.permute.xlu0 %369
    %371 = vrot.lane.b32.xlu0 %v328, 9
    %v372 = vpop.permute.xlu0 %371
    %373 = vrot.lane.b32.xlu0 %v329, 9
    %v374 = vpop.permute.xlu0 %373
    %375 = vrot.lane.b32.xlu0 %v330, 9
    %v376 = vpop.permute.xlu0 %375
    %377 = vrot.lane.b32.xlu0 %v331, 9
    %v378 = vpop.permute.xlu0 %377
    %379 = vrot.lane.b32.xlu0 %v332, 9
    %v380 = vpop.permute.xlu0 %379
    %397 = vrot.lane.b32.xlu0 %v318, 18
    %v398 = vpop.permute.xlu0 %397
    %399 = vrot.lane.b32.xlu0 %v319, 18
    %v400 = vpop.permute.xlu0 %399
    %401 = vrot.lane.b32.xlu0 %v320, 18
    %v402 = vpop.permute.xlu0 %401
    %403 = vrot.lane.b32.xlu0 %v321, 18
    %v404 = vpop.permute.xlu0 %403
    %405 = vrot.lane.b32.xlu0 %v322, 18
    %v406 = vpop.permute.xlu0 %405
    %407 = vrot.lane.b32.xlu0 %v323, 18
    %v408 = vpop.permute.xlu0 %407
    %409 = vrot.lane.b32.xlu0 %v324, 18
    %v410 = vpop.permute.xlu0 %409
    %411 = vrot.lane.b32.xlu0 %v317, 18
    %v412 = vpop.permute.xlu0 %411
    %413 = vrot.lane.b32.xlu0 %v326, 18
    %v414 = vpop.permute.xlu0 %413
    %415 = vrot.lane.b32.xlu0 %v327, 18
    %v416 = vpop.permute.xlu0 %415
    %417 = vrot.lane.b32.xlu0 %v328, 18
    %v418 = vpop.permute.xlu0 %417
    %419 = vrot.lane.b32.xlu0 %v329, 18
    %v420 = vpop.permute.xlu0 %419
    %421 = vrot.lane.b32.xlu0 %v330, 18
    %v422 = vpop.permute.xlu0 %421
    %423 = vrot.lane.b32.xlu0 %v331, 18
    %v424 = vpop.permute.xlu0 %423
    %425 = vrot.lane.b32.xlu0 %v332, 18
    %v426 = vpop.permute.xlu0 %425
    %427 = vrot.lane.b32.xlu0 %v325, 18
    %v428 = vpop.permute.xlu0 %427
    %vm445 = vcmask 72704
    %v446 = vsel %vm445, %v324, %v350
    %v447 = vsel %vm445, %v317, %v352
    %v448 = vsel %vm445, %v318, %v354
    %v449 = vsel %vm445, %v319, %v356
    %v450 = vsel %vm445, %v320, %v358
    %v451 = vsel %vm445, %v321, %v360
    %v452 = vsel %vm445, %v322, %v362
    %v453 = vsel %vm445, %v323, %v364
    %v454 = vsel %vm445, %v332, %v366
    %v455 = vsel %vm445, %v325, %v368
    %v456 = vsel %vm445, %v326, %v370
    %v457 = vsel %vm445, %v327, %v372
    %v458 = vsel %vm445, %v328, %v374
    %v459 = vsel %vm445, %v329, %v376
    %v460 = vsel %vm445, %v330, %v378
    %v461 = vsel %vm445, %v331, %v380
    %vm462 = vcmask 146432
    %v463 = vsel %vm462, %v446, %v398
    %v464 = vsel %vm462, %v447, %v400
    %v465 = vsel %vm462, %v448, %v402
    %v466 = vsel %vm462, %v449, %v404
    %v467 = vsel %vm462, %v450, %v406
    %v468 = vsel %vm462, %v451, %v408
    %v469 = vsel %vm462, %v452, %v410
    %v470 = vsel %vm462, %v453, %v412
    %v471 = vsel %vm462, %v454, %v414
    %v472 = vsel %vm462, %v455, %v416
    %v473 = vsel %vm462, %v456, %v418
    %v474 = vsel %vm462, %v457, %v420
    %v475 = vsel %vm462, %v458, %v422
    %v476 = vsel %vm462, %v459, %v424
    %v477 = vsel %vm462, %v460, %v426
    %v478 = vsel %vm462, %v461, %v428
    %v479 = vld [vmem:[%s1] sm:$0xff]
    %v480 = vld [vmem:[%s1 + $0x8] sm:$0xff]
    %v481 = vld [vmem:[%s1 + $0x10] sm:$0xff]
    %v482 = vld [vmem:[%s1 + $0x18] sm:$0x7]
    %v483 = vld [vmem:[%s2] sm:$0x1]
    %v485 = vlaneseq
    %v486 = vshrl.u32 %v485, 7
    %v487 = vsub.s32 0, %v486
    %v488 = vrot.slane %v483, %v487
    %vm490 = vcmask 220160
    %v492 = vsel %vm490, %v463, 0
    %v495 = vsel %vm490, %v464, 0
    %v498 = vsel %vm490, %v465, 0
    %v501 = vsel %vm490, %v466, 0
    %v504 = vsel %vm490, %v467, 0
    %v507 = vsel %vm490, %v468, 0
    %v510 = vsel %vm490, %v469, 0
    %v513 = vsel %vm490, %v470, 0
    %v516 = vsel %vm490, %v471, 0
    %v519 = vsel %vm490, %v472, 0
    %v522 = vsel %vm490, %v473, 0
    %v525 = vsel %vm490, %v474, 0
    %v528 = vsel %vm490, %v475, 0
    %v531 = vsel %vm490, %v476, 0
    %v534 = vsel %vm490, %v477, 0
    %v537 = vsel %vm490, %v478, 0
    %vm539 = vcmask 1042432
    %v541 = vsel %vm539, %v482, 0
    %543 = vmatprep.subr.mxu0 0.0
    %544 = vmatpush1.msra.mxu0 0.0
    %545 = vmatprep.subr.mxu0 0.0
    %546 = vmatpush1.msra.mxu0 0.0
    %547 = vmatprep.subr.mxu0 0.0
    %548 = vmatpush1.msra.mxu0 0.0
    %549 = vmatprep.subr.mxu0 0.0
    %550 = vmatpush1.msra.mxu0 0.0
    %551 = vmatprep.subr.mxu0 0.0
    %552 = vmatpush1.msra.mxu0 0.0
    %553 = vmatprep.subr.mxu0 0.0
    %554 = vmatpush1.msra.mxu0 0.0
    %555 = vmatprep.subr.mxu0 0.0
    %556 = vmatpush1.msra.mxu0 0.0
    %557 = vmatprep.subr.mxu0 0.0
    %558 = vmatpush1.msra.mxu0 0.0
    %559 = vmatprep.subr.mxu0 0.0
    %560 = vmatpush1.msra.mxu0 0.0
    %561 = vmatprep.subr.mxu0 0.0
    %562 = vmatpush1.msra.mxu0 0.0
    %563 = vmatprep.subr.mxu0 0.0
    %564 = vmatpush1.msra.mxu0 0.0
    %565 = vmatprep.subr.mxu0 0.0
    %566 = vmatpush1.msra.mxu0 0.0
    %567 = vmatprep.subr.mxu0 0.0
    %568 = vmatpush1.msra.mxu0 %v541
    %569 = vmatprep.subr.mxu0 0.0
    %570 = vmatpush1.msra.mxu0 %v481
    %571 = vmatprep.subr.mxu0 0.0
    %572 = vmatpush1.msra.mxu0 %v480
    %573 = vmatprep.subr.mxu0 0.0
    %574 = vmatpush1.msra.mxu0 %v479
    %575 = vmatprep.subr.mxu0 0.0
    %576 = vmatpush2.msra.mxu0 0.0
    %577 = vmatprep.subr.mxu0 0.0
    %578 = vmatpush2.msra.mxu0 0.0
    %579 = vmatprep.subr.mxu0 0.0
    %580 = vmatpush2.msra.mxu0 0.0
    %581 = vmatprep.subr.mxu0 0.0
    %582 = vmatpush2.msra.mxu0 0.0
    %583 = vmatprep.subr.mxu0 0.0
    %584 = vmatpush2.msra.mxu0 0.0
    %585 = vmatprep.subr.mxu0 0.0
    %586 = vmatpush2.msra.mxu0 0.0
    %587 = vmatprep.subr.mxu0 0.0
    %588 = vmatpush2.msra.mxu0 0.0
    %589 = vmatprep.subr.mxu0 0.0
    %590 = vmatpush2.msra.mxu0 0.0
    %591 = vmatprep.subr.mxu0 0.0
    %592 = vmatpush2.msra.mxu0 0.0
    %593 = vmatprep.subr.mxu0 0.0
    %594 = vmatpush2.msra.mxu0 0.0
    %595 = vmatprep.subr.mxu0 0.0
    %596 = vmatpush2.msra.mxu0 0.0
    %597 = vmatprep.subr.mxu0 0.0
    %598 = vmatpush2.msra.mxu0 0.0
    %599 = vmatprep.subr.mxu0 0.0
    %600 = vmatpush2.msra.mxu0 0.0
    %601 = vmatprep.subr.mxu0 0.0
    %602 = vmatpush2.msra.mxu0 0.0
    %603 = vmatprep.subr.mxu0 0.0
    %604 = vmatpush2.msra.mxu0 0.0
    %605 = vmatprep.subr.mxu0 0.0
    %606 = vmatpush2.msra.mxu0 0.0
    %607 = vmatprep.mubr.f32.mxu0 0.0
    %608 = vmatmul.mubr.f32.gmra.mxu0 %v492
    %v609 = vpop.f32.mrf.mxu0
    %v610 = vadd.f32 %v488, %v609
    %v611 = vpop.f32.mrf.mxu0
    %612 = vmatprep.mubr.f32.mxu0 0.0
    %613 = vmatmul.mubr.f32.gmra.mxu0 %v495
    %v614 = vpop.f32.mrf.mxu0
    %v615 = vadd.f32 %v488, %v614
    %v616 = vpop.f32.mrf.mxu0
    %617 = vmatprep.mubr.f32.mxu0 0.0
    %618 = vmatmul.mubr.f32.gmra.mxu0 %v498
    %v619 = vpop.f32.mrf.mxu0
    %v620 = vadd.f32 %v488, %v619
    %v621 = vpop.f32.mrf.mxu0
    %622 = vmatprep.mubr.f32.mxu0 0.0
    %623 = vmatmul.mubr.f32.gmra.mxu0 %v501
    %v624 = vpop.f32.mrf.mxu0
    %v625 = vadd.f32 %v488, %v624
    %v626 = vpop.f32.mrf.mxu0
    %627 = vmatprep.mubr.f32.mxu0 0.0
    %628 = vmatmul.mubr.f32.gmra.mxu0 %v504
    %v629 = vpop.f32.mrf.mxu0
    %v630 = vadd.f32 %v488, %v629
    %v631 = vpop.f32.mrf.mxu0
    %632 = vmatprep.mubr.f32.mxu0 0.0
    %633 = vmatmul.mubr.f32.gmra.mxu0 %v507
    %v634 = vpop.f32.mrf.mxu0
    %v635 = vadd.f32 %v488, %v634
    %v636 = vpop.f32.mrf.mxu0
    %637 = vmatprep.mubr.f32.mxu0 0.0
    %638 = vmatmul.mubr.f32.gmra.mxu0 %v510
    %v639 = vpop.f32.mrf.mxu0
    %v640 = vadd.f32 %v488, %v639
    %v641 = vpop.f32.mrf.mxu0
    %642 = vmatprep.mubr.f32.mxu0 0.0
    %643 = vmatmul.mubr.f32.gmra.mxu0 %v513
    %v644 = vpop.f32.mrf.mxu0
    %v645 = vadd.f32 %v488, %v644
    %v646 = vpop.f32.mrf.mxu0
    %647 = vmatprep.mubr.f32.mxu0 0.0
    %648 = vmatmul.mubr.f32.gmra.mxu0 %v516
    %v649 = vpop.f32.mrf.mxu0
    %v650 = vadd.f32 %v488, %v649
    %v651 = vpop.f32.mrf.mxu0
    %652 = vmatprep.mubr.f32.mxu0 0.0
    %653 = vmatmul.mubr.f32.gmra.mxu0 %v519
    %v654 = vpop.f32.mrf.mxu0
    %v655 = vadd.f32 %v488, %v654
    %v656 = vpop.f32.mrf.mxu0
    %657 = vmatprep.mubr.f32.mxu0 0.0
    %658 = vmatmul.mubr.f32.gmra.mxu0 %v522
    %v659 = vpop.f32.mrf.mxu0
    %v660 = vadd.f32 %v488, %v659
    %v661 = vpop.f32.mrf.mxu0
    %662 = vmatprep.mubr.f32.mxu0 0.0
    %663 = vmatmul.mubr.f32.gmra.mxu0 %v525
    %v664 = vpop.f32.mrf.mxu0
    %v665 = vadd.f32 %v488, %v664
    %v666 = vpop.f32.mrf.mxu0
    %667 = vmatprep.mubr.f32.mxu0 0.0
    %668 = vmatmul.mubr.f32.gmra.mxu0 %v528
    %v669 = vpop.f32.mrf.mxu0
    %v670 = vadd.f32 %v488, %v669
    %v671 = vpop.f32.mrf.mxu0
    %672 = vmatprep.mubr.f32.mxu0 0.0
    %673 = vmatmul.mubr.f32.gmra.mxu0 %v531
    %v674 = vpop.f32.mrf.mxu0
    %v675 = vadd.f32 %v488, %v674
    %v676 = vpop.f32.mrf.mxu0
    %677 = vmatprep.mubr.f32.mxu0 0.0
    %678 = vmatmul.mubr.f32.gmra.mxu0 %v534
    %v679 = vpop.f32.mrf.mxu0
    %v680 = vadd.f32 %v488, %v679
    %v681 = vpop.f32.mrf.mxu0
    %682 = vmatprep.mubr.f32.mxu0 0.0
    %683 = vmatmul.mubr.f32.gmra.mxu0 %v537
    %v684 = vpop.f32.mrf.mxu0
    %v685 = vadd.f32 %v488, %v684
    %v686 = vpop.f32.mrf.mxu0
    %687 = vdwg.mxu0
    %vm688 = vcmp.gt.f32.partialorder %v610, 0.0
    %vm689 = vcmp.gt.f32.partialorder %v615, 0.0
    %vm690 = vcmp.gt.f32.partialorder %v620, 0.0
    %vm691 = vcmp.gt.f32.partialorder %v625, 0.0
    %vm692 = vcmp.gt.f32.partialorder %v630, 0.0
    %vm693 = vcmp.gt.f32.partialorder %v635, 0.0
    %vm694 = vcmp.gt.f32.partialorder %v640, 0.0
    %vm695 = vcmp.gt.f32.partialorder %v645, 0.0
    %vm696 = vcmp.gt.f32.partialorder %v650, 0.0
    %vm697 = vcmp.gt.f32.partialorder %v655, 0.0
    %vm698 = vcmp.gt.f32.partialorder %v660, 0.0
    %vm699 = vcmp.gt.f32.partialorder %v665, 0.0
    %vm700 = vcmp.gt.f32.partialorder %v670, 0.0
    %vm701 = vcmp.gt.f32.partialorder %v675, 0.0
    %vm702 = vcmp.gt.f32.partialorder %v680, 0.0
    %vm703 = vcmp.gt.f32.partialorder %v685, 0.0
    %v704 = vmul.f32 %v610, 0.01
    %v705 = vmul.f32 %v615, 0.01
    %v706 = vmul.f32 %v620, 0.01
    %v707 = vmul.f32 %v625, 0.01
    %v708 = vmul.f32 %v630, 0.01
    %v709 = vmul.f32 %v635, 0.01
    %v710 = vmul.f32 %v640, 0.01
    %v711 = vmul.f32 %v645, 0.01
    %v712 = vmul.f32 %v650, 0.01
    %v713 = vmul.f32 %v655, 0.01
    %v714 = vmul.f32 %v660, 0.01
    %v715 = vmul.f32 %v665, 0.01
    %v716 = vmul.f32 %v670, 0.01
    %v717 = vmul.f32 %v675, 0.01
    %v718 = vmul.f32 %v680, 0.01
    %v719 = vmul.f32 %v685, 0.01
    %v720 = vsel %vm688, %v610, %v704
    %v721 = vsel %vm689, %v615, %v705
    %v722 = vsel %vm690, %v620, %v706
    %v723 = vsel %vm691, %v625, %v707
    %v724 = vsel %vm692, %v630, %v708
    %v725 = vsel %vm693, %v635, %v709
    %v726 = vsel %vm694, %v640, %v710
    %v727 = vsel %vm695, %v645, %v711
    %v728 = vsel %vm696, %v650, %v712
    %v729 = vsel %vm697, %v655, %v713
    %v730 = vsel %vm698, %v660, %v714
    %v731 = vsel %vm699, %v665, %v715
    %v732 = vsel %vm700, %v670, %v716
    %v733 = vsel %vm701, %v675, %v717
    %v734 = vsel %vm702, %v680, %v718
    %v735 = vsel %vm703, %v685, %v719
    %v752 = vrot.slane %v720, 7
    %v753 = vrot.slane %v721, 7
    %v754 = vrot.slane %v722, 7
    %v755 = vrot.slane %v723, 7
    %v756 = vrot.slane %v724, 7
    %v757 = vrot.slane %v725, 7
    %v758 = vrot.slane %v726, 7
    %v759 = vrot.slane %v727, 7
    %v760 = vrot.slane %v728, 7
    %v761 = vrot.slane %v729, 7
    %v762 = vrot.slane %v730, 7
    %v763 = vrot.slane %v731, 7
    %v764 = vrot.slane %v732, 7
    %v765 = vrot.slane %v733, 7
    %v766 = vrot.slane %v734, 7
    %v767 = vrot.slane %v735, 7
    %v784 = vsel %vm121, %v752, %v752
    %v785 = vsel %vm121, %v753, %v753
    %v786 = vsel %vm121, %v754, %v754
    %v787 = vsel %vm121, %v755, %v755
    %v788 = vsel %vm121, %v756, %v756
    %v789 = vsel %vm121, %v757, %v757
    %v790 = vsel %vm121, %v758, %v758
    %v791 = vsel %vm121, %v759, %v759
    %v792 = vsel %vm121, %v760, %v760
    %v793 = vsel %vm121, %v761, %v761
    %v794 = vsel %vm121, %v762, %v762
    %v795 = vsel %vm121, %v763, %v763
    %v796 = vsel %vm121, %v764, %v764
    %v797 = vsel %vm121, %v765, %v765
    %v798 = vsel %vm121, %v766, %v766
    %v799 = vsel %vm121, %v767, %v767
    %v800 = vrot.slane %v720, 1
    %v801 = vrot.slane %v721, 1
    %v802 = vrot.slane %v722, 1
    %v803 = vrot.slane %v723, 1
    %v804 = vrot.slane %v724, 1
    %v805 = vrot.slane %v725, 1
    %v806 = vrot.slane %v726, 1
    %v807 = vrot.slane %v727, 1
    %v808 = vrot.slane %v728, 1
    %v809 = vrot.slane %v729, 1
    %v810 = vrot.slane %v730, 1
    %v811 = vrot.slane %v731, 1
    %v812 = vrot.slane %v732, 1
    %v813 = vrot.slane %v733, 1
    %v814 = vrot.slane %v734, 1
    %v815 = vrot.slane %v735, 1
    %v832 = vsel %vm170, %v800, %v800
    %v833 = vsel %vm170, %v801, %v801
    %v834 = vsel %vm170, %v802, %v802
    %v835 = vsel %vm170, %v803, %v803
    %v836 = vsel %vm170, %v804, %v804
    %v837 = vsel %vm170, %v805, %v805
    %v838 = vsel %vm170, %v806, %v806
    %v839 = vsel %vm170, %v807, %v807
    %v840 = vsel %vm170, %v808, %v808
    %v841 = vsel %vm170, %v809, %v809
    %v842 = vsel %vm170, %v810, %v810
    %v843 = vsel %vm170, %v811, %v811
    %v844 = vsel %vm170, %v812, %v812
    %v845 = vsel %vm170, %v813, %v813
    %v846 = vsel %vm170, %v814, %v814
    %v847 = vsel %vm170, %v815, %v815
    %848 = vrot.lane.b32.xlu0 %v720, 6
    %v849 = vpop.permute.xlu0 %848
    %850 = vrot.lane.b32.xlu0 %v721, 6
    %v851 = vpop.permute.xlu0 %850
    %852 = vrot.lane.b32.xlu0 %v722, 6
    %v853 = vpop.permute.xlu0 %852
    %854 = vrot.lane.b32.xlu0 %v723, 6
    %v855 = vpop.permute.xlu0 %854
    %856 = vrot.lane.b32.xlu0 %v724, 6
    %v857 = vpop.permute.xlu0 %856
    %858 = vrot.lane.b32.xlu0 %v725, 6
    %v859 = vpop.permute.xlu0 %858
    %860 = vrot.lane.b32.xlu0 %v726, 6
    %v861 = vpop.permute.xlu0 %860
    %862 = vrot.lane.b32.xlu0 %v727, 6
    %v863 = vpop.permute.xlu0 %862
    %864 = vrot.lane.b32.xlu0 %v728, 6
    %v865 = vpop.permute.xlu0 %864
    %866 = vrot.lane.b32.xlu0 %v729, 6
    %v867 = vpop.permute.xlu0 %866
    %868 = vrot.lane.b32.xlu0 %v730, 6
    %v869 = vpop.permute.xlu0 %868
    %870 = vrot.lane.b32.xlu0 %v731, 6
    %v871 = vpop.permute.xlu0 %870
    %872 = vrot.lane.b32.xlu0 %v732, 6
    %v873 = vpop.permute.xlu0 %872
    %874 = vrot.lane.b32.xlu0 %v733, 6
    %v875 = vpop.permute.xlu0 %874
    %876 = vrot.lane.b32.xlu0 %v734, 6
    %v877 = vpop.permute.xlu0 %876
    %878 = vrot.lane.b32.xlu0 %v735, 6
    %v879 = vpop.permute.xlu0 %878
    %912 = vrot.lane.b32.xlu0 %v832, 12
    %v913 = vpop.permute.xlu0 %912
    %914 = vrot.lane.b32.xlu0 %v833, 12
    %v915 = vpop.permute.xlu0 %914
    %916 = vrot.lane.b32.xlu0 %v834, 12
    %v917 = vpop.permute.xlu0 %916
    %918 = vrot.lane.b32.xlu0 %v835, 12
    %v919 = vpop.permute.xlu0 %918
    %920 = vrot.lane.b32.xlu0 %v836, 12
    %v921 = vpop.permute.xlu0 %920
    %922 = vrot.lane.b32.xlu0 %v837, 12
    %v923 = vpop.permute.xlu0 %922
    %924 = vrot.lane.b32.xlu0 %v838, 12
    %v925 = vpop.permute.xlu0 %924
    %926 = vrot.lane.b32.xlu0 %v839, 12
    %v927 = vpop.permute.xlu0 %926
    %928 = vrot.lane.b32.xlu0 %v840, 12
    %v929 = vpop.permute.xlu0 %928
    %930 = vrot.lane.b32.xlu0 %v841, 12
    %v931 = vpop.permute.xlu0 %930
    %932 = vrot.lane.b32.xlu0 %v842, 12
    %v933 = vpop.permute.xlu0 %932
    %934 = vrot.lane.b32.xlu0 %v843, 12
    %v935 = vpop.permute.xlu0 %934
    %936 = vrot.lane.b32.xlu0 %v844, 12
    %v937 = vpop.permute.xlu0 %936
    %938 = vrot.lane.b32.xlu0 %v845, 12
    %v939 = vpop.permute.xlu0 %938
    %940 = vrot.lane.b32.xlu0 %v846, 12
    %v941 = vpop.permute.xlu0 %940
    %942 = vrot.lane.b32.xlu0 %v847, 12
    %v943 = vpop.permute.xlu0 %942
    %v960 = vsel %vm316, %v784, %v849
    %v961 = vsel %vm316, %v785, %v851
    %v962 = vsel %vm316, %v786, %v853
    %v963 = vsel %vm316, %v787, %v855
    %v964 = vsel %vm316, %v788, %v857
    %v965 = vsel %vm316, %v789, %v859
    %v966 = vsel %vm316, %v790, %v861
    %v967 = vsel %vm316, %v791, %v863
    %v968 = vsel %vm316, %v792, %v865
    %v969 = vsel %vm316, %v793, %v867
    %v970 = vsel %vm316, %v794, %v869
    %v971 = vsel %vm316, %v795, %v871
    %v972 = vsel %vm316, %v796, %v873
    %v973 = vsel %vm316, %v797, %v875
    %v974 = vsel %vm316, %v798, %v877
    %v975 = vsel %vm316, %v799, %v879
    %vm976 = vcmask 97280
    %v977 = vsel %vm976, %v960, %v913
    %v978 = vsel %vm976, %v961, %v915
    %v979 = vsel %vm976, %v962, %v917
    %v980 = vsel %vm976, %v963, %v919
    %v981 = vsel %vm976, %v964, %v921
    %v982 = vsel %vm976, %v965, %v923
    %v983 = vsel %vm976, %v966, %v925
    %v984 = vsel %vm976, %v967, %v927
    %v985 = vsel %vm976, %v968, %v929
    %v986 = vsel %vm976, %v969, %v931
    %v987 = vsel %vm976, %v970, %v933
    %v988 = vsel %vm976, %v971, %v935
    %v989 = vsel %vm976, %v972, %v937
    %v990 = vsel %vm976, %v973, %v939
    %v991 = vsel %vm976, %v974, %v941
    %v992 = vsel %vm976, %v975, %v943
    %1009 = vrot.lane.b32.xlu0 %v977, 18
    %v1010 = vpop.permute.xlu0 %1009
    %1011 = vrot.lane.b32.xlu0 %v978, 18
    %v1012 = vpop.permute.xlu0 %1011
    %1013 = vrot.lane.b32.xlu0 %v979, 18
    %v1014 = vpop.permute.xlu0 %1013
    %1015 = vrot.lane.b32.xlu0 %v980, 18
    %v1016 = vpop.permute.xlu0 %1015
    %1017 = vrot.lane.b32.xlu0 %v981, 18
    %v1018 = vpop.permute.xlu0 %1017
    %1019 = vrot.lane.b32.xlu0 %v982, 18
    %v1020 = vpop.permute.xlu0 %1019
    %1021 = vrot.lane.b32.xlu0 %v983, 18
    %v1022 = vpop.permute.xlu0 %1021
    %1023 = vrot.lane.b32.xlu0 %v984, 18
    %v1024 = vpop.permute.xlu0 %1023
    %1025 = vrot.lane.b32.xlu0 %v985, 18
    %v1026 = vpop.permute.xlu0 %1025
    %1027 = vrot.lane.b32.xlu0 %v986, 18
    %v1028 = vpop.permute.xlu0 %1027
    %1029 = vrot.lane.b32.xlu0 %v987, 18
    %v1030 = vpop.permute.xlu0 %1029
    %1031 = vrot.lane.b32.xlu0 %v988, 18
    %v1032 = vpop.permute.xlu0 %1031
    %1033 = vrot.lane.b32.xlu0 %v989, 18
    %v1034 = vpop.permute.xlu0 %1033
    %1035 = vrot.lane.b32.xlu0 %v990, 18
    %v1036 = vpop.permute.xlu0 %1035
    %1037 = vrot.lane.b32.xlu0 %v991, 18
    %v1038 = vpop.permute.xlu0 %1037
    %1039 = vrot.lane.b32.xlu0 %v992, 18
    %v1040 = vpop.permute.xlu0 %1039
    %1057 = vrot.lane.b32.xlu0 %v978, 36
    %v1058 = vpop.permute.xlu0 %1057
    %1059 = vrot.lane.b32.xlu0 %v979, 36
    %v1060 = vpop.permute.xlu0 %1059
    %1061 = vrot.lane.b32.xlu0 %v980, 36
    %v1062 = vpop.permute.xlu0 %1061
    %1063 = vrot.lane.b32.xlu0 %v981, 36
    %v1064 = vpop.permute.xlu0 %1063
    %1065 = vrot.lane.b32.xlu0 %v982, 36
    %v1066 = vpop.permute.xlu0 %1065
    %1067 = vrot.lane.b32.xlu0 %v983, 36
    %v1068 = vpop.permute.xlu0 %1067
    %1069 = vrot.lane.b32.xlu0 %v984, 36
    %v1070 = vpop.permute.xlu0 %1069
    %1071 = vrot.lane.b32.xlu0 %v977, 36
    %v1072 = vpop.permute.xlu0 %1071
    %1073 = vrot.lane.b32.xlu0 %v986, 36
    %v1074 = vpop.permute.xlu0 %1073
    %1075 = vrot.lane.b32.xlu0 %v987, 36
    %v1076 = vpop.permute.xlu0 %1075
    %1077 = vrot.lane.b32.xlu0 %v988, 36
    %v1078 = vpop.permute.xlu0 %1077
    %1079 = vrot.lane.b32.xlu0 %v989, 36
    %v1080 = vpop.permute.xlu0 %1079
    %1081 = vrot.lane.b32.xlu0 %v990, 36
    %v1082 = vpop.permute.xlu0 %1081
    %1083 = vrot.lane.b32.xlu0 %v991, 36
    %v1084 = vpop.permute.xlu0 %1083
    %1085 = vrot.lane.b32.xlu0 %v992, 36
    %v1086 = vpop.permute.xlu0 %1085
    %1087 = vrot.lane.b32.xlu0 %v985, 36
    %v1088 = vpop.permute.xlu0 %1087
    %v1105 = vsel %vm462, %v984, %v1010
    %v1106 = vsel %vm462, %v977, %v1012
    %v1107 = vsel %vm462, %v978, %v1014
    %v1108 = vsel %vm462, %v979, %v1016
    %v1109 = vsel %vm462, %v980, %v1018
    %v1110 = vsel %vm462, %v981, %v1020
    %v1111 = vsel %vm462, %v982, %v1022
    %v1112 = vsel %vm462, %v983, %v1024
    %v1113 = vsel %vm462, %v992, %v1026
    %v1114 = vsel %vm462, %v985, %v1028
    %v1115 = vsel %vm462, %v986, %v1030
    %v1116 = vsel %vm462, %v987, %v1032
    %v1117 = vsel %vm462, %v988, %v1034
    %v1118 = vsel %vm462, %v989, %v1036
    %v1119 = vsel %vm462, %v990, %v1038
    %v1120 = vsel %vm462, %v991, %v1040
    %vm1121 = vcmask 293888
    %v1122 = vsel %vm1121, %v1105, %v1058
    %v1123 = vsel %vm1121, %v1106, %v1060
    %v1124 = vsel %vm1121, %v1107, %v1062
    %v1125 = vsel %vm1121, %v1108, %v1064
    %v1126 = vsel %vm1121, %v1109, %v1066
    %v1127 = vsel %vm1121, %v1110, %v1068
    %v1128 = vsel %vm1121, %v1111, %v1070
    %v1129 = vsel %vm1121, %v1112, %v1072
    %v1130 = vsel %vm1121, %v1113, %v1074
    %v1131 = vsel %vm1121, %v1114, %v1076
    %v1132 = vsel %vm1121, %v1115, %v1078
    %v1133 = vsel %vm1121, %v1116, %v1080
    %v1134 = vsel %vm1121, %v1117, %v1082
    %v1135 = vsel %vm1121, %v1118, %v1084
    %v1136 = vsel %vm1121, %v1119, %v1086
    %v1137 = vsel %vm1121, %v1120, %v1088
    %v1138 = vld [vmem:[%s3] sm:$0xff]
    %v1139 = vld [vmem:[%s3 + $0x8] sm:$0xff]
    %v1140 = vld [vmem:[%s3 + $0x10] sm:$0xff]
    %v1141 = vld [vmem:[%s3 + $0x18] sm:$0xff]
    %v1142 = vld [vmem:[%s3 + $0x20] sm:$0xff]
    %v1143 = vld [vmem:[%s3 + $0x28] sm:$0xff]
    %v1144 = vld [vmem:[%s3 + $0x30] sm:$0x3f]
    %v1145 = vld [vmem:[%s4] sm:$0x1]
    %v1147 = vlaneseq
    %v1148 = vshrl.u32 %v1147, 7
    %v1149 = vsub.s32 0, %v1148
    %v1150 = vrot.slane %v1145, %v1149
    %vm1152 = vcmask 441344
    %v1154 = vsel %vm1152, %v1122, 0
    %v1157 = vsel %vm1152, %v1123, 0
    %v1160 = vsel %vm1152, %v1124, 0
    %v1163 = vsel %vm1152, %v1125, 0
    %v1166 = vsel %vm1152, %v1126, 0
    %v1169 = vsel %vm1152, %v1127, 0
    %v1172 = vsel %vm1152, %v1128, 0
    %v1175 = vsel %vm1152, %v1129, 0
    %v1178 = vsel %vm1152, %v1130, 0
    %v1181 = vsel %vm1152, %v1131, 0
    %v1184 = vsel %vm1152, %v1132, 0
    %v1187 = vsel %vm1152, %v1133, 0
    %v1190 = vsel %vm1152, %v1134, 0
    %v1193 = vsel %vm1152, %v1135, 0
    %v1196 = vsel %vm1152, %v1136, 0
    %v1199 = vsel %vm1152, %v1137, 0
    %vm1201 = vcmask 1045504
    %v1203 = vsel %vm1201, %v1144, 0
    %1205 = vmatprep.subr.mxu0 0.0
    %1206 = vmatpush1.msra.mxu0 0.0
    %1207 = vmatprep.subr.mxu0 0.0
    %1208 = vmatpush1.msra.mxu0 0.0
    %1209 = vmatprep.subr.mxu0 0.0
    %1210 = vmatpush1.msra.mxu0 0.0
    %1211 = vmatprep.subr.mxu0 0.0
    %1212 = vmatpush1.msra.mxu0 0.0
    %1213 = vmatprep.subr.mxu0 0.0
    %1214 = vmatpush1.msra.mxu0 0.0
    %1215 = vmatprep.subr.mxu0 0.0
    %1216 = vmatpush1.msra.mxu0 0.0
    %1217 = vmatprep.subr.mxu0 0.0
    %1218 = vmatpush1.msra.mxu0 0.0
    %1219 = vmatprep.subr.mxu0 0.0
    %1220 = vmatpush1.msra.mxu0 0.0
    %1221 = vmatprep.subr.mxu0 0.0
    %1222 = vmatpush1.msra.mxu0 0.0
    %1223 = vmatprep.subr.mxu0 0.0
    %1224 = vmatpush1.msra.mxu0 %v1203
    %1225 = vmatprep.subr.mxu0 0.0
    %1226 = vmatpush1.msra.mxu0 %v1143
    %1227 = vmatprep.subr.mxu0 0.0
    %1228 = vmatpush1.msra.mxu0 %v1142
    %1229 = vmatprep.subr.mxu0 0.0
    %1230 = vmatpush1.msra.mxu0 %v1141
    %1231 = vmatprep.subr.mxu0 0.0
    %1232 = vmatpush1.msra.mxu0 %v1140
    %1233 = vmatprep.subr.mxu0 0.0
    %1234 = vmatpush1.msra.mxu0 %v1139
    %1235 = vmatprep.subr.mxu0 0.0
    %1236 = vmatpush1.msra.mxu0 %v1138
    %1237 = vmatprep.subr.mxu0 0.0
    %1238 = vmatpush2.msra.mxu0 0.0
    %1239 = vmatprep.subr.mxu0 0.0
    %1240 = vmatpush2.msra.mxu0 0.0
    %1241 = vmatprep.subr.mxu0 0.0
    %1242 = vmatpush2.msra.mxu0 0.0
    %1243 = vmatprep.subr.mxu0 0.0
    %1244 = vmatpush2.msra.mxu0 0.0
    %1245 = vmatprep.subr.mxu0 0.0
    %1246 = vmatpush2.msra.mxu0 0.0
    %1247 = vmatprep.subr.mxu0 0.0
    %1248 = vmatpush2.msra.mxu0 0.0
    %1249 = vmatprep.subr.mxu0 0.0
    %1250 = vmatpush2.msra.mxu0 0.0
    %1251 = vmatprep.subr.mxu0 0.0
    %1252 = vmatpush2.msra.mxu0 0.0
    %1253 = vmatprep.subr.mxu0 0.0
    %1254 = vmatpush2.msra.mxu0 0.0
    %1255 = vmatprep.subr.mxu0 0.0
    %1256 = vmatpush2.msra.mxu0 0.0
    %1257 = vmatprep.subr.mxu0 0.0
    %1258 = vmatpush2.msra.mxu0 0.0
    %1259 = vmatprep.subr.mxu0 0.0
    %1260 = vmatpush2.msra.mxu0 0.0
    %1261 = vmatprep.subr.mxu0 0.0
    %1262 = vmatpush2.msra.mxu0 0.0
    %1263 = vmatprep.subr.mxu0 0.0
    %1264 = vmatpush2.msra.mxu0 0.0
    %1265 = vmatprep.subr.mxu0 0.0
    %1266 = vmatpush2.msra.mxu0 0.0
    %1267 = vmatprep.subr.mxu0 0.0
    %1268 = vmatpush2.msra.mxu0 0.0
    %1269 = vmatprep.mubr.f32.mxu0 0.0
    %1270 = vmatmul.mubr.f32.gmra.mxu0 %v1154
    %v1271 = vpop.f32.mrf.mxu0
    %v1272 = vadd.f32 %v1150, %v1271
    %v1273 = vpop.f32.mrf.mxu0
    %1274 = vmatprep.mubr.f32.mxu0 0.0
    %1275 = vmatmul.mubr.f32.gmra.mxu0 %v1157
    %v1276 = vpop.f32.mrf.mxu0
    %v1277 = vadd.f32 %v1150, %v1276
    %v1278 = vpop.f32.mrf.mxu0
    %1279 = vmatprep.mubr.f32.mxu0 0.0
    %1280 = vmatmul.mubr.f32.gmra.mxu0 %v1160
    %v1281 = vpop.f32.mrf.mxu0
    %v1282 = vadd.f32 %v1150, %v1281
    %v1283 = vpop.f32.mrf.mxu0
    %1284 = vmatprep.mubr.f32.mxu0 0.0
    %1285 = vmatmul.mubr.f32.gmra.mxu0 %v1163
    %v1286 = vpop.f32.mrf.mxu0
    %v1287 = vadd.f32 %v1150, %v1286
    %v1288 = vpop.f32.mrf.mxu0
    %1289 = vmatprep.mubr.f32.mxu0 0.0
    %1290 = vmatmul.mubr.f32.gmra.mxu0 %v1166
    %v1291 = vpop.f32.mrf.mxu0
    %v1292 = vadd.f32 %v1150, %v1291
    %v1293 = vpop.f32.mrf.mxu0
    %1294 = vmatprep.mubr.f32.mxu0 0.0
    %1295 = vmatmul.mubr.f32.gmra.mxu0 %v1169
    %v1296 = vpop.f32.mrf.mxu0
    %v1297 = vadd.f32 %v1150, %v1296
    %v1298 = vpop.f32.mrf.mxu0
    %1299 = vmatprep.mubr.f32.mxu0 0.0
    %1300 = vmatmul.mubr.f32.gmra.mxu0 %v1172
    %v1301 = vpop.f32.mrf.mxu0
    %v1302 = vadd.f32 %v1150, %v1301
    %v1303 = vpop.f32.mrf.mxu0
    %1304 = vmatprep.mubr.f32.mxu0 0.0
    %1305 = vmatmul.mubr.f32.gmra.mxu0 %v1175
    %v1306 = vpop.f32.mrf.mxu0
    %v1307 = vadd.f32 %v1150, %v1306
    %v1308 = vpop.f32.mrf.mxu0
    %1309 = vmatprep.mubr.f32.mxu0 0.0
    %1310 = vmatmul.mubr.f32.gmra.mxu0 %v1178
    %v1311 = vpop.f32.mrf.mxu0
    %v1312 = vadd.f32 %v1150, %v1311
    %v1313 = vpop.f32.mrf.mxu0
    %1314 = vmatprep.mubr.f32.mxu0 0.0
    %1315 = vmatmul.mubr.f32.gmra.mxu0 %v1181
    %v1316 = vpop.f32.mrf.mxu0
    %v1317 = vadd.f32 %v1150, %v1316
    %v1318 = vpop.f32.mrf.mxu0
    %1319 = vmatprep.mubr.f32.mxu0 0.0
    %1320 = vmatmul.mubr.f32.gmra.mxu0 %v1184
    %v1321 = vpop.f32.mrf.mxu0
    %v1322 = vadd.f32 %v1150, %v1321
    %v1323 = vpop.f32.mrf.mxu0
    %1324 = vmatprep.mubr.f32.mxu0 0.0
    %1325 = vmatmul.mubr.f32.gmra.mxu0 %v1187
    %v1326 = vpop.f32.mrf.mxu0
    %v1327 = vadd.f32 %v1150, %v1326
    %v1328 = vpop.f32.mrf.mxu0
    %1329 = vmatprep.mubr.f32.mxu0 0.0
    %1330 = vmatmul.mubr.f32.gmra.mxu0 %v1190
    %v1331 = vpop.f32.mrf.mxu0
    %v1332 = vadd.f32 %v1150, %v1331
    %v1333 = vpop.f32.mrf.mxu0
    %1334 = vmatprep.mubr.f32.mxu0 0.0
    %1335 = vmatmul.mubr.f32.gmra.mxu0 %v1193
    %v1336 = vpop.f32.mrf.mxu0
    %v1337 = vadd.f32 %v1150, %v1336
    %v1338 = vpop.f32.mrf.mxu0
    %1339 = vmatprep.mubr.f32.mxu0 0.0
    %1340 = vmatmul.mubr.f32.gmra.mxu0 %v1196
    %v1341 = vpop.f32.mrf.mxu0
    %v1342 = vadd.f32 %v1150, %v1341
    %v1343 = vpop.f32.mrf.mxu0
    %1344 = vmatprep.mubr.f32.mxu0 0.0
    %1345 = vmatmul.mubr.f32.gmra.mxu0 %v1199
    %v1346 = vpop.f32.mrf.mxu0
    %v1347 = vadd.f32 %v1150, %v1346
    %v1348 = vpop.f32.mrf.mxu0
    %1349 = vdwg.mxu0
    %vm1350 = vcmp.gt.f32.partialorder %v1272, 0.0
    %vm1351 = vcmp.gt.f32.partialorder %v1277, 0.0
    %vm1352 = vcmp.gt.f32.partialorder %v1282, 0.0
    %vm1353 = vcmp.gt.f32.partialorder %v1287, 0.0
    %vm1354 = vcmp.gt.f32.partialorder %v1292, 0.0
    %vm1355 = vcmp.gt.f32.partialorder %v1297, 0.0
    %vm1356 = vcmp.gt.f32.partialorder %v1302, 0.0
    %vm1357 = vcmp.gt.f32.partialorder %v1307, 0.0
    %vm1358 = vcmp.gt.f32.partialorder %v1312, 0.0
    %vm1359 = vcmp.gt.f32.partialorder %v1317, 0.0
    %vm1360 = vcmp.gt.f32.partialorder %v1322, 0.0
    %vm1361 = vcmp.gt.f32.partialorder %v1327, 0.0
    %vm1362 = vcmp.gt.f32.partialorder %v1332, 0.0
    %vm1363 = vcmp.gt.f32.partialorder %v1337, 0.0
    %vm1364 = vcmp.gt.f32.partialorder %v1342, 0.0
    %vm1365 = vcmp.gt.f32.partialorder %v1347, 0.0
    %v1366 = vmul.f32 %v1272, 0.01
    %v1367 = vmul.f32 %v1277, 0.01
    %v1368 = vmul.f32 %v1282, 0.01
    %v1369 = vmul.f32 %v1287, 0.01
    %v1370 = vmul.f32 %v1292, 0.01
    %v1371 = vmul.f32 %v1297, 0.01
    %v1372 = vmul.f32 %v1302, 0.01
    %v1373 = vmul.f32 %v1307, 0.01
    %v1374 = vmul.f32 %v1312, 0.01
    %v1375 = vmul.f32 %v1317, 0.01
    %v1376 = vmul.f32 %v1322, 0.01
    %v1377 = vmul.f32 %v1327, 0.01
    %v1378 = vmul.f32 %v1332, 0.01
    %v1379 = vmul.f32 %v1337, 0.01
    %v1380 = vmul.f32 %v1342, 0.01
    %v1381 = vmul.f32 %v1347, 0.01
    %v1382 = vsel %vm1350, %v1272, %v1366
    %v1383 = vsel %vm1351, %v1277, %v1367
    %v1384 = vsel %vm1352, %v1282, %v1368
    %v1385 = vsel %vm1353, %v1287, %v1369
    %v1386 = vsel %vm1354, %v1292, %v1370
    %v1387 = vsel %vm1355, %v1297, %v1371
    %v1388 = vsel %vm1356, %v1302, %v1372
    %v1389 = vsel %vm1357, %v1307, %v1373
    %v1390 = vsel %vm1358, %v1312, %v1374
    %v1391 = vsel %vm1359, %v1317, %v1375
    %v1392 = vsel %vm1360, %v1322, %v1376
    %v1393 = vsel %vm1361, %v1327, %v1377
    %v1394 = vsel %vm1362, %v1332, %v1378
    %v1395 = vsel %vm1363, %v1337, %v1379
    %v1396 = vsel %vm1364, %v1342, %v1380
    %v1397 = vsel %vm1365, %v1347, %v1381
    %v1414 = vrot.slane %v1382, 7
    %v1415 = vrot.slane %v1383, 7
    %v1416 = vrot.slane %v1384, 7
    %v1417 = vrot.slane %v1385, 7
    %v1418 = vrot.slane %v1386, 7
    %v1419 = vrot.slane %v1387, 7
    %v1420 = vrot.slane %v1388, 7
    %v1421 = vrot.slane %v1389, 7
    %v1422 = vrot.slane %v1390, 7
    %v1423 = vrot.slane %v1391, 7
    %v1424 = vrot.slane %v1392, 7
    %v1425 = vrot.slane %v1393, 7
    %v1426 = vrot.slane %v1394, 7
    %v1427 = vrot.slane %v1395, 7
    %v1428 = vrot.slane %v1396, 7
    %v1429 = vrot.slane %v1397, 7
    %v1446 = vsel %vm121, %v1414, %v1414
    %v1447 = vsel %vm121, %v1415, %v1415
    %v1448 = vsel %vm121, %v1416, %v1416
    %v1449 = vsel %vm121, %v1417, %v1417
    %v1450 = vsel %vm121, %v1418, %v1418
    %v1451 = vsel %vm121, %v1419, %v1419
    %v1452 = vsel %vm121, %v1420, %v1420
    %v1453 = vsel %vm121, %v1421, %v1421
    %v1454 = vsel %vm121, %v1422, %v1422
    %v1455 = vsel %vm121, %v1423, %v1423
    %v1456 = vsel %vm121, %v1424, %v1424
    %v1457 = vsel %vm121, %v1425, %v1425
    %v1458 = vsel %vm121, %v1426, %v1426
    %v1459 = vsel %vm121, %v1427, %v1427
    %v1460 = vsel %vm121, %v1428, %v1428
    %v1461 = vsel %vm121, %v1429, %v1429
    %v1462 = vrot.slane %v1382, 1
    %v1463 = vrot.slane %v1383, 1
    %v1464 = vrot.slane %v1384, 1
    %v1465 = vrot.slane %v1385, 1
    %v1466 = vrot.slane %v1386, 1
    %v1467 = vrot.slane %v1387, 1
    %v1468 = vrot.slane %v1388, 1
    %v1469 = vrot.slane %v1389, 1
    %v1470 = vrot.slane %v1390, 1
    %v1471 = vrot.slane %v1391, 1
    %v1472 = vrot.slane %v1392, 1
    %v1473 = vrot.slane %v1393, 1
    %v1474 = vrot.slane %v1394, 1
    %v1475 = vrot.slane %v1395, 1
    %v1476 = vrot.slane %v1396, 1
    %v1477 = vrot.slane %v1397, 1
    %v1494 = vsel %vm170, %v1462, %v1462
    %v1495 = vsel %vm170, %v1463, %v1463
    %v1496 = vsel %vm170, %v1464, %v1464
    %v1497 = vsel %vm170, %v1465, %v1465
    %v1498 = vsel %vm170, %v1466, %v1466
    %v1499 = vsel %vm170, %v1467, %v1467
    %v1500 = vsel %vm170, %v1468, %v1468
    %v1501 = vsel %vm170, %v1469, %v1469
    %v1502 = vsel %vm170, %v1470, %v1470
    %v1503 = vsel %vm170, %v1471, %v1471
    %v1504 = vsel %vm170, %v1472, %v1472
    %v1505 = vsel %vm170, %v1473, %v1473
    %v1506 = vsel %vm170, %v1474, %v1474
    %v1507 = vsel %vm170, %v1475, %v1475
    %v1508 = vsel %vm170, %v1476, %v1476
    %v1509 = vsel %vm170, %v1477, %v1477
    %1510 = vrot.lane.b32.xlu0 %v1382, 6
    %v1511 = vpop.permute.xlu0 %1510
    %1512 = vrot.lane.b32.xlu0 %v1383, 6
    %v1513 = vpop.permute.xlu0 %1512
    %1514 = vrot.lane.b32.xlu0 %v1384, 6
    %v1515 = vpop.permute.xlu0 %1514
    %1516 = vrot.lane.b32.xlu0 %v1385, 6
    %v1517 = vpop.permute.xlu0 %1516
    %1518 = vrot.lane.b32.xlu0 %v1386, 6
    %v1519 = vpop.permute.xlu0 %1518
    %1520 = vrot.lane.b32.xlu0 %v1387, 6
    %v1521 = vpop.permute.xlu0 %1520
    %1522 = vrot.lane.b32.xlu0 %v1388, 6
    %v1523 = vpop.permute.xlu0 %1522
    %1524 = vrot.lane.b32.xlu0 %v1389, 6
    %v1525 = vpop.permute.xlu0 %1524
    %1526 = vrot.lane.b32.xlu0 %v1390, 6
    %v1527 = vpop.permute.xlu0 %1526
    %1528 = vrot.lane.b32.xlu0 %v1391, 6
    %v1529 = vpop.permute.xlu0 %1528
    %1530 = vrot.lane.b32.xlu0 %v1392, 6
    %v1531 = vpop.permute.xlu0 %1530
    %1532 = vrot.lane.b32.xlu0 %v1393, 6
    %v1533 = vpop.permute.xlu0 %1532
    %1534 = vrot.lane.b32.xlu0 %v1394, 6
    %v1535 = vpop.permute.xlu0 %1534
    %1536 = vrot.lane.b32.xlu0 %v1395, 6
    %v1537 = vpop.permute.xlu0 %1536
    %1538 = vrot.lane.b32.xlu0 %v1396, 6
    %v1539 = vpop.permute.xlu0 %1538
    %1540 = vrot.lane.b32.xlu0 %v1397, 6
    %v1541 = vpop.permute.xlu0 %1540
    %1574 = vrot.lane.b32.xlu0 %v1494, 12
    %v1575 = vpop.permute.xlu0 %1574
    %1576 = vrot.lane.b32.xlu0 %v1495, 12
    %v1577 = vpop.permute.xlu0 %1576
    %1578 = vrot.lane.b32.xlu0 %v1496, 12
    %v1579 = vpop.permute.xlu0 %1578
    %1580 = vrot.lane.b32.xlu0 %v1497, 12
    %v1581 = vpop.permute.xlu0 %1580
    %1582 = vrot.lane.b32.xlu0 %v1498, 12
    %v1583 = vpop.permute.xlu0 %1582
    %1584 = vrot.lane.b32.xlu0 %v1499, 12
    %v1585 = vpop.permute.xlu0 %1584
    %1586 = vrot.lane.b32.xlu0 %v1500, 12
    %v1587 = vpop.permute.xlu0 %1586
    %1588 = vrot.lane.b32.xlu0 %v1501, 12
    %v1589 = vpop.permute.xlu0 %1588
    %1590 = vrot.lane.b32.xlu0 %v1502, 12
    %v1591 = vpop.permute.xlu0 %1590
    %1592 = vrot.lane.b32.xlu0 %v1503, 12
    %v1593 = vpop.permute.xlu0 %1592
    %1594 = vrot.lane.b32.xlu0 %v1504, 12
    %v1595 = vpop.permute.xlu0 %1594
    %1596 = vrot.lane.b32.xlu0 %v1505, 12
    %v1597 = vpop.permute.xlu0 %1596
    %1598 = vrot.lane.b32.xlu0 %v1506, 12
    %v1599 = vpop.permute.xlu0 %1598
    %1600 = vrot.lane.b32.xlu0 %v1507, 12
    %v1601 = vpop.permute.xlu0 %1600
    %1602 = vrot.lane.b32.xlu0 %v1508, 12
    %v1603 = vpop.permute.xlu0 %1602
    %1604 = vrot.lane.b32.xlu0 %v1509, 12
    %v1605 = vpop.permute.xlu0 %1604
    %v1622 = vsel %vm316, %v1446, %v1511
    %v1623 = vsel %vm316, %v1447, %v1513
    %v1624 = vsel %vm316, %v1448, %v1515
    %v1625 = vsel %vm316, %v1449, %v1517
    %v1626 = vsel %vm316, %v1450, %v1519
    %v1627 = vsel %vm316, %v1451, %v1521
    %v1628 = vsel %vm316, %v1452, %v1523
    %v1629 = vsel %vm316, %v1453, %v1525
    %v1630 = vsel %vm316, %v1454, %v1527
    %v1631 = vsel %vm316, %v1455, %v1529
    %v1632 = vsel %vm316, %v1456, %v1531
    %v1633 = vsel %vm316, %v1457, %v1533
    %v1634 = vsel %vm316, %v1458, %v1535
    %v1635 = vsel %vm316, %v1459, %v1537
    %v1636 = vsel %vm316, %v1460, %v1539
    %v1637 = vsel %vm316, %v1461, %v1541
    %v1638 = vsel %vm976, %v1622, %v1575
    %v1639 = vsel %vm976, %v1623, %v1577
    %v1640 = vsel %vm976, %v1624, %v1579
    %v1641 = vsel %vm976, %v1625, %v1581
    %v1642 = vsel %vm976, %v1626, %v1583
    %v1643 = vsel %vm976, %v1627, %v1585
    %v1644 = vsel %vm976, %v1628, %v1587
    %v1645 = vsel %vm976, %v1629, %v1589
    %v1646 = vsel %vm976, %v1630, %v1591
    %v1647 = vsel %vm976, %v1631, %v1593
    %v1648 = vsel %vm976, %v1632, %v1595
    %v1649 = vsel %vm976, %v1633, %v1597
    %v1650 = vsel %vm976, %v1634, %v1599
    %v1651 = vsel %vm976, %v1635, %v1601
    %v1652 = vsel %vm976, %v1636, %v1603
    %v1653 = vsel %vm976, %v1637, %v1605
    %1670 = vrot.lane.b32.xlu0 %v1638, 18
    %v1671 = vpop.permute.xlu0 %1670
    %1672 = vrot.lane.b32.xlu0 %v1639, 18
    %v1673 = vpop.permute.xlu0 %1672
    %1674 = vrot.lane.b32.xlu0 %v1640, 18
    %v1675 = vpop.permute.xlu0 %1674
    %1676 = vrot.lane.b32.xlu0 %v1641, 18
    %v1677 = vpop.permute.xlu0 %1676
    %1678 = vrot.lane.b32.xlu0 %v1642, 18
    %v1679 = vpop.permute.xlu0 %1678
    %1680 = vrot.lane.b32.xlu0 %v1643, 18
    %v1681 = vpop.permute.xlu0 %1680
    %1682 = vrot.lane.b32.xlu0 %v1644, 18
    %v1683 = vpop.permute.xlu0 %1682
    %1684 = vrot.lane.b32.xlu0 %v1645, 18
    %v1685 = vpop.permute.xlu0 %1684
    %1686 = vrot.lane.b32.xlu0 %v1646, 18
    %v1687 = vpop.permute.xlu0 %1686
    %1688 = vrot.lane.b32.xlu0 %v1647, 18
    %v1689 = vpop.permute.xlu0 %1688
    %1690 = vrot.lane.b32.xlu0 %v1648, 18
    %v1691 = vpop.permute.xlu0 %1690
    %1692 = vrot.lane.b32.xlu0 %v1649, 18
    %v1693 = vpop.permute.xlu0 %1692
    %1694 = vrot.lane.b32.xlu0 %v1650, 18
    %v1695 = vpop.permute.xlu0 %1694
    %1696 = vrot.lane.b32.xlu0 %v1651, 18
    %v1697 = vpop.permute.xlu0 %1696
    %1698 = vrot.lane.b32.xlu0 %v1652, 18
    %v1699 = vpop.permute.xlu0 %1698
    %1700 = vrot.lane.b32.xlu0 %v1653, 18
    %v1701 = vpop.permute.xlu0 %1700
    %1718 = vrot.lane.b32.xlu0 %v1639, 36
    %v1719 = vpop.permute.xlu0 %1718
    %1720 = vrot.lane.b32.xlu0 %v1640, 36
    %v1721 = vpop.permute.xlu0 %1720
    %1722 = vrot.lane.b32.xlu0 %v1641, 36
    %v1723 = vpop.permute.xlu0 %1722
    %1724 = vrot.lane.b32.xlu0 %v1642, 36
    %v1725 = vpop.permute.xlu0 %1724
    %1726 = vrot.lane.b32.xlu0 %v1643, 36
    %v1727 = vpop.permute.xlu0 %1726
    %1728 = vrot.lane.b32.xlu0 %v1644, 36
    %v1729 = vpop.permute.xlu0 %1728
    %1730 = vrot.lane.b32.xlu0 %v1645, 36
    %v1731 = vpop.permute.xlu0 %1730
    %1732 = vrot.lane.b32.xlu0 %v1638, 36
    %v1733 = vpop.permute.xlu0 %1732
    %1734 = vrot.lane.b32.xlu0 %v1647, 36
    %v1735 = vpop.permute.xlu0 %1734
    %1736 = vrot.lane.b32.xlu0 %v1648, 36
    %v1737 = vpop.permute.xlu0 %1736
    %1738 = vrot.lane.b32.xlu0 %v1649, 36
    %v1739 = vpop.permute.xlu0 %1738
    %1740 = vrot.lane.b32.xlu0 %v1650, 36
    %v1741 = vpop.permute.xlu0 %1740
    %1742 = vrot.lane.b32.xlu0 %v1651, 36
    %v1743 = vpop.permute.xlu0 %1742
    %1744 = vrot.lane.b32.xlu0 %v1652, 36
    %v1745 = vpop.permute.xlu0 %1744
    %1746 = vrot.lane.b32.xlu0 %v1653, 36
    %v1747 = vpop.permute.xlu0 %1746
    %1748 = vrot.lane.b32.xlu0 %v1646, 36
    %v1749 = vpop.permute.xlu0 %1748
    %v1766 = vsel %vm462, %v1645, %v1671
    %v1767 = vsel %vm462, %v1638, %v1673
    %v1768 = vsel %vm462, %v1639, %v1675
    %v1769 = vsel %vm462, %v1640, %v1677
    %v1770 = vsel %vm462, %v1641, %v1679
    %v1771 = vsel %vm462, %v1642, %v1681
    %v1772 = vsel %vm462, %v1643, %v1683
    %v1773 = vsel %vm462, %v1644, %v1685
    %v1774 = vsel %vm462, %v1653, %v1687
    %v1775 = vsel %vm462, %v1646, %v1689
    %v1776 = vsel %vm462, %v1647, %v1691
    %v1777 = vsel %vm462, %v1648, %v1693
    %v1778 = vsel %vm462, %v1649, %v1695
    %v1779 = vsel %vm462, %v1650, %v1697
    %v1780 = vsel %vm462, %v1651, %v1699
    %v1781 = vsel %vm462, %v1652, %v1701
    %v1782 = vsel %vm1121, %v1766, %v1719
    %v1783 = vsel %vm1121, %v1767, %v1721
    %v1784 = vsel %vm1121, %v1768, %v1723
    %v1785 = vsel %vm1121, %v1769, %v1725
    %v1786 = vsel %vm1121, %v1770, %v1727
    %v1787 = vsel %vm1121, %v1771, %v1729
    %v1788 = vsel %vm1121, %v1772, %v1731
    %v1789 = vsel %vm1121, %v1773, %v1733
    %v1790 = vsel %vm1121, %v1774, %v1735
    %v1791 = vsel %vm1121, %v1775, %v1737
    %v1792 = vsel %vm1121, %v1776, %v1739
    %v1793 = vsel %vm1121, %v1777, %v1741
    %v1794 = vsel %vm1121, %v1778, %v1743
    %v1795 = vsel %vm1121, %v1779, %v1745
    %v1796 = vsel %vm1121, %v1780, %v1747
    %v1797 = vsel %vm1121, %v1781, %v1749
    %v1798 = vld [vmem:[%s5] sm:$0xff]
    %v1799 = vld [vmem:[%s5 + $0x8] sm:$0xff]
    %v1800 = vld [vmem:[%s5 + $0x10] sm:$0xff]
    %v1801 = vld [vmem:[%s5 + $0x18] sm:$0xff]
    %v1802 = vld [vmem:[%s5 + $0x20] sm:$0xff]
    %v1803 = vld [vmem:[%s5 + $0x28] sm:$0xff]
    %v1804 = vld [vmem:[%s5 + $0x30] sm:$0x3f]
    %v1805 = vld [vmem:[%s6] sm:$0x1]
    %v1807 = vlaneseq
    %v1808 = vshrl.u32 %v1807, 7
    %v1809 = vsub.s32 0, %v1808
    %v1810 = vrot.slane %v1805, %v1809
    %v1813 = vsel %vm1152, %v1782, 0
    %v1816 = vsel %vm1152, %v1783, 0
    %v1819 = vsel %vm1152, %v1784, 0
    %v1822 = vsel %vm1152, %v1785, 0
    %v1825 = vsel %vm1152, %v1786, 0
    %v1828 = vsel %vm1152, %v1787, 0
    %v1831 = vsel %vm1152, %v1788, 0
    %v1834 = vsel %vm1152, %v1789, 0
    %v1837 = vsel %vm1152, %v1790, 0
    %v1840 = vsel %vm1152, %v1791, 0
    %v1843 = vsel %vm1152, %v1792, 0
    %v1846 = vsel %vm1152, %v1793, 0
    %v1849 = vsel %vm1152, %v1794, 0
    %v1852 = vsel %vm1152, %v1795, 0
    %v1855 = vsel %vm1152, %v1796, 0
    %v1858 = vsel %vm1152, %v1797, 0
    %v1861 = vsel %vm1201, %v1804, 0
    %1863 = vmatprep.subr.mxu0 0.0
    %1864 = vmatpush1.msra.mxu0 0.0
    %1865 = vmatprep.subr.mxu0 0.0
    %1866 = vmatpush1.msra.mxu0 0.0
    %1867 = vmatprep.subr.mxu0 0.0
    %1868 = vmatpush1.msra.mxu0 0.0
    %1869 = vmatprep.subr.mxu0 0.0
    %1870 = vmatpush1.msra.mxu0 0.0
    %1871 = vmatprep.subr.mxu0 0.0
    %1872 = vmatpush1.msra.mxu0 0.0
    %1873 = vmatprep.subr.mxu0 0.0
    %1874 = vmatpush1.msra.mxu0 0.0
    %1875 = vmatprep.subr.mxu0 0.0
    %1876 = vmatpush1.msra.mxu0 0.0
    %1877 = vmatprep.subr.mxu0 0.0
    %1878 = vmatpush1.msra.mxu0 0.0
    %1879 = vmatprep.subr.mxu0 0.0
    %1880 = vmatpush1.msra.mxu0 0.0
    %1881 = vmatprep.subr.mxu0 0.0
    %1882 = vmatpush1.msra.mxu0 %v1861
    %1883 = vmatprep.subr.mxu0 0.0
    %1884 = vmatpush1.msra.mxu0 %v1803
    %1885 = vmatprep.subr.mxu0 0.0
    %1886 = vmatpush1.msra.mxu0 %v1802
    %1887 = vmatprep.subr.mxu0 0.0
    %1888 = vmatpush1.msra.mxu0 %v1801
    %1889 = vmatprep.subr.mxu0 0.0
    %1890 = vmatpush1.msra.mxu0 %v1800
    %1891 = vmatprep.subr.mxu0 0.0
    %1892 = vmatpush1.msra.mxu0 %v1799
    %1893 = vmatprep.subr.mxu0 0.0
    %1894 = vmatpush1.msra.mxu0 %v1798
    %1895 = vmatprep.subr.mxu0 0.0
    %1896 = vmatpush2.msra.mxu0 0.0
    %1897 = vmatprep.subr.mxu0 0.0
    %1898 = vmatpush2.msra.mxu0 0.0
    %1899 = vmatprep.subr.mxu0 0.0
    %1900 = vmatpush2.msra.mxu0 0.0
    %1901 = vmatprep.subr.mxu0 0.0
    %1902 = vmatpush2.msra.mxu0 0.0
    %1903 = vmatprep.subr.mxu0 0.0
    %1904 = vmatpush2.msra.mxu0 0.0
    %1905 = vmatprep.subr.mxu0 0.0
    %1906 = vmatpush2.msra.mxu0 0.0
    %1907 = vmatprep.subr.mxu0 0.0
    %1908 = vmatpush2.msra.mxu0 0.0
    %1909 = vmatprep.subr.mxu0 0.0
    %1910 = vmatpush2.msra.mxu0 0.0
    %1911 = vmatprep.subr.mxu0 0.0
    %1912 = vmatpush2.msra.mxu0 0.0
    %1913 = vmatprep.subr.mxu0 0.0
    %1914 = vmatpush2.msra.mxu0 0.0
    %1915 = vmatprep.subr.mxu0 0.0
    %1916 = vmatpush2.msra.mxu0 0.0
    %1917 = vmatprep.subr.mxu0 0.0
    %1918 = vmatpush2.msra.mxu0 0.0
    %1919 = vmatprep.subr.mxu0 0.0
    %1920 = vmatpush2.msra.mxu0 0.0
    %1921 = vmatprep.subr.mxu0 0.0
    %1922 = vmatpush2.msra.mxu0 0.0
    %1923 = vmatprep.subr.mxu0 0.0
    %1924 = vmatpush2.msra.mxu0 0.0
    %1925 = vmatprep.subr.mxu0 0.0
    %1926 = vmatpush2.msra.mxu0 0.0
    %1927 = vmatprep.mubr.f32.mxu0 0.0
    %1928 = vmatmul.mubr.f32.gmra.mxu0 %v1813
    %v1929 = vpop.f32.mrf.mxu0
    %v1930 = vadd.f32 %v1810, %v1929
    %v1931 = vpop.f32.mrf.mxu0
    %1932 = vmatprep.mubr.f32.mxu0 0.0
    %1933 = vmatmul.mubr.f32.gmra.mxu0 %v1816
    %v1934 = vpop.f32.mrf.mxu0
    %v1935 = vadd.f32 %v1810, %v1934
    %v1936 = vpop.f32.mrf.mxu0
    %1937 = vmatprep.mubr.f32.mxu0 0.0
    %1938 = vmatmul.mubr.f32.gmra.mxu0 %v1819
    %v1939 = vpop.f32.mrf.mxu0
    %v1940 = vadd.f32 %v1810, %v1939
    %v1941 = vpop.f32.mrf.mxu0
    %1942 = vmatprep.mubr.f32.mxu0 0.0
    %1943 = vmatmul.mubr.f32.gmra.mxu0 %v1822
    %v1944 = vpop.f32.mrf.mxu0
    %v1945 = vadd.f32 %v1810, %v1944
    %v1946 = vpop.f32.mrf.mxu0
    %1947 = vmatprep.mubr.f32.mxu0 0.0
    %1948 = vmatmul.mubr.f32.gmra.mxu0 %v1825
    %v1949 = vpop.f32.mrf.mxu0
    %v1950 = vadd.f32 %v1810, %v1949
    %v1951 = vpop.f32.mrf.mxu0
    %1952 = vmatprep.mubr.f32.mxu0 0.0
    %1953 = vmatmul.mubr.f32.gmra.mxu0 %v1828
    %v1954 = vpop.f32.mrf.mxu0
    %v1955 = vadd.f32 %v1810, %v1954
    %v1956 = vpop.f32.mrf.mxu0
    %1957 = vmatprep.mubr.f32.mxu0 0.0
    %1958 = vmatmul.mubr.f32.gmra.mxu0 %v1831
    %v1959 = vpop.f32.mrf.mxu0
    %v1960 = vadd.f32 %v1810, %v1959
    %v1961 = vpop.f32.mrf.mxu0
    %1962 = vmatprep.mubr.f32.mxu0 0.0
    %1963 = vmatmul.mubr.f32.gmra.mxu0 %v1834
    %v1964 = vpop.f32.mrf.mxu0
    %v1965 = vadd.f32 %v1810, %v1964
    %v1966 = vpop.f32.mrf.mxu0
    %1967 = vmatprep.mubr.f32.mxu0 0.0
    %1968 = vmatmul.mubr.f32.gmra.mxu0 %v1837
    %v1969 = vpop.f32.mrf.mxu0
    %v1970 = vadd.f32 %v1810, %v1969
    %v1971 = vpop.f32.mrf.mxu0
    %1972 = vmatprep.mubr.f32.mxu0 0.0
    %1973 = vmatmul.mubr.f32.gmra.mxu0 %v1840
    %v1974 = vpop.f32.mrf.mxu0
    %v1975 = vadd.f32 %v1810, %v1974
    %v1976 = vpop.f32.mrf.mxu0
    %1977 = vmatprep.mubr.f32.mxu0 0.0
    %1978 = vmatmul.mubr.f32.gmra.mxu0 %v1843
    %v1979 = vpop.f32.mrf.mxu0
    %v1980 = vadd.f32 %v1810, %v1979
    %v1981 = vpop.f32.mrf.mxu0
    %1982 = vmatprep.mubr.f32.mxu0 0.0
    %1983 = vmatmul.mubr.f32.gmra.mxu0 %v1846
    %v1984 = vpop.f32.mrf.mxu0
    %v1985 = vadd.f32 %v1810, %v1984
    %v1986 = vpop.f32.mrf.mxu0
    %1987 = vmatprep.mubr.f32.mxu0 0.0
    %1988 = vmatmul.mubr.f32.gmra.mxu0 %v1849
    %v1989 = vpop.f32.mrf.mxu0
    %v1990 = vadd.f32 %v1810, %v1989
    %v1991 = vpop.f32.mrf.mxu0
    %1992 = vmatprep.mubr.f32.mxu0 0.0
    %1993 = vmatmul.mubr.f32.gmra.mxu0 %v1852
    %v1994 = vpop.f32.mrf.mxu0
    %v1995 = vadd.f32 %v1810, %v1994
    %v1996 = vpop.f32.mrf.mxu0
    %1997 = vmatprep.mubr.f32.mxu0 0.0
    %1998 = vmatmul.mubr.f32.gmra.mxu0 %v1855
    %v1999 = vpop.f32.mrf.mxu0
    %v2000 = vadd.f32 %v1810, %v1999
    %v2001 = vpop.f32.mrf.mxu0
    %2002 = vmatprep.mubr.f32.mxu0 0.0
    %2003 = vmatmul.mubr.f32.gmra.mxu0 %v1858
    %v2004 = vpop.f32.mrf.mxu0
    %v2005 = vadd.f32 %v1810, %v2004
    %v2006 = vpop.f32.mrf.mxu0
    %2007 = vdwg.mxu0
    %vm2008 = vcmp.gt.f32.partialorder %v1930, 0.0
    %vm2009 = vcmp.gt.f32.partialorder %v1935, 0.0
    %vm2010 = vcmp.gt.f32.partialorder %v1940, 0.0
    %vm2011 = vcmp.gt.f32.partialorder %v1945, 0.0
    %vm2012 = vcmp.gt.f32.partialorder %v1950, 0.0
    %vm2013 = vcmp.gt.f32.partialorder %v1955, 0.0
    %vm2014 = vcmp.gt.f32.partialorder %v1960, 0.0
    %vm2015 = vcmp.gt.f32.partialorder %v1965, 0.0
    %vm2016 = vcmp.gt.f32.partialorder %v1970, 0.0
    %vm2017 = vcmp.gt.f32.partialorder %v1975, 0.0
    %vm2018 = vcmp.gt.f32.partialorder %v1980, 0.0
    %vm2019 = vcmp.gt.f32.partialorder %v1985, 0.0
    %vm2020 = vcmp.gt.f32.partialorder %v1990, 0.0
    %vm2021 = vcmp.gt.f32.partialorder %v1995, 0.0
    %vm2022 = vcmp.gt.f32.partialorder %v2000, 0.0
    %vm2023 = vcmp.gt.f32.partialorder %v2005, 0.0
    %v2024 = vmul.f32 %v1930, 0.01
    %v2025 = vmul.f32 %v1935, 0.01
    %v2026 = vmul.f32 %v1940, 0.01
    %v2027 = vmul.f32 %v1945, 0.01
    %v2028 = vmul.f32 %v1950, 0.01
    %v2029 = vmul.f32 %v1955, 0.01
    %v2030 = vmul.f32 %v1960, 0.01
    %v2031 = vmul.f32 %v1965, 0.01
    %v2032 = vmul.f32 %v1970, 0.01
    %v2033 = vmul.f32 %v1975, 0.01
    %v2034 = vmul.f32 %v1980, 0.01
    %v2035 = vmul.f32 %v1985, 0.01
    %v2036 = vmul.f32 %v1990, 0.01
    %v2037 = vmul.f32 %v1995, 0.01
    %v2038 = vmul.f32 %v2000, 0.01
    %v2039 = vmul.f32 %v2005, 0.01
    %v2040 = vsel %vm2008, %v1930, %v2024
    %v2041 = vsel %vm2009, %v1935, %v2025
    %v2042 = vsel %vm2010, %v1940, %v2026
    %v2043 = vsel %vm2011, %v1945, %v2027
    %v2044 = vsel %vm2012, %v1950, %v2028
    %v2045 = vsel %vm2013, %v1955, %v2029
    %v2046 = vsel %vm2014, %v1960, %v2030
    %v2047 = vsel %vm2015, %v1965, %v2031
    %v2048 = vsel %vm2016, %v1970, %v2032
    %v2049 = vsel %vm2017, %v1975, %v2033
    %v2050 = vsel %vm2018, %v1980, %v2034
    %v2051 = vsel %vm2019, %v1985, %v2035
    %v2052 = vsel %vm2020, %v1990, %v2036
    %v2053 = vsel %vm2021, %v1995, %v2037
    %v2054 = vsel %vm2022, %v2000, %v2038
    %v2055 = vsel %vm2023, %v2005, %v2039
    %v2072 = vcombine.high %v2040, %v2040
    %v2074 = vunpack.c.l.s4 1983009808
    %v2075 = vunpack.c.0.s8 %v2074
    %v2076 = vlaneseq
    %v2077 = vshrl.u32 %v2076, 7
    %v2078 = vsub.s32 %v2075, %v2077
    %v2079 = vrot.slane %v2040, %v2078
    %v2081 = vunpack.c.l.s4 1983009808
    %v2082 = vunpack.c.0.s8 %v2081
    %v2083 = vlaneseq
    %v2084 = vshrl.u32 %v2083, 7
    %v2085 = vsub.s32 %v2082, %v2084
    %v2086 = vrot.slane %v2072, %v2085
    %v2087 = vcombine.high %v2079, %v2079
    %v2088 = vcombine.high %v2086, %v2086
    %v2089 = vcombine.high %v2041, %v2041
    %v2091 = vunpack.c.l.s4 1983009808
    %v2092 = vunpack.c.0.s8 %v2091
    %v2093 = vlaneseq
    %v2094 = vshrl.u32 %v2093, 7
    %v2095 = vsub.s32 %v2092, %v2094
    %v2096 = vrot.slane %v2041, %v2095
    %v2098 = vunpack.c.l.s4 1983009808
    %v2099 = vunpack.c.0.s8 %v2098
    %v2100 = vlaneseq
    %v2101 = vshrl.u32 %v2100, 7
    %v2102 = vsub.s32 %v2099, %v2101
    %v2103 = vrot.slane %v2089, %v2102
    %v2104 = vcombine.high %v2096, %v2096
    %v2105 = vcombine.high %v2103, %v2103
    %v2106 = vcombine.high %v2042, %v2042
    %v2108 = vunpack.c.l.s4 1983009808
    %v2109 = vunpack.c.0.s8 %v2108
    %v2110 = vlaneseq
    %v2111 = vshrl.u32 %v2110, 7
    %v2112 = vsub.s32 %v2109, %v2111
    %v2113 = vrot.slane %v2042, %v2112
    %v2115 = vunpack.c.l.s4 1983009808
    %v2116 = vunpack.c.0.s8 %v2115
    %v2117 = vlaneseq
    %v2118 = vshrl.u32 %v2117, 7
    %v2119 = vsub.s32 %v2116, %v2118
    %v2120 = vrot.slane %v2106, %v2119
    %v2121 = vcombine.high %v2113, %v2113
    %v2122 = vcombine.high %v2120, %v2120
    %v2123 = vcombine.high %v2043, %v2043
    %v2125 = vunpack.c.l.s4 1983009808
    %v2126 = vunpack.c.0.s8 %v2125
    %v2127 = vlaneseq
    %v2128 = vshrl.u32 %v2127, 7
    %v2129 = vsub.s32 %v2126, %v2128
    %v2130 = vrot.slane %v2043, %v2129
    %v2132 = vunpack.c.l.s4 1983009808
    %v2133 = vunpack.c.0.s8 %v2132
    %v2134 = vlaneseq
    %v2135 = vshrl.u32 %v2134, 7
    %v2136 = vsub.s32 %v2133, %v2135
    %v2137 = vrot.slane %v2123, %v2136
    %v2138 = vcombine.high %v2130, %v2130
    %v2139 = vcombine.high %v2137, %v2137
    %v2140 = vcombine.high %v2044, %v2044
    %v2142 = vunpack.c.l.s4 1983009808
    %v2143 = vunpack.c.0.s8 %v2142
    %v2144 = vlaneseq
    %v2145 = vshrl.u32 %v2144, 7
    %v2146 = vsub.s32 %v2143, %v2145
    %v2147 = vrot.slane %v2044, %v2146
    %v2149 = vunpack.c.l.s4 1983009808
    %v2150 = vunpack.c.0.s8 %v2149
    %v2151 = vlaneseq
    %v2152 = vshrl.u32 %v2151, 7
    %v2153 = vsub.s32 %v2150, %v2152
    %v2154 = vrot.slane %v2140, %v2153
    %v2155 = vcombine.high %v2147, %v2147
    %v2156 = vcombine.high %v2154, %v2154
    %v2157 = vcombine.high %v2045, %v2045
    %v2159 = vunpack.c.l.s4 1983009808
    %v2160 = vunpack.c.0.s8 %v2159
    %v2161 = vlaneseq
    %v2162 = vshrl.u32 %v2161, 7
    %v2163 = vsub.s32 %v2160, %v2162
    %v2164 = vrot.slane %v2045, %v2163
    %v2166 = vunpack.c.l.s4 1983009808
    %v2167 = vunpack.c.0.s8 %v2166
    %v2168 = vlaneseq
    %v2169 = vshrl.u32 %v2168, 7
    %v2170 = vsub.s32 %v2167, %v2169
    %v2171 = vrot.slane %v2157, %v2170
    %v2172 = vcombine.high %v2164, %v2164
    %v2173 = vcombine.high %v2171, %v2171
    %v2174 = vcombine.high %v2046, %v2046
    %v2176 = vunpack.c.l.s4 1983009808
    %v2177 = vunpack.c.0.s8 %v2176
    %v2178 = vlaneseq
    %v2179 = vshrl.u32 %v2178, 7
    %v2180 = vsub.s32 %v2177, %v2179
    %v2181 = vrot.slane %v2046, %v2180
    %v2183 = vunpack.c.l.s4 1983009808
    %v2184 = vunpack.c.0.s8 %v2183
    %v2185 = vlaneseq
    %v2186 = vshrl.u32 %v2185, 7
    %v2187 = vsub.s32 %v2184, %v2186
    %v2188 = vrot.slane %v2174, %v2187
    %v2189 = vcombine.high %v2181, %v2181
    %v2190 = vcombine.high %v2188, %v2188
    %v2191 = vcombine.high %v2047, %v2047
    %v2193 = vunpack.c.l.s4 1983009808
    %v2194 = vunpack.c.0.s8 %v2193
    %v2195 = vlaneseq
    %v2196 = vshrl.u32 %v2195, 7
    %v2197 = vsub.s32 %v2194, %v2196
    %v2198 = vrot.slane %v2047, %v2197
    %v2200 = vunpack.c.l.s4 1983009808
    %v2201 = vunpack.c.0.s8 %v2200
    %v2202 = vlaneseq
    %v2203 = vshrl.u32 %v2202, 7
    %v2204 = vsub.s32 %v2201, %v2203
    %v2205 = vrot.slane %v2191, %v2204
    %v2206 = vcombine.high %v2198, %v2198
    %v2207 = vcombine.high %v2205, %v2205
    %v2208 = vcombine.high %v2048, %v2048
    %v2210 = vunpack.c.l.s4 1983009808
    %v2211 = vunpack.c.0.s8 %v2210
    %v2212 = vlaneseq
    %v2213 = vshrl.u32 %v2212, 7
    %v2214 = vsub.s32 %v2211, %v2213
    %v2215 = vrot.slane %v2048, %v2214
    %v2217 = vunpack.c.l.s4 1983009808
    %v2218 = vunpack.c.0.s8 %v2217
    %v2219 = vlaneseq
    %v2220 = vshrl.u32 %v2219, 7
    %v2221 = vsub.s32 %v2218, %v2220
    %v2222 = vrot.slane %v2208, %v2221
    %v2223 = vcombine.high %v2215, %v2215
    %v2224 = vcombine.high %v2222, %v2222
    %v2225 = vcombine.high %v2049, %v2049
    %v2227 = vunpack.c.l.s4 1983009808
    %v2228 = vunpack.c.0.s8 %v2227
    %v2229 = vlaneseq
    %v2230 = vshrl.u32 %v2229, 7
    %v2231 = vsub.s32 %v2228, %v2230
    %v2232 = vrot.slane %v2049, %v2231
    %v2234 = vunpack.c.l.s4 1983009808
    %v2235 = vunpack.c.0.s8 %v2234
    %v2236 = vlaneseq
    %v2237 = vshrl.u32 %v2236, 7
    %v2238 = vsub.s32 %v2235, %v2237
    %v2239 = vrot.slane %v2225, %v2238
    %v2240 = vcombine.high %v2232, %v2232
    %v2241 = vcombine.high %v2239, %v2239
    %v2242 = vcombine.high %v2050, %v2050
    %v2244 = vunpack.c.l.s4 1983009808
    %v2245 = vunpack.c.0.s8 %v2244
    %v2246 = vlaneseq
    %v2247 = vshrl.u32 %v2246, 7
    %v2248 = vsub.s32 %v2245, %v2247
    %v2249 = vrot.slane %v2050, %v2248
    %v2251 = vunpack.c.l.s4 1983009808
    %v2252 = vunpack.c.0.s8 %v2251
    %v2253 = vlaneseq
    %v2254 = vshrl.u32 %v2253, 7
    %v2255 = vsub.s32 %v2252, %v2254
    %v2256 = vrot.slane %v2242, %v2255
    %v2257 = vcombine.high %v2249, %v2249
    %v2258 = vcombine.high %v2256, %v2256
    %v2259 = vcombine.high %v2051, %v2051
    %v2261 = vunpack.c.l.s4 1983009808
    %v2262 = vunpack.c.0.s8 %v2261
    %v2263 = vlaneseq
    %v2264 = vshrl.u32 %v2263, 7
    %v2265 = vsub.s32 %v2262, %v2264
    %v2266 = vrot.slane %v2051, %v2265
    %v2268 = vunpack.c.l.s4 1983009808
    %v2269 = vunpack.c.0.s8 %v2268
    %v2270 = vlaneseq
    %v2271 = vshrl.u32 %v2270, 7
    %v2272 = vsub.s32 %v2269, %v2271
    %v2273 = vrot.slane %v2259, %v2272
    %v2274 = vcombine.high %v2266, %v2266
    %v2275 = vcombine.high %v2273, %v2273
    %v2276 = vcombine.high %v2052, %v2052
    %v2278 = vunpack.c.l.s4 1983009808
    %v2279 = vunpack.c.0.s8 %v2278
    %v2280 = vlaneseq
    %v2281 = vshrl.u32 %v2280, 7
    %v2282 = vsub.s32 %v2279, %v2281
    %v2283 = vrot.slane %v2052, %v2282
    %v2285 = vunpack.c.l.s4 1983009808
    %v2286 = vunpack.c.0.s8 %v2285
    %v2287 = vlaneseq
    %v2288 = vshrl.u32 %v2287, 7
    %v2289 = vsub.s32 %v2286, %v2288
    %v2290 = vrot.slane %v2276, %v2289
    %v2291 = vcombine.high %v2283, %v2283
    %v2292 = vcombine.high %v2290, %v2290
    %v2293 = vcombine.high %v2053, %v2053
    %v2295 = vunpack.c.l.s4 1983009808
    %v2296 = vunpack.c.0.s8 %v2295
    %v2297 = vlaneseq
    %v2298 = vshrl.u32 %v2297, 7
    %v2299 = vsub.s32 %v2296, %v2298
    %v2300 = vrot.slane %v2053, %v2299
    %v2302 = vunpack.c.l.s4 1983009808
    %v2303 = vunpack.c.0.s8 %v2302
    %v2304 = vlaneseq
    %v2305 = vshrl.u32 %v2304, 7
    %v2306 = vsub.s32 %v2303, %v2305
    %v2307 = vrot.slane %v2293, %v2306
    %v2308 = vcombine.high %v2300, %v2300
    %v2309 = vcombine.high %v2307, %v2307
    %v2310 = vcombine.high %v2054, %v2054
    %v2312 = vunpack.c.l.s4 1983009808
    %v2313 = vunpack.c.0.s8 %v2312
    %v2314 = vlaneseq
    %v2315 = vshrl.u32 %v2314, 7
    %v2316 = vsub.s32 %v2313, %v2315
    %v2317 = vrot.slane %v2054, %v2316
    %v2319 = vunpack.c.l.s4 1983009808
    %v2320 = vunpack.c.0.s8 %v2319
    %v2321 = vlaneseq
    %v2322 = vshrl.u32 %v2321, 7
    %v2323 = vsub.s32 %v2320, %v2322
    %v2324 = vrot.slane %v2310, %v2323
    %v2325 = vcombine.high %v2317, %v2317
    %v2326 = vcombine.high %v2324, %v2324
    %v2327 = vcombine.high %v2055, %v2055
    %v2329 = vunpack.c.l.s4 1983009808
    %v2330 = vunpack.c.0.s8 %v2329
    %v2331 = vlaneseq
    %v2332 = vshrl.u32 %v2331, 7
    %v2333 = vsub.s32 %v2330, %v2332
    %v2334 = vrot.slane %v2055, %v2333
    %v2336 = vunpack.c.l.s4 1983009808
    %v2337 = vunpack.c.0.s8 %v2336
    %v2338 = vlaneseq
    %v2339 = vshrl.u32 %v2338, 7
    %v2340 = vsub.s32 %v2337, %v2339
    %v2341 = vrot.slane %v2327, %v2340
    %v2342 = vcombine.high %v2334, %v2334
    %v2343 = vcombine.high %v2341, %v2341
    %vm2408 = vcmask 41984
    %v2409 = vsel %vm2408, %v2079, -inf
    %v2410 = vrot.slane %v2409, 4
    %v2411 = vmax.f32 %v2409, %v2410
    %v2412 = vrot.slane %v2411, 2
    %v2413 = vmax.f32 %v2411, %v2412
    %v2414 = vrot.slane %v2413, 1
    %v2415 = vmax.f32 %v2413, %v2414
    %v2416 = vsel %vm2408, %v2087, -inf
    %v2417 = vrot.slane %v2416, 4
    %v2418 = vmax.f32 %v2416, %v2417
    %v2419 = vrot.slane %v2418, 2
    %v2420 = vmax.f32 %v2418, %v2419
    %v2421 = vrot.slane %v2420, 1
    %v2422 = vmax.f32 %v2420, %v2421
    %v2423 = vsel %vm2408, %v2086, -inf
    %v2424 = vrot.slane %v2423, 4
    %v2425 = vmax.f32 %v2423, %v2424
    %v2426 = vrot.slane %v2425, 2
    %v2427 = vmax.f32 %v2425, %v2426
    %v2428 = vrot.slane %v2427, 1
    %v2429 = vmax.f32 %v2427, %v2428
    %v2430 = vsel %vm2408, %v2088, -inf
    %v2431 = vrot.slane %v2430, 4
    %v2432 = vmax.f32 %v2430, %v2431
    %v2433 = vrot.slane %v2432, 2
    %v2434 = vmax.f32 %v2432, %v2433
    %v2435 = vrot.slane %v2434, 1
    %v2436 = vmax.f32 %v2434, %v2435
    %v2437 = vsel %vm2408, %v2096, -inf
    %v2438 = vrot.slane %v2437, 4
    %v2439 = vmax.f32 %v2437, %v2438
    %v2440 = vrot.slane %v2439, 2
    %v2441 = vmax.f32 %v2439, %v2440
    %v2442 = vrot.slane %v2441, 1
    %v2443 = vmax.f32 %v2441, %v2442
    %v2444 = vsel %vm2408, %v2104, -inf
    %v2445 = vrot.slane %v2444, 4
    %v2446 = vmax.f32 %v2444, %v2445
    %v2447 = vrot.slane %v2446, 2
    %v2448 = vmax.f32 %v2446, %v2447
    %v2449 = vrot.slane %v2448, 1
    %v2450 = vmax.f32 %v2448, %v2449
    %v2451 = vsel %vm2408, %v2103, -inf
    %v2452 = vrot.slane %v2451, 4
    %v2453 = vmax.f32 %v2451, %v2452
    %v2454 = vrot.slane %v2453, 2
    %v2455 = vmax.f32 %v2453, %v2454
    %v2456 = vrot.slane %v2455, 1
    %v2457 = vmax.f32 %v2455, %v2456
    %v2458 = vsel %vm2408, %v2105, -inf
    %v2459 = vrot.slane %v2458, 4
    %v2460 = vmax.f32 %v2458, %v2459
    %v2461 = vrot.slane %v2460, 2
    %v2462 = vmax.f32 %v2460, %v2461
    %v2463 = vrot.slane %v2462, 1
    %v2464 = vmax.f32 %v2462, %v2463
    %v2465 = vsel %vm2408, %v2113, -inf
    %v2466 = vrot.slane %v2465, 4
    %v2467 = vmax.f32 %v2465, %v2466
    %v2468 = vrot.slane %v2467, 2
    %v2469 = vmax.f32 %v2467, %v2468
    %v2470 = vrot.slane %v2469, 1
    %v2471 = vmax.f32 %v2469, %v2470
    %v2472 = vsel %vm2408, %v2121, -inf
    %v2473 = vrot.slane %v2472, 4
    %v2474 = vmax.f32 %v2472, %v2473
    %v2475 = vrot.slane %v2474, 2
    %v2476 = vmax.f32 %v2474, %v2475
    %v2477 = vrot.slane %v2476, 1
    %v2478 = vmax.f32 %v2476, %v2477
    %v2479 = vsel %vm2408, %v2120, -inf
    %v2480 = vrot.slane %v2479, 4
    %v2481 = vmax.f32 %v2479, %v2480
    %v2482 = vrot.slane %v2481, 2
    %v2483 = vmax.f32 %v2481, %v2482
    %v2484 = vrot.slane %v2483, 1
    %v2485 = vmax.f32 %v2483, %v2484
    %v2486 = vsel %vm2408, %v2122, -inf
    %v2487 = vrot.slane %v2486, 4
    %v2488 = vmax.f32 %v2486, %v2487
    %v2489 = vrot.slane %v2488, 2
    %v2490 = vmax.f32 %v2488, %v2489
    %v2491 = vrot.slane %v2490, 1
    %v2492 = vmax.f32 %v2490, %v2491
    %v2493 = vsel %vm2408, %v2130, -inf
    %v2494 = vrot.slane %v2493, 4
    %v2495 = vmax.f32 %v2493, %v2494
    %v2496 = vrot.slane %v2495, 2
    %v2497 = vmax.f32 %v2495, %v2496
    %v2498 = vrot.slane %v2497, 1
    %v2499 = vmax.f32 %v2497, %v2498
    %v2500 = vsel %vm2408, %v2138, -inf
    %v2501 = vrot.slane %v2500, 4
    %v2502 = vmax.f32 %v2500, %v2501
    %v2503 = vrot.slane %v2502, 2
    %v2504 = vmax.f32 %v2502, %v2503
    %v2505 = vrot.slane %v2504, 1
    %v2506 = vmax.f32 %v2504, %v2505
    %v2507 = vsel %vm2408, %v2137, -inf
    %v2508 = vrot.slane %v2507, 4
    %v2509 = vmax.f32 %v2507, %v2508
    %v2510 = vrot.slane %v2509, 2
    %v2511 = vmax.f32 %v2509, %v2510
    %v2512 = vrot.slane %v2511, 1
    %v2513 = vmax.f32 %v2511, %v2512
    %v2514 = vsel %vm2408, %v2139, -inf
    %v2515 = vrot.slane %v2514, 4
    %v2516 = vmax.f32 %v2514, %v2515
    %v2517 = vrot.slane %v2516, 2
    %v2518 = vmax.f32 %v2516, %v2517
    %v2519 = vrot.slane %v2518, 1
    %v2520 = vmax.f32 %v2518, %v2519
    %v2521 = vsel %vm2408, %v2147, -inf
    %v2522 = vrot.slane %v2521, 4
    %v2523 = vmax.f32 %v2521, %v2522
    %v2524 = vrot.slane %v2523, 2
    %v2525 = vmax.f32 %v2523, %v2524
    %v2526 = vrot.slane %v2525, 1
    %v2527 = vmax.f32 %v2525, %v2526
    %v2528 = vsel %vm2408, %v2155, -inf
    %v2529 = vrot.slane %v2528, 4
    %v2530 = vmax.f32 %v2528, %v2529
    %v2531 = vrot.slane %v2530, 2
    %v2532 = vmax.f32 %v2530, %v2531
    %v2533 = vrot.slane %v2532, 1
    %v2534 = vmax.f32 %v2532, %v2533
    %v2535 = vsel %vm2408, %v2154, -inf
    %v2536 = vrot.slane %v2535, 4
    %v2537 = vmax.f32 %v2535, %v2536
    %v2538 = vrot.slane %v2537, 2
    %v2539 = vmax.f32 %v2537, %v2538
    %v2540 = vrot.slane %v2539, 1
    %v2541 = vmax.f32 %v2539, %v2540
    %v2542 = vsel %vm2408, %v2156, -inf
    %v2543 = vrot.slane %v2542, 4
    %v2544 = vmax.f32 %v2542, %v2543
    %v2545 = vrot.slane %v2544, 2
    %v2546 = vmax.f32 %v2544, %v2545
    %v2547 = vrot.slane %v2546, 1
    %v2548 = vmax.f32 %v2546, %v2547
    %v2549 = vsel %vm2408, %v2164, -inf
    %v2550 = vrot.slane %v2549, 4
    %v2551 = vmax.f32 %v2549, %v2550
    %v2552 = vrot.slane %v2551, 2
    %v2553 = vmax.f32 %v2551, %v2552
    %v2554 = vrot.slane %v2553, 1
    %v2555 = vmax.f32 %v2553, %v2554
    %v2556 = vsel %vm2408, %v2172, -inf
    %v2557 = vrot.slane %v2556, 4
    %v2558 = vmax.f32 %v2556, %v2557
    %v2559 = vrot.slane %v2558, 2
    %v2560 = vmax.f32 %v2558, %v2559
    %v2561 = vrot.slane %v2560, 1
    %v2562 = vmax.f32 %v2560, %v2561
    %v2563 = vsel %vm2408, %v2171, -inf
    %v2564 = vrot.slane %v2563, 4
    %v2565 = vmax.f32 %v2563, %v2564
    %v2566 = vrot.slane %v2565, 2
    %v2567 = vmax.f32 %v2565, %v2566
    %v2568 = vrot.slane %v2567, 1
    %v2569 = vmax.f32 %v2567, %v2568
    %v2570 = vsel %vm2408, %v2173, -inf
    %v2571 = vrot.slane %v2570, 4
    %v2572 = vmax.f32 %v2570, %v2571
    %v2573 = vrot.slane %v2572, 2
    %v2574 = vmax.f32 %v2572, %v2573
    %v2575 = vrot.slane %v2574, 1
    %v2576 = vmax.f32 %v2574, %v2575
    %v2577 = vsel %vm2408, %v2181, -inf
    %v2578 = vrot.slane %v2577, 4
    %v2579 = vmax.f32 %v2577, %v2578
    %v2580 = vrot.slane %v2579, 2
    %v2581 = vmax.f32 %v2579, %v2580
    %v2582 = vrot.slane %v2581, 1
    %v2583 = vmax.f32 %v2581, %v2582
    %v2584 = vsel %vm2408, %v2189, -inf
    %v2585 = vrot.slane %v2584, 4
    %v2586 = vmax.f32 %v2584, %v2585
    %v2587 = vrot.slane %v2586, 2
    %v2588 = vmax.f32 %v2586, %v2587
    %v2589 = vrot.slane %v2588, 1
    %v2590 = vmax.f32 %v2588, %v2589
    %v2591 = vsel %vm2408, %v2188, -inf
    %v2592 = vrot.slane %v2591, 4
    %v2593 = vmax.f32 %v2591, %v2592
    %v2594 = vrot.slane %v2593, 2
    %v2595 = vmax.f32 %v2593, %v2594
    %v2596 = vrot.slane %v2595, 1
    %v2597 = vmax.f32 %v2595, %v2596
    %v2598 = vsel %vm2408, %v2190, -inf
    %v2599 = vrot.slane %v2598, 4
    %v2600 = vmax.f32 %v2598, %v2599
    %v2601 = vrot.slane %v2600, 2
    %v2602 = vmax.f32 %v2600, %v2601
    %v2603 = vrot.slane %v2602, 1
    %v2604 = vmax.f32 %v2602, %v2603
    %v2605 = vsel %vm2408, %v2198, -inf
    %v2606 = vrot.slane %v2605, 4
    %v2607 = vmax.f32 %v2605, %v2606
    %v2608 = vrot.slane %v2607, 2
    %v2609 = vmax.f32 %v2607, %v2608
    %v2610 = vrot.slane %v2609, 1
    %v2611 = vmax.f32 %v2609, %v2610
    %v2612 = vsel %vm2408, %v2206, -inf
    %v2613 = vrot.slane %v2612, 4
    %v2614 = vmax.f32 %v2612, %v2613
    %v2615 = vrot.slane %v2614, 2
    %v2616 = vmax.f32 %v2614, %v2615
    %v2617 = vrot.slane %v2616, 1
    %v2618 = vmax.f32 %v2616, %v2617
    %v2619 = vsel %vm2408, %v2205, -inf
    %v2620 = vrot.slane %v2619, 4
    %v2621 = vmax.f32 %v2619, %v2620
    %v2622 = vrot.slane %v2621, 2
    %v2623 = vmax.f32 %v2621, %v2622
    %v2624 = vrot.slane %v2623, 1
    %v2625 = vmax.f32 %v2623, %v2624
    %v2626 = vsel %vm2408, %v2207, -inf
    %v2627 = vrot.slane %v2626, 4
    %v2628 = vmax.f32 %v2626, %v2627
    %v2629 = vrot.slane %v2628, 2
    %v2630 = vmax.f32 %v2628, %v2629
    %v2631 = vrot.slane %v2630, 1
    %v2632 = vmax.f32 %v2630, %v2631
    %v2633 = vsel %vm2408, %v2215, -inf
    %v2634 = vrot.slane %v2633, 4
    %v2635 = vmax.f32 %v2633, %v2634
    %v2636 = vrot.slane %v2635, 2
    %v2637 = vmax.f32 %v2635, %v2636
    %v2638 = vrot.slane %v2637, 1
    %v2639 = vmax.f32 %v2637, %v2638
    %v2640 = vsel %vm2408, %v2223, -inf
    %v2641 = vrot.slane %v2640, 4
    %v2642 = vmax.f32 %v2640, %v2641
    %v2643 = vrot.slane %v2642, 2
    %v2644 = vmax.f32 %v2642, %v2643
    %v2645 = vrot.slane %v2644, 1
    %v2646 = vmax.f32 %v2644, %v2645
    %v2647 = vsel %vm2408, %v2222, -inf
    %v2648 = vrot.slane %v2647, 4
    %v2649 = vmax.f32 %v2647, %v2648
    %v2650 = vrot.slane %v2649, 2
    %v2651 = vmax.f32 %v2649, %v2650
    %v2652 = vrot.slane %v2651, 1
    %v2653 = vmax.f32 %v2651, %v2652
    %v2654 = vsel %vm2408, %v2224, -inf
    %v2655 = vrot.slane %v2654, 4
    %v2656 = vmax.f32 %v2654, %v2655
    %v2657 = vrot.slane %v2656, 2
    %v2658 = vmax.f32 %v2656, %v2657
    %v2659 = vrot.slane %v2658, 1
    %v2660 = vmax.f32 %v2658, %v2659
    %v2661 = vsel %vm2408, %v2232, -inf
    %v2662 = vrot.slane %v2661, 4
    %v2663 = vmax.f32 %v2661, %v2662
    %v2664 = vrot.slane %v2663, 2
    %v2665 = vmax.f32 %v2663, %v2664
    %v2666 = vrot.slane %v2665, 1
    %v2667 = vmax.f32 %v2665, %v2666
    %v2668 = vsel %vm2408, %v2240, -inf
    %v2669 = vrot.slane %v2668, 4
    %v2670 = vmax.f32 %v2668, %v2669
    %v2671 = vrot.slane %v2670, 2
    %v2672 = vmax.f32 %v2670, %v2671
    %v2673 = vrot.slane %v2672, 1
    %v2674 = vmax.f32 %v2672, %v2673
    %v2675 = vsel %vm2408, %v2239, -inf
    %v2676 = vrot.slane %v2675, 4
    %v2677 = vmax.f32 %v2675, %v2676
    %v2678 = vrot.slane %v2677, 2
    %v2679 = vmax.f32 %v2677, %v2678
    %v2680 = vrot.slane %v2679, 1
    %v2681 = vmax.f32 %v2679, %v2680
    %v2682 = vsel %vm2408, %v2241, -inf
    %v2683 = vrot.slane %v2682, 4
    %v2684 = vmax.f32 %v2682, %v2683
    %v2685 = vrot.slane %v2684, 2
    %v2686 = vmax.f32 %v2684, %v2685
    %v2687 = vrot.slane %v2686, 1
    %v2688 = vmax.f32 %v2686, %v2687
    %v2689 = vsel %vm2408, %v2249, -inf
    %v2690 = vrot.slane %v2689, 4
    %v2691 = vmax.f32 %v2689, %v2690
    %v2692 = vrot.slane %v2691, 2
    %v2693 = vmax.f32 %v2691, %v2692
    %v2694 = vrot.slane %v2693, 1
    %v2695 = vmax.f32 %v2693, %v2694
    %v2696 = vsel %vm2408, %v2257, -inf
    %v2697 = vrot.slane %v2696, 4
    %v2698 = vmax.f32 %v2696, %v2697
    %v2699 = vrot.slane %v2698, 2
    %v2700 = vmax.f32 %v2698, %v2699
    %v2701 = vrot.slane %v2700, 1
    %v2702 = vmax.f32 %v2700, %v2701
    %v2703 = vsel %vm2408, %v2256, -inf
    %v2704 = vrot.slane %v2703, 4
    %v2705 = vmax.f32 %v2703, %v2704
    %v2706 = vrot.slane %v2705, 2
    %v2707 = vmax.f32 %v2705, %v2706
    %v2708 = vrot.slane %v2707, 1
    %v2709 = vmax.f32 %v2707, %v2708
    %v2710 = vsel %vm2408, %v2258, -inf
    %v2711 = vrot.slane %v2710, 4
    %v2712 = vmax.f32 %v2710, %v2711
    %v2713 = vrot.slane %v2712, 2
    %v2714 = vmax.f32 %v2712, %v2713
    %v2715 = vrot.slane %v2714, 1
    %v2716 = vmax.f32 %v2714, %v2715
    %v2717 = vsel %vm2408, %v2266, -inf
    %v2718 = vrot.slane %v2717, 4
    %v2719 = vmax.f32 %v2717, %v2718
    %v2720 = vrot.slane %v2719, 2
    %v2721 = vmax.f32 %v2719, %v2720
    %v2722 = vrot.slane %v2721, 1
    %v2723 = vmax.f32 %v2721, %v2722
    %v2724 = vsel %vm2408, %v2274, -inf
    %v2725 = vrot.slane %v2724, 4
    %v2726 = vmax.f32 %v2724, %v2725
    %v2727 = vrot.slane %v2726, 2
    %v2728 = vmax.f32 %v2726, %v2727
    %v2729 = vrot.slane %v2728, 1
    %v2730 = vmax.f32 %v2728, %v2729
    %v2731 = vsel %vm2408, %v2273, -inf
    %v2732 = vrot.slane %v2731, 4
    %v2733 = vmax.f32 %v2731, %v2732
    %v2734 = vrot.slane %v2733, 2
    %v2735 = vmax.f32 %v2733, %v2734
    %v2736 = vrot.slane %v2735, 1
    %v2737 = vmax.f32 %v2735, %v2736
    %v2738 = vsel %vm2408, %v2275, -inf
    %v2739 = vrot.slane %v2738, 4
    %v2740 = vmax.f32 %v2738, %v2739
    %v2741 = vrot.slane %v2740, 2
    %v2742 = vmax.f32 %v2740, %v2741
    %v2743 = vrot.slane %v2742, 1
    %v2744 = vmax.f32 %v2742, %v2743
    %v2745 = vsel %vm2408, %v2283, -inf
    %v2746 = vrot.slane %v2745, 4
    %v2747 = vmax.f32 %v2745, %v2746
    %v2748 = vrot.slane %v2747, 2
    %v2749 = vmax.f32 %v2747, %v2748
    %v2750 = vrot.slane %v2749, 1
    %v2751 = vmax.f32 %v2749, %v2750
    %v2752 = vsel %vm2408, %v2291, -inf
    %v2753 = vrot.slane %v2752, 4
    %v2754 = vmax.f32 %v2752, %v2753
    %v2755 = vrot.slane %v2754, 2
    %v2756 = vmax.f32 %v2754, %v2755
    %v2757 = vrot.slane %v2756, 1
    %v2758 = vmax.f32 %v2756, %v2757
    %v2759 = vsel %vm2408, %v2290, -inf
    %v2760 = vrot.slane %v2759, 4
    %v2761 = vmax.f32 %v2759, %v2760
    %v2762 = vrot.slane %v2761, 2
    %v2763 = vmax.f32 %v2761, %v2762
    %v2764 = vrot.slane %v2763, 1
    %v2765 = vmax.f32 %v2763, %v2764
    %v2766 = vsel %vm2408, %v2292, -inf
    %v2767 = vrot.slane %v2766, 4
    %v2768 = vmax.f32 %v2766, %v2767
    %v2769 = vrot.slane %v2768, 2
    %v2770 = vmax.f32 %v2768, %v2769
    %v2771 = vrot.slane %v2770, 1
    %v2772 = vmax.f32 %v2770, %v2771
    %v2773 = vsel %vm2408, %v2300, -inf
    %v2774 = vrot.slane %v2773, 4
    %v2775 = vmax.f32 %v2773, %v2774
    %v2776 = vrot.slane %v2775, 2
    %v2777 = vmax.f32 %v2775, %v2776
    %v2778 = vrot.slane %v2777, 1
    %v2779 = vmax.f32 %v2777, %v2778
    %v2780 = vsel %vm2408, %v2308, -inf
    %v2781 = vrot.slane %v2780, 4
    %v2782 = vmax.f32 %v2780, %v2781
    %v2783 = vrot.slane %v2782, 2
    %v2784 = vmax.f32 %v2782, %v2783
    %v2785 = vrot.slane %v2784, 1
    %v2786 = vmax.f32 %v2784, %v2785
    %v2787 = vsel %vm2408, %v2307, -inf
    %v2788 = vrot.slane %v2787, 4
    %v2789 = vmax.f32 %v2787, %v2788
    %v2790 = vrot.slane %v2789, 2
    %v2791 = vmax.f32 %v2789, %v2790
    %v2792 = vrot.slane %v2791, 1
    %v2793 = vmax.f32 %v2791, %v2792
    %v2794 = vsel %vm2408, %v2309, -inf
    %v2795 = vrot.slane %v2794, 4
    %v2796 = vmax.f32 %v2794, %v2795
    %v2797 = vrot.slane %v2796, 2
    %v2798 = vmax.f32 %v2796, %v2797
    %v2799 = vrot.slane %v2798, 1
    %v2800 = vmax.f32 %v2798, %v2799
    %v2801 = vsel %vm2408, %v2317, -inf
    %v2802 = vrot.slane %v2801, 4
    %v2803 = vmax.f32 %v2801, %v2802
    %v2804 = vrot.slane %v2803, 2
    %v2805 = vmax.f32 %v2803, %v2804
    %v2806 = vrot.slane %v2805, 1
    %v2807 = vmax.f32 %v2805, %v2806
    %v2808 = vsel %vm2408, %v2325, -inf
    %v2809 = vrot.slane %v2808, 4
    %v2810 = vmax.f32 %v2808, %v2809
    %v2811 = vrot.slane %v2810, 2
    %v2812 = vmax.f32 %v2810, %v2811
    %v2813 = vrot.slane %v2812, 1
    %v2814 = vmax.f32 %v2812, %v2813
    %v2815 = vsel %vm2408, %v2324, -inf
    %v2816 = vrot.slane %v2815, 4
    %v2817 = vmax.f32 %v2815, %v2816
    %v2818 = vrot.slane %v2817, 2
    %v2819 = vmax.f32 %v2817, %v2818
    %v2820 = vrot.slane %v2819, 1
    %v2821 = vmax.f32 %v2819, %v2820
    %v2822 = vsel %vm2408, %v2326, -inf
    %v2823 = vrot.slane %v2822, 4
    %v2824 = vmax.f32 %v2822, %v2823
    %v2825 = vrot.slane %v2824, 2
    %v2826 = vmax.f32 %v2824, %v2825
    %v2827 = vrot.slane %v2826, 1
    %v2828 = vmax.f32 %v2826, %v2827
    %v2829 = vsel %vm2408, %v2334, -inf
    %v2830 = vrot.slane %v2829, 4
    %v2831 = vmax.f32 %v2829, %v2830
    %v2832 = vrot.slane %v2831, 2
    %v2833 = vmax.f32 %v2831, %v2832
    %v2834 = vrot.slane %v2833, 1
    %v2835 = vmax.f32 %v2833, %v2834
    %v2836 = vsel %vm2408, %v2342, -inf
    %v2837 = vrot.slane %v2836, 4
    %v2838 = vmax.f32 %v2836, %v2837
    %v2839 = vrot.slane %v2838, 2
    %v2840 = vmax.f32 %v2838, %v2839
    %v2841 = vrot.slane %v2840, 1
    %v2842 = vmax.f32 %v2840, %v2841
    %v2843 = vsel %vm2408, %v2341, -inf
    %v2844 = vrot.slane %v2843, 4
    %v2845 = vmax.f32 %v2843, %v2844
    %v2846 = vrot.slane %v2845, 2
    %v2847 = vmax.f32 %v2845, %v2846
    %v2848 = vrot.slane %v2847, 1
    %v2849 = vmax.f32 %v2847, %v2848
    %v2850 = vsel %vm2408, %v2343, -inf
    %v2851 = vrot.slane %v2850, 4
    %v2852 = vmax.f32 %v2850, %v2851
    %v2853 = vrot.slane %v2852, 2
    %v2854 = vmax.f32 %v2852, %v2853
    %v2855 = vrot.slane %v2854, 1
    %v2856 = vmax.f32 %v2854, %v2855
    %v2857 = vsel %vm316, %v2415, -inf
    %v2858 = vsel %vm316, %v2443, -inf
    %v2859 = vmax.f32 %v2857, %v2858
    %v2860 = vsel %vm316, %v2422, -inf
    %v2861 = vsel %vm316, %v2450, -inf
    %v2862 = vmax.f32 %v2860, %v2861
    %v2863 = vsel %vm316, %v2429, -inf
    %v2864 = vsel %vm316, %v2457, -inf
    %v2865 = vmax.f32 %v2863, %v2864
    %v2866 = vsel %vm316, %v2436, -inf
    %v2867 = vsel %vm316, %v2464, -inf
    %v2868 = vmax.f32 %v2866, %v2867
    %v2869 = vsel %vm316, %v2471, -inf
    %v2870 = vsel %vm316, %v2499, -inf
    %v2871 = vmax.f32 %v2869, %v2870
    %v2872 = vsel %vm316, %v2478, -inf
    %v2873 = vsel %vm316, %v2506, -inf
    %v2874 = vmax.f32 %v2872, %v2873
    %v2875 = vsel %vm316, %v2485, -inf
    %v2876 = vsel %vm316, %v2513, -inf
    %v2877 = vmax.f32 %v2875, %v2876
    %v2878 = vsel %vm316, %v2492, -inf
    %v2879 = vsel %vm316, %v2520, -inf
    %v2880 = vmax.f32 %v2878, %v2879
    %v2881 = vsel %vm316, %v2527, -inf
    %v2882 = vsel %vm316, %v2555, -inf
    %v2883 = vmax.f32 %v2881, %v2882
    %v2884 = vsel %vm316, %v2534, -inf
    %v2885 = vsel %vm316, %v2562, -inf
    %v2886 = vmax.f32 %v2884, %v2885
    %v2887 = vsel %vm316, %v2541, -inf
    %v2888 = vsel %vm316, %v2569, -inf
    %v2889 = vmax.f32 %v2887, %v2888
    %v2890 = vsel %vm316, %v2548, -inf
    %v2891 = vsel %vm316, %v2576, -inf
    %v2892 = vmax.f32 %v2890, %v2891
    %v2893 = vsel %vm316, %v2583, -inf
    %v2894 = vsel %vm316, %v2611, -inf
    %v2895 = vmax.f32 %v2893, %v2894
    %v2896 = vsel %vm316, %v2590, -inf
    %v2897 = vsel %vm316, %v2618, -inf
    %v2898 = vmax.f32 %v2896, %v2897
    %v2899 = vsel %vm316, %v2597, -inf
    %v2900 = vsel %vm316, %v2625, -inf
    %v2901 = vmax.f32 %v2899, %v2900
    %v2902 = vsel %vm316, %v2604, -inf
    %v2903 = vsel %vm316, %v2632, -inf
    %v2904 = vmax.f32 %v2902, %v2903
    %v2905 = vsel %vm316, %v2639, -inf
    %v2906 = vsel %vm316, %v2667, -inf
    %v2907 = vmax.f32 %v2905, %v2906
    %v2908 = vsel %vm316, %v2646, -inf
    %v2909 = vsel %vm316, %v2674, -inf
    %v2910 = vmax.f32 %v2908, %v2909
    %v2911 = vsel %vm316, %v2653, -inf
    %v2912 = vsel %vm316, %v2681, -inf
    %v2913 = vmax.f32 %v2911, %v2912
    %v2914 = vsel %vm316, %v2660, -inf
    %v2915 = vsel %vm316, %v2688, -inf
    %v2916 = vmax.f32 %v2914, %v2915
    %v2917 = vsel %vm316, %v2695, -inf
    %v2918 = vsel %vm316, %v2723, -inf
    %v2919 = vmax.f32 %v2917, %v2918
    %v2920 = vsel %vm316, %v2702, -inf
    %v2921 = vsel %vm316, %v2730, -inf
    %v2922 = vmax.f32 %v2920, %v2921
    %v2923 = vsel %vm316, %v2709, -inf
    %v2924 = vsel %vm316, %v2737, -inf
    %v2925 = vmax.f32 %v2923, %v2924
    %v2926 = vsel %vm316, %v2716, -inf
    %v2927 = vsel %vm316, %v2744, -inf
    %v2928 = vmax.f32 %v2926, %v2927
    %v2929 = vsel %vm316, %v2751, -inf
    %v2930 = vsel %vm316, %v2779, -inf
    %v2931 = vmax.f32 %v2929, %v2930
    %v2932 = vsel %vm316, %v2758, -inf
    %v2933 = vsel %vm316, %v2786, -inf
    %v2934 = vmax.f32 %v2932, %v2933
    %v2935 = vsel %vm316, %v2765, -inf
    %v2936 = vsel %vm316, %v2793, -inf
    %v2937 = vmax.f32 %v2935, %v2936
    %v2938 = vsel %vm316, %v2772, -inf
    %v2939 = vsel %vm316, %v2800, -inf
    %v2940 = vmax.f32 %v2938, %v2939
    %v2941 = vsel %vm316, %v2807, -inf
    %v2942 = vsel %vm316, %v2835, -inf
    %v2943 = vmax.f32 %v2941, %v2942
    %v2944 = vsel %vm316, %v2814, -inf
    %v2945 = vsel %vm316, %v2842, -inf
    %v2946 = vmax.f32 %v2944, %v2945
    %v2947 = vsel %vm316, %v2821, -inf
    %v2948 = vsel %vm316, %v2849, -inf
    %v2949 = vmax.f32 %v2947, %v2948
    %v2950 = vsel %vm316, %v2828, -inf
    %v2951 = vsel %vm316, %v2856, -inf
    %v2952 = vmax.f32 %v2950, %v2951
    %vm2977 = vcmask 1042434
    %v2978 = vsel %vm2977, %v2862, %v2859
    %vm2979 = vcmask 1043459
    %v2980 = vsel %vm2979, %v2865, %v2978
    %v2981 = vsel %vm2977, %v2874, %v2871
    %v2982 = vsel %vm2979, %v2877, %v2981
    %v2983 = vsel %vm2977, %v2886, %v2883
    %v2984 = vsel %vm2979, %v2889, %v2983
    %v2985 = vsel %vm2977, %v2898, %v2895
    %v2986 = vsel %vm2979, %v2901, %v2985
    %v2987 = vsel %vm2977, %v2910, %v2907
    %v2988 = vsel %vm2979, %v2913, %v2987
    %v2989 = vsel %vm2977, %v2922, %v2919
    %v2990 = vsel %vm2979, %v2925, %v2989
    %v2991 = vsel %vm2977, %v2934, %v2931
    %v2992 = vsel %vm2979, %v2937, %v2991
    %v2993 = vsel %vm2977, %v2946, %v2943
    %v2994 = vsel %vm2979, %v2949, %v2993
    %v3003 = vsel %vm121, %v2868, %v2980
    %v3004 = vsel %vm121, %v2880, %v2982
    %v3005 = vsel %vm121, %v2892, %v2984
    %v3006 = vsel %vm121, %v2904, %v2986
    %v3007 = vsel %vm121, %v2916, %v2988
    %v3008 = vsel %vm121, %v2928, %v2990
    %v3009 = vsel %vm121, %v2940, %v2992
    %v3010 = vsel %vm121, %v2952, %v2994
    %vm3019 = vcmask 1041409
    %v3020 = vsel %vm3019, %v2865, %v2862
    %v3021 = vsel %vm2977, %v2868, %v3020
    %v3022 = vsel %vm3019, %v2877, %v2874
    %v3023 = vsel %vm2977, %v2880, %v3022
    %v3024 = vsel %vm3019, %v2889, %v2886
    %v3025 = vsel %vm2977, %v2892, %v3024
    %v3026 = vsel %vm3019, %v2901, %v2898
    %v3027 = vsel %vm2977, %v2904, %v3026
    %v3028 = vsel %vm3019, %v2913, %v2910
    %v3029 = vsel %vm2977, %v2916, %v3028
    %v3030 = vsel %vm3019, %v2925, %v2922
    %v3031 = vsel %vm2977, %v2928, %v3030
    %v3032 = vsel %vm3019, %v2937, %v2934
    %v3033 = vsel %vm2977, %v2940, %v3032
    %v3034 = vsel %vm3019, %v2949, %v2946
    %v3035 = vsel %vm2977, %v2952, %v3034
    %v3044 = vsel %vm539, %v3021, %v2859
    %v3045 = vsel %vm539, %v3023, %v2871
    %v3046 = vsel %vm539, %v3025, %v2883
    %v3047 = vsel %vm539, %v3027, %v2895
    %v3048 = vsel %vm539, %v3029, %v2907
    %v3049 = vsel %vm539, %v3031, %v2919
    %v3050 = vsel %vm539, %v3033, %v2931
    %v3051 = vsel %vm539, %v3035, %v2943
    %v3052 = vsel %vm3019, %v2862, %v2859
    %v3053 = vsel %vm2977, %v2865, %v3052
    %v3054 = vsel %vm2979, %v2868, %v3053
    %v3055 = vsel %vm3019, %v2874, %v2871
    %v3056 = vsel %vm2977, %v2877, %v3055
    %v3057 = vsel %vm2979, %v2880, %v3056
    %v3058 = vsel %vm3019, %v2886, %v2883
    %v3059 = vsel %vm2977, %v2889, %v3058
    %v3060 = vsel %vm2979, %v2892, %v3059
    %v3061 = vsel %vm3019, %v2898, %v2895
    %v3062 = vsel %vm2977, %v2901, %v3061
    %v3063 = vsel %vm2979, %v2904, %v3062
    %v3064 = vsel %vm3019, %v2910, %v2907
    %v3065 = vsel %vm2977, %v2913, %v3064
    %v3066 = vsel %vm2979, %v2916, %v3065
    %v3067 = vsel %vm3019, %v2922, %v2919
    %v3068 = vsel %vm2977, %v2925, %v3067
    %v3069 = vsel %vm2979, %v2928, %v3068
    %v3070 = vsel %vm3019, %v2934, %v2931
    %v3071 = vsel %vm2977, %v2937, %v3070
    %v3072 = vsel %vm2979, %v2940, %v3071
    %v3073 = vsel %vm3019, %v2946, %v2943
    %v3074 = vsel %vm2977, %v2949, %v3073
    %v3075 = vsel %vm2979, %v2952, %v3074
    %3076 = vrot.lane.b32.xlu0 %v3054, 6
    %v3077 = vpop.permute.xlu0 %3076
    %3078 = vrot.lane.b32.xlu0 %v3057, 6
    %v3079 = vpop.permute.xlu0 %3078
    %3080 = vrot.lane.b32.xlu0 %v3060, 6
    %v3081 = vpop.permute.xlu0 %3080
    %3082 = vrot.lane.b32.xlu0 %v3063, 6
    %v3083 = vpop.permute.xlu0 %3082
    %3084 = vrot.lane.b32.xlu0 %v3066, 6
    %v3085 = vpop.permute.xlu0 %3084
    %3086 = vrot.lane.b32.xlu0 %v3069, 6
    %v3087 = vpop.permute.xlu0 %3086
    %3088 = vrot.lane.b32.xlu0 %v3072, 6
    %v3089 = vpop.permute.xlu0 %3088
    %3090 = vrot.lane.b32.xlu0 %v3075, 6
    %v3091 = vpop.permute.xlu0 %3090
    %3108 = vrot.lane.b32.xlu0 %v3044, 12
    %v3109 = vpop.permute.xlu0 %3108
    %3110 = vrot.lane.b32.xlu0 %v3045, 12
    %v3111 = vpop.permute.xlu0 %3110
    %3112 = vrot.lane.b32.xlu0 %v3046, 12
    %v3113 = vpop.permute.xlu0 %3112
    %3114 = vrot.lane.b32.xlu0 %v3047, 12
    %v3115 = vpop.permute.xlu0 %3114
    %3116 = vrot.lane.b32.xlu0 %v3048, 12
    %v3117 = vpop.permute.xlu0 %3116
    %3118 = vrot.lane.b32.xlu0 %v3049, 12
    %v3119 = vpop.permute.xlu0 %3118
    %3120 = vrot.lane.b32.xlu0 %v3050, 12
    %v3121 = vpop.permute.xlu0 %3120
    %3122 = vrot.lane.b32.xlu0 %v3051, 12
    %v3123 = vpop.permute.xlu0 %3122
    %v3132 = vsel %vm316, %v3003, %v3077
    %v3133 = vsel %vm316, %v3004, %v3079
    %v3134 = vsel %vm316, %v3005, %v3081
    %v3135 = vsel %vm316, %v3006, %v3083
    %v3136 = vsel %vm316, %v3007, %v3085
    %v3137 = vsel %vm316, %v3008, %v3087
    %v3138 = vsel %vm316, %v3009, %v3089
    %v3139 = vsel %vm316, %v3010, %v3091
    %v3140 = vsel %vm976, %v3132, %v3109
    %v3141 = vsel %vm976, %v3133, %v3111
    %v3142 = vsel %vm976, %v3134, %v3113
    %v3143 = vsel %vm976, %v3135, %v3115
    %v3144 = vsel %vm976, %v3136, %v3117
    %v3145 = vsel %vm976, %v3137, %v3119
    %v3146 = vsel %vm976, %v3138, %v3121
    %v3147 = vsel %vm976, %v3139, %v3123
    %3156 = vrot.lane.b32.xlu0 %v3140, 18
    %v3157 = vpop.permute.xlu0 %3156
    %3158 = vrot.lane.b32.xlu0 %v3141, 18
    %v3159 = vpop.permute.xlu0 %3158
    %3160 = vrot.lane.b32.xlu0 %v3142, 18
    %v3161 = vpop.permute.xlu0 %3160
    %3162 = vrot.lane.b32.xlu0 %v3143, 18
    %v3163 = vpop.permute.xlu0 %3162
    %3164 = vrot.lane.b32.xlu0 %v3144, 18
    %v3165 = vpop.permute.xlu0 %3164
    %3166 = vrot.lane.b32.xlu0 %v3145, 18
    %v3167 = vpop.permute.xlu0 %3166
    %3168 = vrot.lane.b32.xlu0 %v3146, 18
    %v3169 = vpop.permute.xlu0 %3168
    %3170 = vrot.lane.b32.xlu0 %v3147, 18
    %v3171 = vpop.permute.xlu0 %3170
    %3180 = vrot.lane.b32.xlu0 %v3141, 36
    %v3181 = vpop.permute.xlu0 %3180
    %3182 = vrot.lane.b32.xlu0 %v3142, 36
    %v3183 = vpop.permute.xlu0 %3182
    %3184 = vrot.lane.b32.xlu0 %v3143, 36
    %v3185 = vpop.permute.xlu0 %3184
    %3186 = vrot.lane.b32.xlu0 %v3140, 36
    %v3187 = vpop.permute.xlu0 %3186
    %3188 = vrot.lane.b32.xlu0 %v3145, 36
    %v3189 = vpop.permute.xlu0 %3188
    %3190 = vrot.lane.b32.xlu0 %v3146, 36
    %v3191 = vpop.permute.xlu0 %3190
    %3192 = vrot.lane.b32.xlu0 %v3147, 36
    %v3193 = vpop.permute.xlu0 %3192
    %3194 = vrot.lane.b32.xlu0 %v3144, 36
    %v3195 = vpop.permute.xlu0 %3194
    %v3204 = vsel %vm462, %v3143, %v3157
    %v3205 = vsel %vm462, %v3140, %v3159
    %v3206 = vsel %vm462, %v3141, %v3161
    %v3207 = vsel %vm462, %v3142, %v3163
    %v3208 = vsel %vm462, %v3147, %v3165
    %v3209 = vsel %vm462, %v3144, %v3167
    %v3210 = vsel %vm462, %v3145, %v3169
    %v3211 = vsel %vm462, %v3146, %v3171
    %v3212 = vsel %vm1121, %v3204, %v3181
    %v3213 = vsel %vm1121, %v3205, %v3183
    %v3214 = vsel %vm1121, %v3206, %v3185
    %v3215 = vsel %vm1121, %v3207, %v3187
    %v3216 = vsel %vm1121, %v3208, %v3189
    %v3217 = vsel %vm1121, %v3209, %v3191
    %v3218 = vsel %vm1121, %v3210, %v3193
    %v3219 = vsel %vm1121, %v3211, %v3195
    %v3220 = vld [vmem:[%s7] sm:$0xff]
    %v3221 = vld [vmem:[%s7 + $0x8] sm:$0xff]
    %v3222 = vld [vmem:[%s7 + $0x10] sm:$0xff]
    %v3223 = vld [vmem:[%s7 + $0x18] sm:$0xff]
    %v3224 = vld [vmem:[%s7 + $0x20] sm:$0xff]
    %v3225 = vld [vmem:[%s7 + $0x28] sm:$0xff]
    %v3226 = vld [vmem:[%s7 + $0x30] sm:$0x3f]
    %v3227 = vld [vmem:[%s8] sm:$0x1]
    %v3229 = vlaneseq
    %v3230 = vshrl.u32 %v3229, 7
    %v3231 = vsub.s32 0, %v3230
    %v3232 = vrot.slane %v3227, %v3231
    %v3242 = vcombine.low %v3212, %v3213
    %v3243 = vcombine.low %v3214, %v3215
    %v3244 = vcombine.low %v3216, %v3217
    %v3245 = vcombine.low %v3218, %v3219
    %v3246 = vsel %vm1152, %v3242, 0
    %v3248 = vsel %vm1152, %v3243, 0
    %v3250 = vsel %vm1152, %v3244, 0
    %v3252 = vsel %vm1152, %v3245, 0
    %v3255 = vsel %vm1201, %v3226, 0
    %3257 = vmatprep.subr.mxu0 0.0
    %3258 = vmatpush1.msra.mxu0 0.0
    %3259 = vmatprep.subr.mxu0 0.0
    %3260 = vmatpush1.msra.mxu0 0.0
    %3261 = vmatprep.subr.mxu0 0.0
    %3262 = vmatpush1.msra.mxu0 0.0
    %3263 = vmatprep.subr.mxu0 0.0
    %3264 = vmatpush1.msra.mxu0 0.0
    %3265 = vmatprep.subr.mxu0 0.0
    %3266 = vmatpush1.msra.mxu0 0.0
    %3267 = vmatprep.subr.mxu0 0.0
    %3268 = vmatpush1.msra.mxu0 0.0
    %3269 = vmatprep.subr.mxu0 0.0
    %3270 = vmatpush1.msra.mxu0 0.0
    %3271 = vmatprep.subr.mxu0 0.0
    %3272 = vmatpush1.msra.mxu0 0.0
    %3273 = vmatprep.subr.mxu0 0.0
    %3274 = vmatpush1.msra.mxu0 0.0
    %3275 = vmatprep.subr.mxu0 0.0
    %3276 = vmatpush1.msra.mxu0 %v3255
    %3277 = vmatprep.subr.mxu0 0.0
    %3278 = vmatpush1.msra.mxu0 %v3225
    %3279 = vmatprep.subr.mxu0 0.0
    %3280 = vmatpush1.msra.mxu0 %v3224
    %3281 = vmatprep.subr.mxu0 0.0
    %3282 = vmatpush1.msra.mxu0 %v3223
    %3283 = vmatprep.subr.mxu0 0.0
    %3284 = vmatpush1.msra.mxu0 %v3222
    %3285 = vmatprep.subr.mxu0 0.0
    %3286 = vmatpush1.msra.mxu0 %v3221
    %3287 = vmatprep.subr.mxu0 0.0
    %3288 = vmatpush1.msra.mxu0 %v3220
    %3289 = vmatprep.subr.mxu0 0.0
    %3290 = vmatpush2.msra.mxu0 0.0
    %3291 = vmatprep.subr.mxu0 0.0
    %3292 = vmatpush2.msra.mxu0 0.0
    %3293 = vmatprep.subr.mxu0 0.0
    %3294 = vmatpush2.msra.mxu0 0.0
    %3295 = vmatprep.subr.mxu0 0.0
    %3296 = vmatpush2.msra.mxu0 0.0
    %3297 = vmatprep.subr.mxu0 0.0
    %3298 = vmatpush2.msra.mxu0 0.0
    %3299 = vmatprep.subr.mxu0 0.0
    %3300 = vmatpush2.msra.mxu0 0.0
    %3301 = vmatprep.subr.mxu0 0.0
    %3302 = vmatpush2.msra.mxu0 0.0
    %3303 = vmatprep.subr.mxu0 0.0
    %3304 = vmatpush2.msra.mxu0 0.0
    %3305 = vmatprep.subr.mxu0 0.0
    %3306 = vmatpush2.msra.mxu0 0.0
    %3307 = vmatprep.subr.mxu0 0.0
    %3308 = vmatpush2.msra.mxu0 0.0
    %3309 = vmatprep.subr.mxu0 0.0
    %3310 = vmatpush2.msra.mxu0 0.0
    %3311 = vmatprep.subr.mxu0 0.0
    %3312 = vmatpush2.msra.mxu0 0.0
    %3313 = vmatprep.subr.mxu0 0.0
    %3314 = vmatpush2.msra.mxu0 0.0
    %3315 = vmatprep.subr.mxu0 0.0
    %3316 = vmatpush2.msra.mxu0 0.0
    %3317 = vmatprep.subr.mxu0 0.0
    %3318 = vmatpush2.msra.mxu0 0.0
    %3319 = vmatprep.subr.mxu0 0.0
    %3320 = vmatpush2.msra.mxu0 0.0
    %3321 = vmatprep.mubr.f32.mxu0 0.0
    %3322 = vmatmul.mubr.f32.gmra.mxu0 %v3246
    %v3323 = vpop.f32.mrf.mxu0
    %v3324 = vadd.f32 %v3232, %v3323
    %v3325 = vpop.f32.mrf.mxu0
    %3326 = vmatprep.mubr.f32.mxu0 0.0
    %3327 = vmatmul.mubr.f32.gmra.mxu0 %v3248
    %v3328 = vpop.f32.mrf.mxu0
    %v3329 = vadd.f32 %v3232, %v3328
    %v3330 = vpop.f32.mrf.mxu0
    %3331 = vmatprep.mubr.f32.mxu0 0.0
    %3332 = vmatmul.mubr.f32.gmra.mxu0 %v3250
    %v3333 = vpop.f32.mrf.mxu0
    %v3334 = vadd.f32 %v3232, %v3333
    %v3335 = vpop.f32.mrf.mxu0
    %3336 = vmatprep.mubr.f32.mxu0 0.0
    %3337 = vmatmul.mubr.f32.gmra.mxu0 %v3252
    %v3338 = vpop.f32.mrf.mxu0
    %v3339 = vadd.f32 %v3232, %v3338
    %v3340 = vpop.f32.mrf.mxu0
    %3341 = vdwg.mxu0
    %vm3342 = vcmp.gt.f32.partialorder %v3324, 0.0
    %vm3343 = vcmp.gt.f32.partialorder %v3329, 0.0
    %vm3344 = vcmp.gt.f32.partialorder %v3334, 0.0
    %vm3345 = vcmp.gt.f32.partialorder %v3339, 0.0
    %v3346 = vmul.f32 %v3324, 0.01
    %v3347 = vmul.f32 %v3329, 0.01
    %v3348 = vmul.f32 %v3334, 0.01
    %v3349 = vmul.f32 %v3339, 0.01
    %v3350 = vsel %vm3342, %v3324, %v3346
    %v3351 = vsel %vm3343, %v3329, %v3347
    %v3352 = vsel %vm3344, %v3334, %v3348
    %v3353 = vsel %vm3345, %v3339, %v3349
    %v3358 = vcombine.high %v3350, %v3350
    %v3359 = vcombine.high %v3351, %v3351
    %v3360 = vcombine.high %v3352, %v3352
    %v3361 = vcombine.high %v3353, %v3353
    %v3362 = vlaneseq
    %v3363 = vshrl.u32 %v3362, 7
    %v3364 = vsub.s32 3, %v3363
    %v3365 = vrot.slane %v3350, %v3364
    %v3366 = vlaneseq
    %v3367 = vshrl.u32 %v3366, 7
    %v3368 = vsub.s32 3, %v3367
    %v3369 = vrot.slane %v3358, %v3368
    %v3370 = vlaneseq
    %v3371 = vshrl.u32 %v3370, 7
    %v3372 = vsub.s32 3, %v3371
    %v3373 = vrot.slane %v3351, %v3372
    %v3374 = vlaneseq
    %v3375 = vshrl.u32 %v3374, 7
    %v3376 = vsub.s32 3, %v3375
    %v3377 = vrot.slane %v3359, %v3376
    %v3378 = vlaneseq
    %v3379 = vshrl.u32 %v3378, 7
    %v3380 = vsub.s32 3, %v3379
    %v3381 = vrot.slane %v3352, %v3380
    %v3382 = vlaneseq
    %v3383 = vshrl.u32 %v3382, 7
    %v3384 = vsub.s32 3, %v3383
    %v3385 = vrot.slane %v3360, %v3384
    %v3386 = vlaneseq
    %v3387 = vshrl.u32 %v3386, 7
    %v3388 = vsub.s32 3, %v3387
    %v3389 = vrot.slane %v3353, %v3388
    %v3390 = vlaneseq
    %v3391 = vshrl.u32 %v3390, 7
    %v3392 = vsub.s32 3, %v3391
    %v3393 = vrot.slane %v3361, %v3392
    %v3402 = vrot.slane %v3350, 7
    %v3403 = vrot.slane %v3358, 7
    %v3404 = vrot.slane %v3351, 7
    %v3405 = vrot.slane %v3359, 7
    %v3406 = vrot.slane %v3352, 7
    %v3407 = vrot.slane %v3360, 7
    %v3408 = vrot.slane %v3353, 7
    %v3409 = vrot.slane %v3361, 7
    %v3418 = vsel %vm121, %v3365, %v3402
    %v3419 = vsel %vm121, %v3369, %v3403
    %v3420 = vsel %vm121, %v3373, %v3404
    %v3421 = vsel %vm121, %v3377, %v3405
    %v3422 = vsel %vm121, %v3381, %v3406
    %v3423 = vsel %vm121, %v3385, %v3407
    %v3424 = vsel %vm121, %v3389, %v3408
    %v3425 = vsel %vm121, %v3393, %v3409
    %v3426 = vrot.slane %v3350, 1
    %v3427 = vrot.slane %v3358, 1
    %v3428 = vrot.slane %v3351, 1
    %v3429 = vrot.slane %v3359, 1
    %v3430 = vrot.slane %v3352, 1
    %v3431 = vrot.slane %v3360, 1
    %v3432 = vrot.slane %v3353, 1
    %v3433 = vrot.slane %v3361, 1
    %v3442 = vlaneseq
    %v3443 = vshrl.u32 %v3442, 7
    %v3444 = vsub.s32 0, %v3443
    %v3445 = vrot.slane %v3350, %v3444
    %v3446 = vlaneseq
    %v3447 = vshrl.u32 %v3446, 7
    %v3448 = vsub.s32 0, %v3447
    %v3449 = vrot.slane %v3358, %v3448
    %v3450 = vlaneseq
    %v3451 = vshrl.u32 %v3450, 7
    %v3452 = vsub.s32 0, %v3451
    %v3453 = vrot.slane %v3351, %v3452
    %v3454 = vlaneseq
    %v3455 = vshrl.u32 %v3454, 7
    %v3456 = vsub.s32 0, %v3455
    %v3457 = vrot.slane %v3359, %v3456
    %v3458 = vlaneseq
    %v3459 = vshrl.u32 %v3458, 7
    %v3460 = vsub.s32 0, %v3459
    %v3461 = vrot.slane %v3352, %v3460
    %v3462 = vlaneseq
    %v3463 = vshrl.u32 %v3462, 7
    %v3464 = vsub.s32 0, %v3463
    %v3465 = vrot.slane %v3360, %v3464
    %v3466 = vlaneseq
    %v3467 = vshrl.u32 %v3466, 7
    %v3468 = vsub.s32 0, %v3467
    %v3469 = vrot.slane %v3353, %v3468
    %v3470 = vlaneseq
    %v3471 = vshrl.u32 %v3470, 7
    %v3472 = vsub.s32 0, %v3471
    %v3473 = vrot.slane %v3361, %v3472
    %v3482 = vsel %vm539, %v3426, %v3445
    %v3483 = vsel %vm539, %v3427, %v3449
    %v3484 = vsel %vm539, %v3428, %v3453
    %v3485 = vsel %vm539, %v3429, %v3457
    %v3486 = vsel %vm539, %v3430, %v3461
    %v3487 = vsel %vm539, %v3431, %v3465
    %v3488 = vsel %vm539, %v3432, %v3469
    %v3489 = vsel %vm539, %v3433, %v3473
    %3490 = vrot.lane.b32.xlu0 %v3350, 12
    %v3491 = vpop.permute.xlu0 %3490
    %3492 = vrot.lane.b32.xlu0 %v3358, 12
    %v3493 = vpop.permute.xlu0 %3492
    %3494 = vrot.lane.b32.xlu0 %v3351, 12
    %v3495 = vpop.permute.xlu0 %3494
    %3496 = vrot.lane.b32.xlu0 %v3359, 12
    %v3497 = vpop.permute.xlu0 %3496
    %3498 = vrot.lane.b32.xlu0 %v3352, 12
    %v3499 = vpop.permute.xlu0 %3498
    %3500 = vrot.lane.b32.xlu0 %v3360, 12
    %v3501 = vpop.permute.xlu0 %3500
    %3502 = vrot.lane.b32.xlu0 %v3353, 12
    %v3503 = vpop.permute.xlu0 %3502
    %3504 = vrot.lane.b32.xlu0 %v3361, 12
    %v3505 = vpop.permute.xlu0 %3504
    %3522 = vrot.lane.b32.xlu0 %v3482, 24
    %v3523 = vpop.permute.xlu0 %3522
    %3524 = vrot.lane.b32.xlu0 %v3483, 24
    %v3525 = vpop.permute.xlu0 %3524
    %3526 = vrot.lane.b32.xlu0 %v3484, 24
    %v3527 = vpop.permute.xlu0 %3526
    %3528 = vrot.lane.b32.xlu0 %v3485, 24
    %v3529 = vpop.permute.xlu0 %3528
    %3530 = vrot.lane.b32.xlu0 %v3486, 24
    %v3531 = vpop.permute.xlu0 %3530
    %3532 = vrot.lane.b32.xlu0 %v3487, 24
    %v3533 = vpop.permute.xlu0 %3532
    %3534 = vrot.lane.b32.xlu0 %v3488, 24
    %v3535 = vpop.permute.xlu0 %3534
    %3536 = vrot.lane.b32.xlu0 %v3489, 24
    %v3537 = vpop.permute.xlu0 %3536
    %v3546 = vsel %vm976, %v3418, %v3491
    %v3547 = vsel %vm976, %v3419, %v3493
    %v3548 = vsel %vm976, %v3420, %v3495
    %v3549 = vsel %vm976, %v3421, %v3497
    %v3550 = vsel %vm976, %v3422, %v3499
    %v3551 = vsel %vm976, %v3423, %v3501
    %v3552 = vsel %vm976, %v3424, %v3503
    %v3553 = vsel %vm976, %v3425, %v3505
    %vm3554 = vcmask 195584
    %v3555 = vsel %vm3554, %v3546, %v3523
    %v3556 = vsel %vm3554, %v3547, %v3525
    %v3557 = vsel %vm3554, %v3548, %v3527
    %v3558 = vsel %vm3554, %v3549, %v3529
    %v3559 = vsel %vm3554, %v3550, %v3531
    %v3560 = vsel %vm3554, %v3551, %v3533
    %v3561 = vsel %vm3554, %v3552, %v3535
    %v3562 = vsel %vm3554, %v3553, %v3537
    %3571 = vrot.lane.b32.xlu0 %v3555, 36
    %v3572 = vpop.permute.xlu0 %3571
    %3573 = vrot.lane.b32.xlu0 %v3556, 36
    %v3574 = vpop.permute.xlu0 %3573
    %3575 = vrot.lane.b32.xlu0 %v3557, 36
    %v3576 = vpop.permute.xlu0 %3575
    %3577 = vrot.lane.b32.xlu0 %v3558, 36
    %v3578 = vpop.permute.xlu0 %3577
    %3579 = vrot.lane.b32.xlu0 %v3559, 36
    %v3580 = vpop.permute.xlu0 %3579
    %3581 = vrot.lane.b32.xlu0 %v3560, 36
    %v3582 = vpop.permute.xlu0 %3581
    %3583 = vrot.lane.b32.xlu0 %v3561, 36
    %v3584 = vpop.permute.xlu0 %3583
    %3585 = vrot.lane.b32.xlu0 %v3562, 36
    %v3586 = vpop.permute.xlu0 %3585
    %3595 = vrot.lane.b32.xlu0 %v3556, 72
    %v3596 = vpop.permute.xlu0 %3595
    %3597 = vrot.lane.b32.xlu0 %v3557, 72
    %v3598 = vpop.permute.xlu0 %3597
    %3599 = vrot.lane.b32.xlu0 %v3558, 72
    %v3600 = vpop.permute.xlu0 %3599
    %3601 = vrot.lane.b32.xlu0 %v3555, 72
    %v3602 = vpop.permute.xlu0 %3601
    %3603 = vrot.lane.b32.xlu0 %v3560, 72
    %v3604 = vpop.permute.xlu0 %3603
    %3605 = vrot.lane.b32.xlu0 %v3561, 72
    %v3606 = vpop.permute.xlu0 %3605
    %3607 = vrot.lane.b32.xlu0 %v3562, 72
    %v3608 = vpop.permute.xlu0 %3607
    %3609 = vrot.lane.b32.xlu0 %v3559, 72
    %v3610 = vpop.permute.xlu0 %3609
    %v3619 = vsel %vm1121, %v3558, %v3572
    %v3620 = vsel %vm1121, %v3555, %v3574
    %v3621 = vsel %vm1121, %v3556, %v3576
    %v3622 = vsel %vm1121, %v3557, %v3578
    %v3623 = vsel %vm1121, %v3562, %v3580
    %v3624 = vsel %vm1121, %v3559, %v3582
    %v3625 = vsel %vm1121, %v3560, %v3584
    %v3626 = vsel %vm1121, %v3561, %v3586
    %vm3627 = vcmask 588800
    %v3628 = vsel %vm3627, %v3619, %v3596
    %v3629 = vsel %vm3627, %v3620, %v3598
    %v3630 = vsel %vm3627, %v3621, %v3600
    %v3631 = vsel %vm3627, %v3622, %v3602
    %v3632 = vsel %vm3627, %v3623, %v3604
    %v3633 = vsel %vm3627, %v3624, %v3606
    %v3634 = vsel %vm3627, %v3625, %v3608
    %v3635 = vsel %vm3627, %v3626, %v3610
    %v3636 = vld [vmem:[%s9] sm:$0xff]
    %v3637 = vld [vmem:[%s9 + $0x8] sm:$0xff]
    %v3638 = vld [vmem:[%s9 + $0x10] sm:$0xff]
    %v3639 = vld [vmem:[%s9 + $0x18] sm:$0xff]
    %v3640 = vld [vmem:[%s9 + $0x20] sm:$0xff]
    %v3641 = vld [vmem:[%s9 + $0x28] sm:$0xff]
    %v3642 = vld [vmem:[%s9 + $0x30] sm:$0xff]
    %v3643 = vld [vmem:[%s9 + $0x38] sm:$0xff]
    %v3644 = vld [vmem:[%s9 + $0x40] sm:$0xff]
    %v3645 = vld [vmem:[%s9 + $0x48] sm:$0xff]
    %v3646 = vld [vmem:[%s9 + $0x50] sm:$0xff]
    %v3647 = vld [vmem:[%s9 + $0x58] sm:$0xff]
    %v3648 = vld [vmem:[%s9 + $0x60] sm:$0xff]
    %v3649 = vld [vmem:[%s9 + $0x68] sm:$0xf]
    %v3650 = vld [vmem:[%s10] sm:$0x1]
    %v3652 = vlaneseq
    %v3653 = vshrl.u32 %v3652, 7
    %v3654 = vsub.s32 0, %v3653
    %v3655 = vrot.slane %v3650, %v3654
    %v3665 = vcombine.low %v3628, %v3629
    %v3666 = vcombine.low %v3630, %v3631
    %v3667 = vcombine.low %v3632, %v3633
    %v3668 = vcombine.low %v3634, %v3635
    %vm3669 = vcmask 883712
    %v3670 = vsel %vm3669, %v3665, 0
    %v3672 = vsel %vm3669, %v3666, 0
    %v3674 = vsel %vm3669, %v3667, 0
    %v3676 = vsel %vm3669, %v3668, 0
    %vm3678 = vcmask 1043456
    %v3680 = vsel %vm3678, %v3649, 0
    %3682 = vmatprep.subr.mxu0 0.0
    %3683 = vmatpush1.msra.mxu0 0.0
    %3684 = vmatprep.subr.mxu0 0.0
    %3685 = vmatpush1.msra.mxu0 0.0
    %3686 = vmatprep.subr.mxu0 0.0
    %3687 = vmatpush1.msra.mxu0 %v3680
    %3688 = vmatprep.subr.mxu0 0.0
    %3689 = vmatpush1.msra.mxu0 %v3648
    %3690 = vmatprep.subr.mxu0 0.0
    %3691 = vmatpush1.msra.mxu0 %v3647
    %3692 = vmatprep.subr.mxu0 0.0
    %3693 = vmatpush1.msra.mxu0 %v3646
    %3694 = vmatprep.subr.mxu0 0.0
    %3695 = vmatpush1.msra.mxu0 %v3645
    %3696 = vmatprep.subr.mxu0 0.0
    %3697 = vmatpush1.msra.mxu0 %v3644
    %3698 = vmatprep.subr.mxu0 0.0
    %3699 = vmatpush1.msra.mxu0 %v3643
    %3700 = vmatprep.subr.mxu0 0.0
    %3701 = vmatpush1.msra.mxu0 %v3642
    %3702 = vmatprep.subr.mxu0 0.0
    %3703 = vmatpush1.msra.mxu0 %v3641
    %3704 = vmatprep.subr.mxu0 0.0
    %3705 = vmatpush1.msra.mxu0 %v3640
    %3706 = vmatprep.subr.mxu0 0.0
    %3707 = vmatpush1.msra.mxu0 %v3639
    %3708 = vmatprep.subr.mxu0 0.0
    %3709 = vmatpush1.msra.mxu0 %v3638
    %3710 = vmatprep.subr.mxu0 0.0
    %3711 = vmatpush1.msra.mxu0 %v3637
    %3712 = vmatprep.subr.mxu0 0.0
    %3713 = vmatpush1.msra.mxu0 %v3636
    %3714 = vmatprep.subr.mxu0 0.0
    %3715 = vmatpush2.msra.mxu0 0.0
    %3716 = vmatprep.subr.mxu0 0.0
    %3717 = vmatpush2.msra.mxu0 0.0
    %3718 = vmatprep.subr.mxu0 0.0
    %3719 = vmatpush2.msra.mxu0 0.0
    %3720 = vmatprep.subr.mxu0 0.0
    %3721 = vmatpush2.msra.mxu0 0.0
    %3722 = vmatprep.subr.mxu0 0.0
    %3723 = vmatpush2.msra.mxu0 0.0
    %3724 = vmatprep.subr.mxu0 0.0
    %3725 = vmatpush2.msra.mxu0 0.0
    %3726 = vmatprep.subr.mxu0 0.0
    %3727 = vmatpush2.msra.mxu0 0.0
    %3728 = vmatprep.subr.mxu0 0.0
    %3729 = vmatpush2.msra.mxu0 0.0
    %3730 = vmatprep.subr.mxu0 0.0
    %3731 = vmatpush2.msra.mxu0 0.0
    %3732 = vmatprep.subr.mxu0 0.0
    %3733 = vmatpush2.msra.mxu0 0.0
    %3734 = vmatprep.subr.mxu0 0.0
    %3735 = vmatpush2.msra.mxu0 0.0
    %3736 = vmatprep.subr.mxu0 0.0
    %3737 = vmatpush2.msra.mxu0 0.0
    %3738 = vmatprep.subr.mxu0 0.0
    %3739 = vmatpush2.msra.mxu0 0.0
    %3740 = vmatprep.subr.mxu0 0.0
    %3741 = vmatpush2.msra.mxu0 0.0
    %3742 = vmatprep.subr.mxu0 0.0
    %3743 = vmatpush2.msra.mxu0 0.0
    %3744 = vmatprep.subr.mxu0 0.0
    %3745 = vmatpush2.msra.mxu0 0.0
    %3746 = vmatprep.mubr.f32.mxu0 0.0
    %3747 = vmatmul.mubr.f32.gmra.mxu0 %v3670
    %v3748 = vpop.f32.mrf.mxu0
    %v3749 = vadd.f32 %v3655, %v3748
    %v3750 = vpop.f32.mrf.mxu0
    %3751 = vmatprep.mubr.f32.mxu0 0.0
    %3752 = vmatmul.mubr.f32.gmra.mxu0 %v3672
    %v3753 = vpop.f32.mrf.mxu0
    %v3754 = vadd.f32 %v3655, %v3753
    %v3755 = vpop.f32.mrf.mxu0
    %3756 = vmatprep.mubr.f32.mxu0 0.0
    %3757 = vmatmul.mubr.f32.gmra.mxu0 %v3674
    %v3758 = vpop.f32.mrf.mxu0
    %v3759 = vadd.f32 %v3655, %v3758
    %v3760 = vpop.f32.mrf.mxu0
    %3761 = vmatprep.mubr.f32.mxu0 0.0
    %3762 = vmatmul.mubr.f32.gmra.mxu0 %v3676
    %v3763 = vpop.f32.mrf.mxu0
    %v3764 = vadd.f32 %v3655, %v3763
    %v3765 = vpop.f32.mrf.mxu0
    %3766 = vdwg.mxu0
    %vm3767 = vcmp.gt.f32.partialorder %v3749, 0.0
    %vm3768 = vcmp.gt.f32.partialorder %v3754, 0.0
    %vm3769 = vcmp.gt.f32.partialorder %v3759, 0.0
    %vm3770 = vcmp.gt.f32.partialorder %v3764, 0.0
    %v3771 = vmul.f32 %v3749, 0.01
    %v3772 = vmul.f32 %v3754, 0.01
    %v3773 = vmul.f32 %v3759, 0.01
    %v3774 = vmul.f32 %v3764, 0.01
    %v3775 = vsel %vm3767, %v3749, %v3771
    %v3776 = vsel %vm3768, %v3754, %v3772
    %v3777 = vsel %vm3769, %v3759, %v3773
    %v3778 = vsel %vm3770, %v3764, %v3774
    %v3783 = vcombine.high %v3775, %v3775
    %v3785 = vunpack.c.l.s4 1983009808
    %v3786 = vunpack.c.0.s8 %v3785
    %v3787 = vlaneseq
    %v3788 = vshrl.u32 %v3787, 7
    %v3789 = vsub.s32 %v3786, %v3788
    %v3790 = vrot.slane %v3775, %v3789
    %v3792 = vunpack.c.l.s4 1983009808
    %v3793 = vunpack.c.0.s8 %v3792
    %v3794 = vlaneseq
    %v3795 = vshrl.u32 %v3794, 7
    %v3796 = vsub.s32 %v3793, %v3795
    %v3797 = vrot.slane %v3783, %v3796
    %v3798 = vcombine.high %v3790, %v3790
    %v3799 = vcombine.high %v3797, %v3797
    %v3800 = vcombine.high %v3776, %v3776
    %v3802 = vunpack.c.l.s4 1983009808
    %v3803 = vunpack.c.0.s8 %v3802
    %v3804 = vlaneseq
    %v3805 = vshrl.u32 %v3804, 7
    %v3806 = vsub.s32 %v3803, %v3805
    %v3807 = vrot.slane %v3776, %v3806
    %v3809 = vunpack.c.l.s4 1983009808
    %v3810 = vunpack.c.0.s8 %v3809
    %v3811 = vlaneseq
    %v3812 = vshrl.u32 %v3811, 7
    %v3813 = vsub.s32 %v3810, %v3812
    %v3814 = vrot.slane %v3800, %v3813
    %v3815 = vcombine.high %v3807, %v3807
    %v3816 = vcombine.high %v3814, %v3814
    %v3817 = vcombine.high %v3777, %v3777
    %v3819 = vunpack.c.l.s4 1983009808
    %v3820 = vunpack.c.0.s8 %v3819
    %v3821 = vlaneseq
    %v3822 = vshrl.u32 %v3821, 7
    %v3823 = vsub.s32 %v3820, %v3822
    %v3824 = vrot.slane %v3777, %v3823
    %v3826 = vunpack.c.l.s4 1983009808
    %v3827 = vunpack.c.0.s8 %v3826
    %v3828 = vlaneseq
    %v3829 = vshrl.u32 %v3828, 7
    %v3830 = vsub.s32 %v3827, %v3829
    %v3831 = vrot.slane %v3817, %v3830
    %v3832 = vcombine.high %v3824, %v3824
    %v3833 = vcombine.high %v3831, %v3831
    %v3834 = vcombine.high %v3778, %v3778
    %v3836 = vunpack.c.l.s4 1983009808
    %v3837 = vunpack.c.0.s8 %v3836
    %v3838 = vlaneseq
    %v3839 = vshrl.u32 %v3838, 7
    %v3840 = vsub.s32 %v3837, %v3839
    %v3841 = vrot.slane %v3778, %v3840
    %v3843 = vunpack.c.l.s4 1983009808
    %v3844 = vunpack.c.0.s8 %v3843
    %v3845 = vlaneseq
    %v3846 = vshrl.u32 %v3845, 7
    %v3847 = vsub.s32 %v3844, %v3846
    %v3848 = vrot.slane %v3834, %v3847
    %v3849 = vcombine.high %v3841, %v3841
    %v3850 = vcombine.high %v3848, %v3848
    %vm3867 = vcmask 91136
    %v3868 = vsel %vm3867, %v3790, -inf
    %v3869 = vrot.slane %v3868, 4
    %v3870 = vmax.f32 %v3868, %v3869
    %v3871 = vrot.slane %v3870, 2
    %v3872 = vmax.f32 %v3870, %v3871
    %v3873 = vrot.slane %v3872, 1
    %v3874 = vmax.f32 %v3872, %v3873
    %v3875 = vsel %vm3867, %v3798, -inf
    %v3876 = vrot.slane %v3875, 4
    %v3877 = vmax.f32 %v3875, %v3876
    %v3878 = vrot.slane %v3877, 2
    %v3879 = vmax.f32 %v3877, %v3878
    %v3880 = vrot.slane %v3879, 1
    %v3881 = vmax.f32 %v3879, %v3880
    %v3882 = vsel %vm3867, %v3797, -inf
    %v3883 = vrot.slane %v3882, 4
    %v3884 = vmax.f32 %v3882, %v3883
    %v3885 = vrot.slane %v3884, 2
    %v3886 = vmax.f32 %v3884, %v3885
    %v3887 = vrot.slane %v3886, 1
    %v3888 = vmax.f32 %v3886, %v3887
    %v3889 = vsel %vm3867, %v3799, -inf
    %v3890 = vrot.slane %v3889, 4
    %v3891 = vmax.f32 %v3889, %v3890
    %v3892 = vrot.slane %v3891, 2
    %v3893 = vmax.f32 %v3891, %v3892
    %v3894 = vrot.slane %v3893, 1
    %v3895 = vmax.f32 %v3893, %v3894
    %v3896 = vsel %vm3867, %v3807, -inf
    %v3897 = vrot.slane %v3896, 4
    %v3898 = vmax.f32 %v3896, %v3897
    %v3899 = vrot.slane %v3898, 2
    %v3900 = vmax.f32 %v3898, %v3899
    %v3901 = vrot.slane %v3900, 1
    %v3902 = vmax.f32 %v3900, %v3901
    %v3903 = vsel %vm3867, %v3815, -inf
    %v3904 = vrot.slane %v3903, 4
    %v3905 = vmax.f32 %v3903, %v3904
    %v3906 = vrot.slane %v3905, 2
    %v3907 = vmax.f32 %v3905, %v3906
    %v3908 = vrot.slane %v3907, 1
    %v3909 = vmax.f32 %v3907, %v3908
    %v3910 = vsel %vm3867, %v3814, -inf
    %v3911 = vrot.slane %v3910, 4
    %v3912 = vmax.f32 %v3910, %v3911
    %v3913 = vrot.slane %v3912, 2
    %v3914 = vmax.f32 %v3912, %v3913
    %v3915 = vrot.slane %v3914, 1
    %v3916 = vmax.f32 %v3914, %v3915
    %v3917 = vsel %vm3867, %v3816, -inf
    %v3918 = vrot.slane %v3917, 4
    %v3919 = vmax.f32 %v3917, %v3918
    %v3920 = vrot.slane %v3919, 2
    %v3921 = vmax.f32 %v3919, %v3920
    %v3922 = vrot.slane %v3921, 1
    %v3923 = vmax.f32 %v3921, %v3922
    %v3924 = vsel %vm3867, %v3824, -inf
    %v3925 = vrot.slane %v3924, 4
    %v3926 = vmax.f32 %v3924, %v3925
    %v3927 = vrot.slane %v3926, 2
    %v3928 = vmax.f32 %v3926, %v3927
    %v3929 = vrot.slane %v3928, 1
    %v3930 = vmax.f32 %v3928, %v3929
    %v3931 = vsel %vm3867, %v3832, -inf
    %v3932 = vrot.slane %v3931, 4
    %v3933 = vmax.f32 %v3931, %v3932
    %v3934 = vrot.slane %v3933, 2
    %v3935 = vmax.f32 %v3933, %v3934
    %v3936 = vrot.slane %v3935, 1
    %v3937 = vmax.f32 %v3935, %v3936
    %v3938 = vsel %vm3867, %v3831, -inf
    %v3939 = vrot.slane %v3938, 4
    %v3940 = vmax.f32 %v3938, %v3939
    %v3941 = vrot.slane %v3940, 2
    %v3942 = vmax.f32 %v3940, %v3941
    %v3943 = vrot.slane %v3942, 1
    %v3944 = vmax.f32 %v3942, %v3943
    %v3945 = vsel %vm3867, %v3833, -inf
    %v3946 = vrot.slane %v3945, 4
    %v3947 = vmax.f32 %v3945, %v3946
    %v3948 = vrot.slane %v3947, 2
    %v3949 = vmax.f32 %v3947, %v3948
    %v3950 = vrot.slane %v3949, 1
    %v3951 = vmax.f32 %v3949, %v3950
    %v3952 = vsel %vm3867, %v3841, -inf
    %v3953 = vrot.slane %v3952, 4
    %v3954 = vmax.f32 %v3952, %v3953
    %v3955 = vrot.slane %v3954, 2
    %v3956 = vmax.f32 %v3954, %v3955
    %v3957 = vrot.slane %v3956, 1
    %v3958 = vmax.f32 %v3956, %v3957
    %v3959 = vsel %vm3867, %v3849, -inf
    %v3960 = vrot.slane %v3959, 4
    %v3961 = vmax.f32 %v3959, %v3960
    %v3962 = vrot.slane %v3961, 2
    %v3963 = vmax.f32 %v3961, %v3962
    %v3964 = vrot.slane %v3963, 1
    %v3965 = vmax.f32 %v3963, %v3964
    %v3966 = vsel %vm3867, %v3848, -inf
    %v3967 = vrot.slane %v3966, 4
    %v3968 = vmax.f32 %v3966, %v3967
    %v3969 = vrot.slane %v3968, 2
    %v3970 = vmax.f32 %v3968, %v3969
    %v3971 = vrot.slane %v3970, 1
    %v3972 = vmax.f32 %v3970, %v3971
    %v3973 = vsel %vm3867, %v3850, -inf
    %v3974 = vrot.slane %v3973, 4
    %v3975 = vmax.f32 %v3973, %v3974
    %v3976 = vrot.slane %v3975, 2
    %v3977 = vmax.f32 %v3975, %v3976
    %v3978 = vrot.slane %v3977, 1
    %v3979 = vmax.f32 %v3977, %v3978
    %v3980 = vsel %vm976, %v3874, -inf
    %v3981 = vsel %vm976, %v3888, -inf
    %v3982 = vmax.f32 %v3980, %v3981
    %v3983 = vsel %vm976, %v3881, -inf
    %v3984 = vsel %vm976, %v3895, -inf
    %v3985 = vmax.f32 %v3983, %v3984
    %v3986 = vsel %vm976, %v3902, -inf
    %v3987 = vsel %vm976, %v3916, -inf
    %v3988 = vmax.f32 %v3986, %v3987
    %v3989 = vsel %vm976, %v3909, -inf
    %v3990 = vsel %vm976, %v3923, -inf
    %v3991 = vmax.f32 %v3989, %v3990
    %v3992 = vsel %vm976, %v3930, -inf
    %v3993 = vsel %vm976, %v3944, -inf
    %v3994 = vmax.f32 %v3992, %v3993
    %v3995 = vsel %vm976, %v3937, -inf
    %v3996 = vsel %vm976, %v3951, -inf
    %v3997 = vmax.f32 %v3995, %v3996
    %v3998 = vsel %vm976, %v3958, -inf
    %v3999 = vsel %vm976, %v3972, -inf
    %v4000 = vmax.f32 %v3998, %v3999
    %v4001 = vsel %vm976, %v3965, -inf
    %v4002 = vsel %vm976, %v3979, -inf
    %v4003 = vmax.f32 %v4001, %v4002
    %v4004 = vsel %vm121, %v3985, %v3982
    %v4005 = vsel %vm121, %v3991, %v3988
    %v4006 = vsel %vm121, %v3997, %v3994
    %v4007 = vsel %vm121, %v4003, %v4000
    %v4016 = vsel %vm3019, %v3985, %v3982
    %v4017 = vsel %vm3019, %v3991, %v3988
    %v4018 = vsel %vm3019, %v3997, %v3994
    %v4019 = vsel %vm3019, %v4003, %v4000
    %4020 = vrot.lane.b32.xlu0 %v4016, 12
    %v4021 = vpop.permute.xlu0 %4020
    %4022 = vrot.lane.b32.xlu0 %v4017, 12
    %v4023 = vpop.permute.xlu0 %4022
    %4024 = vrot.lane.b32.xlu0 %v4018, 12
    %v4025 = vpop.permute.xlu0 %4024
    %4026 = vrot.lane.b32.xlu0 %v4019, 12
    %v4027 = vpop.permute.xlu0 %4026
    %4036 = vrot.lane.b32.xlu0 %v4004, 24
    %v4037 = vpop.permute.xlu0 %4036
    %4038 = vrot.lane.b32.xlu0 %v4005, 24
    %v4039 = vpop.permute.xlu0 %4038
    %4040 = vrot.lane.b32.xlu0 %v4006, 24
    %v4041 = vpop.permute.xlu0 %4040
    %4042 = vrot.lane.b32.xlu0 %v4007, 24
    %v4043 = vpop.permute.xlu0 %4042
    %v4048 = vsel %vm976, %v4004, %v4021
    %v4049 = vsel %vm976, %v4005, %v4023
    %v4050 = vsel %vm976, %v4006, %v4025
    %v4051 = vsel %vm976, %v4007, %v4027
    %v4052 = vsel %vm3554, %v4048, %v4037
    %v4053 = vsel %vm3554, %v4049, %v4039
    %v4054 = vsel %vm3554, %v4050, %v4041
    %v4055 = vsel %vm3554, %v4051, %v4043
    %4060 = vrot.lane.b32.xlu0 %v4052, 36
    %v4061 = vpop.permute.xlu0 %4060
    %4062 = vrot.lane.b32.xlu0 %v4053, 36
    %v4063 = vpop.permute.xlu0 %4062
    %4064 = vrot.lane.b32.xlu0 %v4054, 36
    %v4065 = vpop.permute.xlu0 %4064
    %4066 = vrot.lane.b32.xlu0 %v4055, 36
    %v4067 = vpop.permute.xlu0 %4066
    %4072 = vrot.lane.b32.xlu0 %v4053, 72
    %v4073 = vpop.permute.xlu0 %4072
    %4074 = vrot.lane.b32.xlu0 %v4052, 72
    %v4075 = vpop.permute.xlu0 %4074
    %4076 = vrot.lane.b32.xlu0 %v4055, 72
    %v4077 = vpop.permute.xlu0 %4076
    %4078 = vrot.lane.b32.xlu0 %v4054, 72
    %v4079 = vpop.permute.xlu0 %4078
    %v4084 = vsel %vm1121, %v4053, %v4061
    %v4085 = vsel %vm1121, %v4052, %v4063
    %v4086 = vsel %vm1121, %v4055, %v4065
    %v4087 = vsel %vm1121, %v4054, %v4067
    %v4088 = vsel %vm3627, %v4084, %v4073
    %v4089 = vsel %vm3627, %v4085, %v4075
    %v4090 = vsel %vm3627, %v4086, %v4077
    %v4091 = vsel %vm3627, %v4087, %v4079
    %v4092 = vld [vmem:[%s11] sm:$0xff]
    %v4093 = vld [vmem:[%s11 + $0x8] sm:$0xff]
    %v4094 = vld [vmem:[%s11 + $0x10] sm:$0xff]
    %v4095 = vld [vmem:[%s11 + $0x18] sm:$0xff]
    %v4096 = vld [vmem:[%s11 + $0x20] sm:$0xff]
    %v4097 = vld [vmem:[%s11 + $0x28] sm:$0xff]
    %v4098 = vld [vmem:[%s11 + $0x30] sm:$0xff]
    %v4099 = vld [vmem:[%s11 + $0x38] sm:$0xff]
    %v4100 = vld [vmem:[%s11 + $0x40] sm:$0xff]
    %v4101 = vld [vmem:[%s11 + $0x48] sm:$0xff]
    %v4102 = vld [vmem:[%s11 + $0x50] sm:$0xff]
    %v4103 = vld [vmem:[%s11 + $0x58] sm:$0xff]
    %v4104 = vld [vmem:[%s11 + $0x60] sm:$0xff]
    %v4105 = vld [vmem:[%s11 + $0x68] sm:$0xf]
    %v4106 = vld [vmem:[%s12] sm:$0x1]
    %v4108 = vlaneseq
    %v4109 = vshrl.u32 %v4108, 7
    %v4110 = vsub.s32 0, %v4109
    %v4111 = vrot.slane %v4106, %v4110
    %v4117 = vcombine.low %v4088, %v4089
    %v4118 = vcombine.low %v4090, %v4091
    %v4120 = vunpack.c.l.s4 1983009808
    %v4121 = vunpack.c.0.s8 %v4120
    %v4122 = vlaneseq
    %v4123 = vshrl.u32 %v4122, 7
    %v4124 = vsub.s32 %v4121, %v4123
    %v4125 = vrot.slane %v4117, %v4124
    %v4127 = vunpack.c.l.s4 1983009808
    %v4128 = vunpack.c.0.s8 %v4127
    %v4129 = vlaneseq
    %v4130 = vshrl.u32 %v4129, 7
    %v4131 = vsub.s32 %v4128, %v4130
    %v4132 = vrot.slane %v4118, %v4131
    %v4133 = vcombine.low %v4125, %v4132
    %v4134 = vsel %vm3669, %v4133, 0
    %v4137 = vsel %vm3678, %v4105, 0
    %4139 = vmatprep.subr.mxu0 0.0
    %4140 = vmatpush1.msra.mxu0 0.0
    %4141 = vmatprep.subr.mxu0 0.0
    %4142 = vmatpush1.msra.mxu0 0.0
    %4143 = vmatprep.subr.mxu0 0.0
    %4144 = vmatpush1.msra.mxu0 %v4137
    %4145 = vmatprep.subr.mxu0 0.0
    %4146 = vmatpush1.msra.mxu0 %v4104
    %4147 = vmatprep.subr.mxu0 0.0
    %4148 = vmatpush1.msra.mxu0 %v4103
    %4149 = vmatprep.subr.mxu0 0.0
    %4150 = vmatpush1.msra.mxu0 %v4102
    %4151 = vmatprep.subr.mxu0 0.0
    %4152 = vmatpush1.msra.mxu0 %v4101
    %4153 = vmatprep.subr.mxu0 0.0
    %4154 = vmatpush1.msra.mxu0 %v4100
    %4155 = vmatprep.subr.mxu0 0.0
    %4156 = vmatpush1.msra.mxu0 %v4099
    %4157 = vmatprep.subr.mxu0 0.0
    %4158 = vmatpush1.msra.mxu0 %v4098
    %4159 = vmatprep.subr.mxu0 0.0
    %4160 = vmatpush1.msra.mxu0 %v4097
    %4161 = vmatprep.subr.mxu0 0.0
    %4162 = vmatpush1.msra.mxu0 %v4096
    %4163 = vmatprep.subr.mxu0 0.0
    %4164 = vmatpush1.msra.mxu0 %v4095
    %4165 = vmatprep.subr.mxu0 0.0
    %4166 = vmatpush1.msra.mxu0 %v4094
    %4167 = vmatprep.subr.mxu0 0.0
    %4168 = vmatpush1.msra.mxu0 %v4093
    %4169 = vmatprep.subr.mxu0 0.0
    %4170 = vmatpush1.msra.mxu0 %v4092
    %4171 = vmatprep.subr.mxu0 0.0
    %4172 = vmatpush2.msra.mxu0 0.0
    %4173 = vmatprep.subr.mxu0 0.0
    %4174 = vmatpush2.msra.mxu0 0.0
    %4175 = vmatprep.subr.mxu0 0.0
    %4176 = vmatpush2.msra.mxu0 0.0
    %4177 = vmatprep.subr.mxu0 0.0
    %4178 = vmatpush2.msra.mxu0 0.0
    %4179 = vmatprep.subr.mxu0 0.0
    %4180 = vmatpush2.msra.mxu0 0.0
    %4181 = vmatprep.subr.mxu0 0.0
    %4182 = vmatpush2.msra.mxu0 0.0
    %4183 = vmatprep.subr.mxu0 0.0
    %4184 = vmatpush2.msra.mxu0 0.0
    %4185 = vmatprep.subr.mxu0 0.0
    %4186 = vmatpush2.msra.mxu0 0.0
    %4187 = vmatprep.subr.mxu0 0.0
    %4188 = vmatpush2.msra.mxu0 0.0
    %4189 = vmatprep.subr.mxu0 0.0
    %4190 = vmatpush2.msra.mxu0 0.0
    %4191 = vmatprep.subr.mxu0 0.0
    %4192 = vmatpush2.msra.mxu0 0.0
    %4193 = vmatprep.subr.mxu0 0.0
    %4194 = vmatpush2.msra.mxu0 0.0
    %4195 = vmatprep.subr.mxu0 0.0
    %4196 = vmatpush2.msra.mxu0 0.0
    %4197 = vmatprep.subr.mxu0 0.0
    %4198 = vmatpush2.msra.mxu0 0.0
    %4199 = vmatprep.subr.mxu0 0.0
    %4200 = vmatpush2.msra.mxu0 0.0
    %4201 = vmatprep.subr.mxu0 0.0
    %4202 = vmatpush2.msra.mxu0 0.0
    %4203 = vmatprep.mubr.f32.mxu0 0.0
    %4204 = vmatmul.mubr.f32.gmra.mxu0 %v4134
    %v4205 = vpop.f32.mrf.mxu0
    %v4206 = vadd.f32 %v4111, %v4205
    %v4207 = vpop.f32.mrf.mxu0
    %4208 = vdwg.mxu0
    %vm4209 = vcmp.gt.f32.partialorder %v4206, 0.0
    %v4210 = vmul.f32 %v4206, 0.01
    %v4211 = vsel %vm4209, %v4206, %v4210
    %v4213 = vcombine.high %v4211, %v4211
    %v4215 = vunpack.c.l.s4 1983009808
    %v4216 = vunpack.c.0.s8 %v4215
    %v4217 = vlaneseq
    %v4218 = vshrl.u32 %v4217, 7
    %v4219 = vsub.s32 %v4216, %v4218
    %v4220 = vrot.slane %v4211, %v4219
    %v4222 = vunpack.c.l.s4 1983009808
    %v4223 = vunpack.c.0.s8 %v4222
    %v4224 = vlaneseq
    %v4225 = vshrl.u32 %v4224, 7
    %v4226 = vsub.s32 %v4223, %v4225
    %v4227 = vrot.slane %v4213, %v4226
    %v4228 = vcombine.high %v4220, %v4220
    %v4229 = vcombine.high %v4227, %v4227
    %v4230 = vlaneseq
    %v4231 = vshrl.u32 %v4230, 7
    %v4232 = vsub.s32 1, %v4231
    %v4233 = vrot.slane %v4220, %v4232
    %v4234 = vlaneseq
    %v4235 = vshrl.u32 %v4234, 7
    %v4236 = vsub.s32 1, %v4235
    %v4237 = vrot.slane %v4228, %v4236
    %v4238 = vlaneseq
    %v4239 = vshrl.u32 %v4238, 7
    %v4240 = vsub.s32 1, %v4239
    %v4241 = vrot.slane %v4227, %v4240
    %v4242 = vlaneseq
    %v4243 = vshrl.u32 %v4242, 7
    %v4244 = vsub.s32 1, %v4243
    %v4245 = vrot.slane %v4229, %v4244
    %v4250 = vlaneseq
    %v4251 = vshrl.u32 %v4250, 7
    %v4252 = vsub.s32 0, %v4251
    %v4253 = vrot.slane %v4220, %v4252
    %v4254 = vlaneseq
    %v4255 = vshrl.u32 %v4254, 7
    %v4256 = vsub.s32 0, %v4255
    %v4257 = vrot.slane %v4228, %v4256
    %v4258 = vlaneseq
    %v4259 = vshrl.u32 %v4258, 7
    %v4260 = vsub.s32 0, %v4259
    %v4261 = vrot.slane %v4227, %v4260
    %v4262 = vlaneseq
    %v4263 = vshrl.u32 %v4262, 7
    %v4264 = vsub.s32 0, %v4263
    %v4265 = vrot.slane %v4229, %v4264
    %v4270 = vsel %vm121, %v4233, %v4253
    %v4271 = vsel %vm121, %v4237, %v4257
    %v4272 = vsel %vm121, %v4241, %v4261
    %v4273 = vsel %vm121, %v4245, %v4265
    %v4275 = vunpack.c.l.s4 1983009808
    %v4276 = vunpack.c.0.s8 %v4275
    %v4277 = vlaneseq
    %v4278 = vshrl.u32 %v4277, 7
    %v4279 = vsub.s32 %v4276, %v4278
    %v4280 = vrot.slane %v4220, %v4279
    %v4282 = vunpack.c.l.s4 1983009808
    %v4283 = vunpack.c.0.s8 %v4282
    %v4284 = vlaneseq
    %v4285 = vshrl.u32 %v4284, 7
    %v4286 = vsub.s32 %v4283, %v4285
    %v4287 = vrot.slane %v4228, %v4286
    %v4289 = vunpack.c.l.s4 1983009808
    %v4290 = vunpack.c.0.s8 %v4289
    %v4291 = vlaneseq
    %v4292 = vshrl.u32 %v4291, 7
    %v4293 = vsub.s32 %v4290, %v4292
    %v4294 = vrot.slane %v4227, %v4293
    %v4296 = vunpack.c.l.s4 1983009808
    %v4297 = vunpack.c.0.s8 %v4296
    %v4298 = vlaneseq
    %v4299 = vshrl.u32 %v4298, 7
    %v4300 = vsub.s32 %v4297, %v4299
    %v4301 = vrot.slane %v4229, %v4300
    %4302 = vrot.lane.b32.xlu0 %v4280, 24
    %v4303 = vpop.permute.xlu0 %4302
    %4304 = vrot.lane.b32.xlu0 %v4287, 24
    %v4305 = vpop.permute.xlu0 %4304
    %4306 = vrot.lane.b32.xlu0 %v4294, 24
    %v4307 = vpop.permute.xlu0 %4306
    %4308 = vrot.lane.b32.xlu0 %v4301, 24
    %v4309 = vpop.permute.xlu0 %4308
    %4318 = vrot.lane.b32.xlu0 %v4270, 48
    %v4319 = vpop.permute.xlu0 %4318
    %4320 = vrot.lane.b32.xlu0 %v4271, 48
    %v4321 = vpop.permute.xlu0 %4320
    %4322 = vrot.lane.b32.xlu0 %v4272, 48
    %v4323 = vpop.permute.xlu0 %4322
    %4324 = vrot.lane.b32.xlu0 %v4273, 48
    %v4325 = vpop.permute.xlu0 %4324
    %v4330 = vsel %vm3554, %v4270, %v4303
    %v4331 = vsel %vm3554, %v4271, %v4305
    %v4332 = vsel %vm3554, %v4272, %v4307
    %v4333 = vsel %vm3554, %v4273, %v4309
    %vm4334 = vcmask 392192
    %v4335 = vsel %vm4334, %v4330, %v4319
    %v4336 = vsel %vm4334, %v4331, %v4321
    %v4337 = vsel %vm4334, %v4332, %v4323
    %v4338 = vsel %vm4334, %v4333, %v4325
    %4343 = vrot.lane.b32.xlu0 %v4335, 72
    %v4344 = vpop.permute.xlu0 %4343
    %4345 = vrot.lane.b32.xlu0 %v4336, 72
    %v4346 = vpop.permute.xlu0 %4345
    %4347 = vrot.lane.b32.xlu0 %v4337, 72
    %v4348 = vpop.permute.xlu0 %4347
    %4349 = vrot.lane.b32.xlu0 %v4338, 72
    %v4350 = vpop.permute.xlu0 %4349
    %4355 = vrot.lane.b32.xlu0 %v4336, 16
    %v4356 = vpop.permute.xlu0 %4355
    %4357 = vrot.lane.b32.xlu0 %v4335, 16
    %v4358 = vpop.permute.xlu0 %4357
    %4359 = vrot.lane.b32.xlu0 %v4338, 16
    %v4360 = vpop.permute.xlu0 %4359
    %4361 = vrot.lane.b32.xlu0 %v4337, 16
    %v4362 = vpop.permute.xlu0 %4361
    %v4367 = vsel %vm3627, %v4336, %v4344
    %v4368 = vsel %vm3627, %v4335, %v4346
    %v4369 = vsel %vm3627, %v4338, %v4348
    %v4370 = vsel %vm3627, %v4337, %v4350
    %vm4371 = vcmask 130048
    %v4372 = vsel %vm4371, %v4344, %v4356
    %v4373 = vsel %vm4371, %v4346, %v4358
    %v4374 = vsel %vm4371, %v4348, %v4360
    %v4375 = vsel %vm4371, %v4350, %v4362
    %v4384 = vcombine.low %v4367, %v4372
    %v4386 = vunpack.c.l.s4 1983009808
    %v4387 = vunpack.c.0.s8 %v4386
    %v4388 = vlaneseq
    %v4389 = vshrl.u32 %v4388, 7
    %v4390 = vsub.s32 %v4387, %v4389
    %v4391 = vrot.slane %v4384, %v4390
    %v4392 = vcombine.low %v4368, %v4373
    %v4394 = vunpack.c.l.s4 1983009808
    %v4395 = vunpack.c.0.s8 %v4394
    %v4396 = vlaneseq
    %v4397 = vshrl.u32 %v4396, 7
    %v4398 = vsub.s32 %v4395, %v4397
    %v4399 = vrot.slane %v4392, %v4398
    %v4400 = vcombine.low %v4369, %v4374
    %v4402 = vunpack.c.l.s4 1983009808
    %v4403 = vunpack.c.0.s8 %v4402
    %v4404 = vlaneseq
    %v4405 = vshrl.u32 %v4404, 7
    %v4406 = vsub.s32 %v4403, %v4405
    %v4407 = vrot.slane %v4400, %v4406
    %v4408 = vcombine.low %v4370, %v4375
    %v4410 = vunpack.c.l.s4 1983009808
    %v4411 = vunpack.c.0.s8 %v4410
    %v4412 = vlaneseq
    %v4413 = vshrl.u32 %v4412, 7
    %v4414 = vsub.s32 %v4411, %v4413
    %v4415 = vrot.slane %v4408, %v4414
    %v4416 = vld [vmem:[%s13] sm:$0xff]
    %v4417 = vld [vmem:[%s13 + $0x8] sm:$0xff]
    %v4418 = vld [vmem:[%s13 + $0x10] sm:$0xff]
    %v4419 = vld [vmem:[%s13 + $0x18] sm:$0xff]
    %v4420 = vld [vmem:[%s13 + $0x20] sm:$0xff]
    %v4421 = vld [vmem:[%s13 + $0x28] sm:$0xff]
    %v4422 = vld [vmem:[%s13 + $0x30] sm:$0xff]
    %v4423 = vld [vmem:[%s13 + $0x38] sm:$0xff]
    %v4424 = vld [vmem:[%s13 + $0x40] sm:$0xff]
    %v4425 = vld [vmem:[%s13 + $0x48] sm:$0xff]
    %v4426 = vld [vmem:[%s13 + $0x50] sm:$0xff]
    %v4427 = vld [vmem:[%s13 + $0x58] sm:$0xff]
    %v4428 = vld [vmem:[%s13 + $0x60] sm:$0xff]
    %v4429 = vld [vmem:[%s13 + $0x68] sm:$0xff]
    %v4430 = vld [vmem:[%s13 + $0x70] sm:$0xff]
    %v4431 = vld [vmem:[%s13 + $0x78] sm:$0xff]
    %v4432 = vld [vmem:[%s13 + $0x80] sm:$0xff]
    %v4433 = vld [vmem:[%s13 + $0x88] sm:$0xff]
    %v4434 = vld [vmem:[%s13 + $0x90] sm:$0xff]
    %v4435 = vld [vmem:[%s13 + $0x98] sm:$0xff]
    %v4436 = vld [vmem:[%s13 + $0xa0] sm:$0xff]
    %v4437 = vld [vmem:[%s13 + $0xa8] sm:$0xff]
    %v4438 = vld [vmem:[%s13 + $0xb0] sm:$0xff]
    %v4439 = vld [vmem:[%s13 + $0xb8] sm:$0xff]
    %v4440 = vld [vmem:[%s13 + $0xc0] sm:$0xff]
    %v4441 = vld [vmem:[%s13 + $0xc8] sm:$0xff]
    %v4442 = vld [vmem:[%s13 + $0xd0] sm:$0xff]
    %v4443 = vld [vmem:[%s14] sm:$0x1]
    %v4445 = vlaneseq
    %v4446 = vshrl.u32 %v4445, 7
    %v4447 = vsub.s32 0, %v4446
    %v4448 = vrot.slane %v4443, %v4447
    %v4450 = vcombine.low %v4391, %v4399
    %v4451 = vcombine.low %v4407, %v4415
    %v4453 = vunpack.c.l.s4 1983009808
    %v4454 = vunpack.c.0.s8 %v4453
    %v4455 = vlaneseq
    %v4456 = vshrl.u32 %v4455, 7
    %v4457 = vsub.s32 %v4454, %v4456
    %v4458 = vrot.slane %v4450, %v4457
    %v4460 = vunpack.c.l.s4 1983009808
    %v4461 = vunpack.c.0.s8 %v4460
    %v4462 = vlaneseq
    %v4463 = vshrl.u32 %v4462, 7
    %v4464 = vsub.s32 %v4461, %v4463
    %v4465 = vrot.slane %v4451, %v4464
    %v4466 = vcombine.low %v4458, %v4465
    %v4467 = vcombine.high %v4458, %v4465
    %vm4469 = vcmask 719872
    %v4470 = vsel %vm4469, %v4467, 0
    %4472 = vmatprep.subr.mxu0 0.0
    %4473 = vmatpush1.msra.mxu0 %v4431
    %4474 = vmatprep.subr.mxu0 0.0
    %4475 = vmatpush1.msra.mxu0 %v4430
    %4476 = vmatprep.subr.mxu0 0.0
    %4477 = vmatpush1.msra.mxu0 %v4429
    %4478 = vmatprep.subr.mxu0 0.0
    %4479 = vmatpush1.msra.mxu0 %v4428
    %4480 = vmatprep.subr.mxu0 0.0
    %4481 = vmatpush1.msra.mxu0 %v4427
    %4482 = vmatprep.subr.mxu0 0.0
    %4483 = vmatpush1.msra.mxu0 %v4426
    %4484 = vmatprep.subr.mxu0 0.0
    %4485 = vmatpush1.msra.mxu0 %v4425
    %4486 = vmatprep.subr.mxu0 0.0
    %4487 = vmatpush1.msra.mxu0 %v4424
    %4488 = vmatprep.subr.mxu0 0.0
    %4489 = vmatpush1.msra.mxu0 %v4423
    %4490 = vmatprep.subr.mxu0 0.0
    %4491 = vmatpush1.msra.mxu0 %v4422
    %4492 = vmatprep.subr.mxu0 0.0
    %4493 = vmatpush1.msra.mxu0 %v4421
    %4494 = vmatprep.subr.mxu0 0.0
    %4495 = vmatpush1.msra.mxu0 %v4420
    %4496 = vmatprep.subr.mxu0 0.0
    %4497 = vmatpush1.msra.mxu0 %v4419
    %4498 = vmatprep.subr.mxu0 0.0
    %4499 = vmatpush1.msra.mxu0 %v4418
    %4500 = vmatprep.subr.mxu0 0.0
    %4501 = vmatpush1.msra.mxu0 %v4417
    %4502 = vmatprep.subr.mxu0 0.0
    %4503 = vmatpush1.msra.mxu0 %v4416
    %4504 = vmatprep.subr.mxu0 0.0
    %4505 = vmatpush2.msra.mxu0 0.0
    %4506 = vmatprep.subr.mxu0 0.0
    %4507 = vmatpush2.msra.mxu0 0.0
    %4508 = vmatprep.subr.mxu0 0.0
    %4509 = vmatpush2.msra.mxu0 0.0
    %4510 = vmatprep.subr.mxu0 0.0
    %4511 = vmatpush2.msra.mxu0 0.0
    %4512 = vmatprep.subr.mxu0 0.0
    %4513 = vmatpush2.msra.mxu0 0.0
    %4514 = vmatprep.subr.mxu0 0.0
    %4515 = vmatpush2.msra.mxu0 %v4442
    %4516 = vmatprep.subr.mxu0 0.0
    %4517 = vmatpush2.msra.mxu0 %v4441
    %4518 = vmatprep.subr.mxu0 0.0
    %4519 = vmatpush2.msra.mxu0 %v4440
    %4520 = vmatprep.subr.mxu0 0.0
    %4521 = vmatpush2.msra.mxu0 %v4439
    %4522 = vmatprep.subr.mxu0 0.0
    %4523 = vmatpush2.msra.mxu0 %v4438
    %4524 = vmatprep.subr.mxu0 0.0
    %4525 = vmatpush2.msra.mxu0 %v4437
    %4526 = vmatprep.subr.mxu0 0.0
    %4527 = vmatpush2.msra.mxu0 %v4436
    %4528 = vmatprep.subr.mxu0 0.0
    %4529 = vmatpush2.msra.mxu0 %v4435
    %4530 = vmatprep.subr.mxu0 0.0
    %4531 = vmatpush2.msra.mxu0 %v4434
    %4532 = vmatprep.subr.mxu0 0.0
    %4533 = vmatpush2.msra.mxu0 %v4433
    %4534 = vmatprep.subr.mxu0 0.0
    %4535 = vmatpush2.msra.mxu0 %v4432
    %4536 = vmatprep.mubr.f32.mxu0 %v4470
    %4537 = vmatmul.mubr.f32.gmra.mxu0 %v4466
    %v4538 = vpop.f32.mrf.mxu0
    %v4539 = vadd.f32 %v4448, %v4538
    %v4540 = vpop.f32.mrf.mxu0
    %4541 = vdwg.mxu0
    %vm4542 = vcmp.gt.f32.partialorder %v4539, 0.0
    %v4543 = vmul.f32 %v4539, 0.01
    %v4544 = vsel %vm4542, %v4539, %v4543
    %v4546 = vcombine.high %v4544, %v4544
    %v4548 = vunpack.c.l.s4 1983009808
    %v4549 = vunpack.c.0.s8 %v4548
    %v4550 = vlaneseq
    %v4551 = vshrl.u32 %v4550, 7
    %v4552 = vsub.s32 %v4549, %v4551
    %v4553 = vrot.slane %v4544, %v4552
    %v4555 = vunpack.c.l.s4 1983009808
    %v4556 = vunpack.c.0.s8 %v4555
    %v4557 = vlaneseq
    %v4558 = vshrl.u32 %v4557, 7
    %v4559 = vsub.s32 %v4556, %v4558
    %v4560 = vrot.slane %v4546, %v4559
    %v4561 = vcombine.high %v4553, %v4553
    %v4562 = vcombine.high %v4560, %v4560
    %vm4567 = vcmask 189440
    %v4568 = vsel %vm4567, %v4553, -inf
    %v4569 = vrot.slane %v4568, 4
    %v4570 = vmax.f32 %v4568, %v4569
    %v4571 = vrot.slane %v4570, 2
    %v4572 = vmax.f32 %v4570, %v4571
    %v4573 = vrot.slane %v4572, 1
    %v4574 = vmax.f32 %v4572, %v4573
    %v4575 = vsel %vm4567, %v4561, -inf
    %v4576 = vrot.slane %v4575, 4
    %v4577 = vmax.f32 %v4575, %v4576
    %v4578 = vrot.slane %v4577, 2
    %v4579 = vmax.f32 %v4577, %v4578
    %v4580 = vrot.slane %v4579, 1
    %v4581 = vmax.f32 %v4579, %v4580
    %v4582 = vsel %vm4567, %v4560, -inf
    %v4583 = vrot.slane %v4582, 4
    %v4584 = vmax.f32 %v4582, %v4583
    %v4585 = vrot.slane %v4584, 2
    %v4586 = vmax.f32 %v4584, %v4585
    %v4587 = vrot.slane %v4586, 1
    %v4588 = vmax.f32 %v4586, %v4587
    %v4589 = vsel %vm4567, %v4562, -inf
    %v4590 = vrot.slane %v4589, 4
    %v4591 = vmax.f32 %v4589, %v4590
    %v4592 = vrot.slane %v4591, 2
    %v4593 = vmax.f32 %v4591, %v4592
    %v4594 = vrot.slane %v4593, 1
    %v4595 = vmax.f32 %v4593, %v4594
    %v4596 = vsel %vm3554, %v4574, -inf
    %v4597 = vsel %vm3554, %v4581, -inf
    %v4598 = vmax.f32 %v4596, %v4597
    %v4599 = vsel %vm3554, %v4588, -inf
    %v4600 = vsel %vm3554, %v4595, -inf
    %v4601 = vmax.f32 %v4599, %v4600
    %v4602 = vld [vmem:[%s15] sm:$0xff]
    %v4603 = vld [vmem:[%s15 + $0x8] sm:$0xff]
    %v4604 = vld [vmem:[%s15 + $0x10] sm:$0xff]
    %v4605 = vld [vmem:[%s16] sm:$0x1]
    %v4607 = vlaneseq
    %v4608 = vshrl.u32 %v4607, 7
    %v4609 = vsub.s32 0, %v4608
    %v4610 = vrot.slane %v4605, %v4609
    %v4614 = vsel %vm3019, %v4601, %v4598
    %v4615 = vsel %vm3554, %v4614, 0
    %4617 = vmatprep.subr.mxu0 0.0
    %4618 = vmatpush1.msra.mxu0 0.0
    %4619 = vmatprep.subr.mxu0 0.0
    %4620 = vmatpush1.msra.mxu0 0.0
    %4621 = vmatprep.subr.mxu0 0.0
    %4622 = vmatpush1.msra.mxu0 0.0
    %4623 = vmatprep.subr.mxu0 0.0
    %4624 = vmatpush1.msra.mxu0 0.0
    %4625 = vmatprep.subr.mxu0 0.0
    %4626 = vmatpush1.msra.mxu0 0.0
    %4627 = vmatprep.subr.mxu0 0.0
    %4628 = vmatpush1.msra.mxu0 0.0
    %4629 = vmatprep.subr.mxu0 0.0
    %4630 = vmatpush1.msra.mxu0 0.0
    %4631 = vmatprep.subr.mxu0 0.0
    %4632 = vmatpush1.msra.mxu0 0.0
    %4633 = vmatprep.subr.mxu0 0.0
    %4634 = vmatpush1.msra.mxu0 0.0
    %4635 = vmatprep.subr.mxu0 0.0
    %4636 = vmatpush1.msra.mxu0 0.0
    %4637 = vmatprep.subr.mxu0 0.0
    %4638 = vmatpush1.msra.mxu0 0.0
    %4639 = vmatprep.subr.mxu0 0.0
    %4640 = vmatpush1.msra.mxu0 0.0
    %4641 = vmatprep.subr.mxu0 0.0
    %4642 = vmatpush1.msra.mxu0 0.0
    %4643 = vmatprep.subr.mxu0 0.0
    %4644 = vmatpush1.msra.mxu0 %v4604
    %4645 = vmatprep.subr.mxu0 0.0
    %4646 = vmatpush1.msra.mxu0 %v4603
    %4647 = vmatprep.subr.mxu0 0.0
    %4648 = vmatpush1.msra.mxu0 %v4602
    %4649 = vmatprep.subr.mxu0 0.0
    %4650 = vmatpush2.msra.mxu0 0.0
    %4651 = vmatprep.subr.mxu0 0.0
    %4652 = vmatpush2.msra.mxu0 0.0
    %4653 = vmatprep.subr.mxu0 0.0
    %4654 = vmatpush2.msra.mxu0 0.0
    %4655 = vmatprep.subr.mxu0 0.0
    %4656 = vmatpush2.msra.mxu0 0.0
    %4657 = vmatprep.subr.mxu0 0.0
    %4658 = vmatpush2.msra.mxu0 0.0
    %4659 = vmatprep.subr.mxu0 0.0
    %4660 = vmatpush2.msra.mxu0 0.0
    %4661 = vmatprep.subr.mxu0 0.0
    %4662 = vmatpush2.msra.mxu0 0.0
    %4663 = vmatprep.subr.mxu0 0.0
    %4664 = vmatpush2.msra.mxu0 0.0
    %4665 = vmatprep.subr.mxu0 0.0
    %4666 = vmatpush2.msra.mxu0 0.0
    %4667 = vmatprep.subr.mxu0 0.0
    %4668 = vmatpush2.msra.mxu0 0.0
    %4669 = vmatprep.subr.mxu0 0.0
    %4670 = vmatpush2.msra.mxu0 0.0
    %4671 = vmatprep.subr.mxu0 0.0
    %4672 = vmatpush2.msra.mxu0 0.0
    %4673 = vmatprep.subr.mxu0 0.0
    %4674 = vmatpush2.msra.mxu0 0.0
    %4675 = vmatprep.subr.mxu0 0.0
    %4676 = vmatpush2.msra.mxu0 0.0
    %4677 = vmatprep.subr.mxu0 0.0
    %4678 = vmatpush2.msra.mxu0 0.0
    %4679 = vmatprep.subr.mxu0 0.0
    %4680 = vmatpush2.msra.mxu0 0.0
    %4681 = vmatprep.mubr.f32.mxu0 0.0
    %4682 = vmatmul.mubr.f32.gmra.mxu0 %v4615
    %v4683 = vpop.f32.mrf.mxu0
    %v4684 = vadd.f32 %v4610, %v4683
    %v4685 = vpop.f32.mrf.mxu0
    %4686 = vdwg.mxu0
    %vm4687 = vcmask 140288
    %v4688 = vsel %vm4687, %v4684, -inf
    %4689 = vmax.xlane.f32.xlu0 %v4688
    %v4690 = vpop.xlane.xlu0 %4689
    %v4691 = vsub.f32 %v4684, %v4690
    %v4692 = vmul.f32 %v4691, 1.442695
    %v4693 = vpow.pop %v4692
    %v4694 = vsel %vm4687, %v4693, 0.0
    %4695 = vadd.xlane.f32.xlu0 %v4694
    %v4696 = vpop.xlane.xlu0 %4695
    %v4697 = vrcp.pop %v4696
    %v4698 = vmul.f32 %v4693, %v4697
    %4699 = vst.msk [vmem:[#allocation2] sm:$0x3] %vm4687, %v4698
    // Predicated region
    $region70: #{tpu_custom_call.1} parent=1 // pred_check
      _
    $region71: #{tpu_custom_call.1} parent=1 // pred_check_branch
      %4701 = sbr.rel (0) target = $region73
    $region72: #{tpu_custom_call.1} parent=1 // pred_region
      %s4703 = ssub.s32 32, 32
      %4704 = vsyncadd [#allocation3], %s4703
      %s4706 = sshll.u32 [#allocation2], 4
      %s4707 = int_to_ptr.vmem [resolvable:$true] %s4706
      %4709 = dma.vmem_to_hbm [thread:$0]  %s4707, 32, %s17, [#allocation3]
    $region73: #{tpu_custom_call.1} parent=1 // pred_fallthru
      _
    // Predicated region
    $region74: #{tpu_custom_call.1} parent=1 // pred_check
      _
    $region75: #{tpu_custom_call.1} parent=1 // pred_check_branch
      %4711 = sbr.rel (0) target = $region77
    $region76: #{tpu_custom_call.1} parent=1 // pred_region
      %4712 = dma.done [#allocation3], 32
    $region77: #{tpu_custom_call.1} parent=1 // pred_fallthru
      _
    %4713 = vsyncpa [#allocation3], 1

</llo_original>
